<compile_context>
chip_gen: v7x
topology: tpu7x:2x2x1
jax: 0.10.0
libtpu: 0.0.40
codegen_flags: <defaults>
</compile_context>

<pallas_src>
import jax
import jax.numpy as jnp
from jax import lax
from jax.experimental import pallas as pl
from jax.experimental.pallas import tpu as pltpu  # noqa: F401  (kept for TPU-specific tuning hooks)

EPS = 1e-3


def se_conv_bn_kernel(x_se_ref, w1_ref, b1_ref, x_ref, w2_ref, gamma_ref, beta_ref,
                      out_ref):
    # conv2d77 (1x1 conv == matvec in [C, HW] layout):
    #   s = w1 @ x_se + b1  -> [960, 1] column (already per-sublane, no transpose)
    s = jnp.dot(w1_ref[...], x_se_ref[...],
                preferred_element_type=jnp.float32) + b1_ref[...]
    # sigmoid (EUP)
    s = jax.nn.sigmoid(s)
    # SE scaling, broadcast over the lane (HW) axis: [960,196] * [960,1]
    y = x_ref[...] * s
    # conv2d78 (1x1 conv, no bias): [160,960] @ [960,196] -> [160,196]
    z = jnp.dot(w2_ref[...], y, preferred_element_type=jnp.float32)
    # BatchNorm2d (training mode): per-channel batch stats over N*H*W (= lane axis),
    # biased variance, one-pass E[x^2] - mean^2, eps=1e-3, affine.
    inv_n = 1.0 / z.shape[1]
    mean = jnp.sum(z, axis=1, keepdims=True) * inv_n           # [160,1]
    sumsq = jnp.sum(z * z, axis=1, keepdims=True) * inv_n      # [160,1]
    var = sumsq - mean * mean
    inv = lax.rsqrt(var + EPS)
    out_ref[...] = (z - mean) * (inv * gamma_ref[...]) + beta_ref[...]


def _full_spec(shape):
    # whole array as a single VMEM block (no grid)
    return pl.BlockSpec(shape, lambda: (0,) * len(shape))


def module_forward(x246, x243, w1, b1, w2, gamma, beta):
    """Pallas forward.

    x246: [1,40,1,1], x243: [1,960,H,W] (NCHW, fp32)
    w1:   [960,40]  (PyTorch Conv2d [C_out, C_in] layout), b1: [960]
    w2:   [160,960] (bias=False), gamma/beta: [160]
    """
    N, C_se = x246.shape[0], x246.shape[1]
    _, C, H, W = x243.shape
    C_out = w2.shape[0]
    assert N == 1, "module is specified for batch size 1"

    # Channels-on-sublanes [C, HW] layout: pure reshapes of NCHW, no transposes.
    x_se = x246.reshape(C_se, 1)            # [40, 1]
    x = x243.reshape(C, H * W)              # [960, 196]
    b1_c = b1.reshape(C, 1)
    gamma_c = gamma.reshape(C_out, 1)
    beta_c = beta.reshape(C_out, 1)

    out = pl.pallas_call(
        se_conv_bn_kernel,
        out_shape=jax.ShapeDtypeStruct((C_out, H * W), jnp.float32),
        in_specs=[
            _full_spec(x_se.shape),
            _full_spec(w1.shape),
            _full_spec(b1_c.shape),
            _full_spec(x.shape),
            _full_spec(w2.shape),
            _full_spec(gamma_c.shape),
            _full_spec(beta_c.shape),
        ],
        out_specs=_full_spec((C_out, H * W)),
    )(x_se, w1, b1_c, x, w2, gamma_c, beta_c)

    # [160,196] -> NCHW [1,160,14,14]: pure reshape, no transpose.
    return out.reshape(N, C_out, H, W)


def reference_forward(x246, x243, w1, b1, w2, gamma, beta):
    """Pure-JAX reference of the same math (for correctness check)."""
    N, C_se = x246.shape[0], x246.shape[1]
    _, C, H, W = x243.shape
    C_out = w2.shape[0]
    s = jax.nn.sigmoid(w1 @ x246.reshape(C_se, 1) + b1[:, None])   # [960,1]
    y = x243.reshape(C, H * W) * s                                  # [960,196]
    z = w2 @ y                                                      # [160,196]
    mean = jnp.mean(z, axis=1, keepdims=True)
    var = jnp.mean((z - mean) ** 2, axis=1, keepdims=True)
    o = (z - mean) * lax.rsqrt(var + EPS) * gamma[:, None] + beta[:, None]
    return o.reshape(N, C_out, H, W)


if __name__ == "__main__":
    # Deterministic parameter / input construction (shapes from module __init__).
    key = jax.random.PRNGKey(0)
    k1, k2, k3, k4, k5, k6, k7 = jax.random.split(key, 7)

    C_SE, C_MID, C_OUT, H, W = 40, 960, 160, 14, 14

    # conv2d77: Conv2d(40, 960, 1x1) -> weight [C_out, C_in] (PyTorch layout) + bias
    w1 = jax.random.normal(k1, (C_MID, C_SE), jnp.float32) * 0.1
    b1 = jax.random.normal(k2, (C_MID,), jnp.float32) * 0.1
    # conv2d78: Conv2d(960, 160, 1x1, bias=False) -> [C_out, C_in]
    w2 = jax.random.normal(k3, (C_OUT, C_MID), jnp.float32) * 0.05
    # batchnorm2d54 affine params (PyTorch init: gamma=1, beta=0; perturbed for test)
    gamma = 1.0 + jax.random.normal(k4, (C_OUT,), jnp.float32) * 0.1
    beta = jax.random.normal(k5, (C_OUT,), jnp.float32) * 0.1

    # Inputs (shapes implied by the module's forward)
    x246 = jax.random.normal(k6, (1, C_SE, 1, 1), jnp.float32)
    x243 = jax.random.normal(k7, (1, C_MID, H, W), jnp.float32)

    out = module_forward(x246, x243, w1, b1, w2, gamma, beta)
    out = jax.block_until_ready(out)

    ref = reference_forward(x246, x243, w1, b1, w2, gamma, beta)
    assert out.shape == (1, C_OUT, H, W), out.shape
    assert jnp.allclose(out, ref, atol=1e-4, rtol=1e-4), "mismatch vs reference"

    print("KERNEL_OK")
</pallas_src>

<mosaic_0001>
module attributes {stable_mosaic.version = 11 : i64} {
  func.func @se_conv_bn_kernel(%arg0: memref<40x1xf32, #tpu.memory_space<vmem>>, %arg1: memref<960x40xf32, #tpu.memory_space<vmem>>, %arg2: memref<960x1xf32, #tpu.memory_space<vmem>>, %arg3: memref<960x196xf32, #tpu.memory_space<vmem>>, %arg4: memref<160x960xf32, #tpu.memory_space<vmem>>, %arg5: memref<160x1xf32, #tpu.memory_space<vmem>>, %arg6: memref<160x1xf32, #tpu.memory_space<vmem>>, %arg7: memref<160x196xf32, #tpu.memory_space<vmem>>) attributes {dimension_semantics = [], scalar_prefetch = 0 : i64, scratch_operands = 0 : i64, tpu.core_type = #tpu.core_type<tc>} {
    %c0 = arith.constant 0 : index
    %c0_0 = arith.constant 0 : index
    %0 = vector.load %arg1[%c0, %c0_0] : memref<960x40xf32, #tpu.memory_space<vmem>>, vector<960x40xf32>
    %c0_1 = arith.constant 0 : index
    %c0_2 = arith.constant 0 : index
    %1 = vector.load %arg0[%c0_1, %c0_2] : memref<40x1xf32, #tpu.memory_space<vmem>>, vector<40x1xf32>
    %cst = arith.constant dense<0.000000e+00> : vector<960x1xf32>
    %2 = tpu.matmul %0, %1, %cst {dimension_numbers = #tpu.dot_dimension_numbers<[1], [0], [0], [1], [0, 0, 1, 1], [], []>} : vector<960x40xf32>, vector<40x1xf32>, vector<960x1xf32> -> vector<960x1xf32>
    %c0_3 = arith.constant 0 : index
    %c0_4 = arith.constant 0 : index
    %3 = vector.load %arg2[%c0_3, %c0_4] : memref<960x1xf32, #tpu.memory_space<vmem>>, vector<960x1xf32>
    %4 = arith.addf %2, %3 : vector<960x1xf32>
    %5 = arith.negf %4 : vector<960x1xf32>
    %6 = math.exp %5 : vector<960x1xf32>
    %cst_5 = arith.constant 1.000000e+00 : f32
    %7 = vector.broadcast %cst_5 : f32 to vector<960x1xf32>
    %8 = arith.addf %7, %6 : vector<960x1xf32>
    %9 = arith.divf %7, %8 : vector<960x1xf32>
    %c0_6 = arith.constant 0 : index
    %c0_7 = arith.constant 0 : index
    %10 = vector.load %arg3[%c0_6, %c0_7] : memref<960x196xf32, #tpu.memory_space<vmem>>, vector<960x196xf32>
    %11 = vector.broadcast %9 : vector<960x1xf32> to vector<960x196xf32>
    %12 = arith.mulf %10, %11 : vector<960x196xf32>
    %c0_8 = arith.constant 0 : index
    %c0_9 = arith.constant 0 : index
    %13 = vector.load %arg4[%c0_8, %c0_9] : memref<160x960xf32, #tpu.memory_space<vmem>>, vector<160x960xf32>
    %cst_10 = arith.constant dense<0.000000e+00> : vector<160x196xf32>
    %14 = tpu.matmul %13, %12, %cst_10 {dimension_numbers = #tpu.dot_dimension_numbers<[1], [0], [0], [1], [0, 0, 1, 1], [], []>} : vector<160x960xf32>, vector<960x196xf32>, vector<160x196xf32> -> vector<160x196xf32>
    %cst_11 = arith.constant dense<0.000000e+00> : vector<160xf32>
    %15 = vector.multi_reduction <add>, %14, %cst_11 [1] : vector<160x196xf32> to vector<160xf32>
    %16 = vector.shape_cast %15 : vector<160xf32> to vector<160x1xf32>
    %cst_12 = arith.constant 0.00510204071 : f32
    %17 = vector.broadcast %cst_12 : f32 to vector<160x1xf32>
    %18 = arith.mulf %16, %17 : vector<160x1xf32>
    %19 = arith.mulf %14, %14 : vector<160x196xf32>
    %cst_13 = arith.constant dense<0.000000e+00> : vector<160xf32>
    %20 = vector.multi_reduction <add>, %19, %cst_13 [1] : vector<160x196xf32> to vector<160xf32>
    %21 = vector.shape_cast %20 : vector<160xf32> to vector<160x1xf32>
    %cst_14 = arith.constant 0.00510204071 : f32
    %22 = vector.broadcast %cst_14 : f32 to vector<160x1xf32>
    %23 = arith.mulf %21, %22 : vector<160x1xf32>
    %24 = arith.mulf %18, %18 : vector<160x1xf32>
    %25 = arith.subf %23, %24 : vector<160x1xf32>
    %cst_15 = arith.constant 1.000000e-03 : f32
    %26 = vector.broadcast %cst_15 : f32 to vector<160x1xf32>
    %27 = arith.addf %25, %26 : vector<160x1xf32>
    %28 = math.rsqrt %27 : vector<160x1xf32>
    %29 = vector.broadcast %18 : vector<160x1xf32> to vector<160x196xf32>
    %30 = arith.subf %14, %29 : vector<160x196xf32>
    %c0_16 = arith.constant 0 : index
    %c0_17 = arith.constant 0 : index
    %31 = vector.load %arg5[%c0_16, %c0_17] : memref<160x1xf32, #tpu.memory_space<vmem>>, vector<160x1xf32>
    %32 = arith.mulf %28, %31 : vector<160x1xf32>
    %33 = vector.broadcast %32 : vector<160x1xf32> to vector<160x196xf32>
    %34 = arith.mulf %30, %33 : vector<160x196xf32>
    %c0_18 = arith.constant 0 : index
    %c0_19 = arith.constant 0 : index
    %35 = vector.load %arg6[%c0_18, %c0_19] : memref<160x1xf32, #tpu.memory_space<vmem>>, vector<160x1xf32>
    %36 = vector.broadcast %35 : vector<160x1xf32> to vector<160x196xf32>
    %37 = arith.addf %34, %36 : vector<160x196xf32>
    %c0_20 = arith.constant 0 : index
    %c0_21 = arith.constant 0 : index
    %38 = vector.load %arg7[%c0_20, %c0_21] : memref<160x196xf32, #tpu.memory_space<vmem>>, vector<160x196xf32>
    tpu.vector_store %arg7[%c0_20, %c0_21], %37 {strides = array<i32>} : memref<160x196xf32, #tpu.memory_space<vmem>>, vector<160x196xf32>,
    return
  }
}

</mosaic_0001>

<llo_original>
// kernel: tpu_custom_call.1
$region0: #{tpu_custom_call.1}
  #allocation0 [shape = 'u32[]', space=smem, size = 0x4, offset = 0x4, fixed_abs, tag = 'smem constant byte address 0x4 - core index']
  #allocation1 [shape = 'u32[144,128]{1,0:T(1,128)}', space=vmem, size = 0x12000, scoped, tag = 'internal scratch']
  %s0 = inlined_call_operand.vmem [shape: f32[40,1], index: 0, kind: input, shape index: {}]
  %s1 = inlined_call_operand.vmem [shape: f32[960,40], index: 1, kind: input, shape index: {}]
  %s2 = inlined_call_operand.vmem [shape: f32[960,1], index: 2, kind: input, shape index: {}]
  %s3 = inlined_call_operand.vmem [shape: f32[960,196], index: 3, kind: input, shape index: {}]
  %s4 = inlined_call_operand.vmem [shape: f32[160,960], index: 4, kind: input, shape index: {}]
  %s5 = inlined_call_operand.vmem [shape: f32[160,1], index: 5, kind: input, shape index: {}]
  %s6 = inlined_call_operand.vmem [shape: f32[160,1], index: 6, kind: input, shape index: {}]
  %s7 = inlined_call_operand.hbm [shape: f32[160,196], index: 7, kind: output, shape index: {}]
  %s8 = sld [smem:[#allocation0]]
  $region38: #{tpu_custom_call.1} parent=0
    _
  %s10 = ssub.s32 1, %s8
  %s11 = scalar_select 0, %s10, %s8
  $region1: #{tpu_custom_call.1} parent=0
    #allocation2 [shape = 'u8[163840]{0}', space=vmem, size = 0x28000, scoped, tag = 'output window, operand 0, single buffered']
    #allocation3 [shape = 's32[1]{0}', space=sflag, size = 0x4, scoped, tag = 'scoped memory for tpu_custom_call.1']
    %12 = vsyncpa [#allocation3], 0
    // Predicated region
    $region2: #{tpu_custom_call.1} parent=1 // pred_check
      _
    $region3: #{tpu_custom_call.1} parent=1 // pred_check_branch
      %14 = sbr.rel (0) target = $region5
    $region4: #{tpu_custom_call.1} parent=1 // pred_region
      _
    $region5: #{tpu_custom_call.1} parent=1 // pred_fallthru
      _
    // Predicated region
    $region6: #{tpu_custom_call.1} parent=1 // pred_check
      _
    $region7: #{tpu_custom_call.1} parent=1 // pred_check_branch
      %16 = sbr.rel (0) target = $region9
    $region8: #{tpu_custom_call.1} parent=1 // pred_region
      _
    $region9: #{tpu_custom_call.1} parent=1 // pred_fallthru
      _
    // Predicated region
    $region10: #{tpu_custom_call.1} parent=1 // pred_check
      _
    $region11: #{tpu_custom_call.1} parent=1 // pred_check_branch
      %18 = sbr.rel (0) target = $region13
    $region12: #{tpu_custom_call.1} parent=1 // pred_region
      _
    $region13: #{tpu_custom_call.1} parent=1 // pred_fallthru
      _
    // Predicated region
    $region14: #{tpu_custom_call.1} parent=1 // pred_check
      _
    $region15: #{tpu_custom_call.1} parent=1 // pred_check_branch
      %20 = sbr.rel (0) target = $region17
    $region16: #{tpu_custom_call.1} parent=1 // pred_region
      _
    $region17: #{tpu_custom_call.1} parent=1 // pred_fallthru
      _
    // Predicated region
    $region18: #{tpu_custom_call.1} parent=1 // pred_check
      _
    $region19: #{tpu_custom_call.1} parent=1 // pred_check_branch
      %22 = sbr.rel (0) target = $region21
    $region20: #{tpu_custom_call.1} parent=1 // pred_region
      _
    $region21: #{tpu_custom_call.1} parent=1 // pred_fallthru
      _
    // Predicated region
    $region22: #{tpu_custom_call.1} parent=1 // pred_check
      _
    $region23: #{tpu_custom_call.1} parent=1 // pred_check_branch
      %24 = sbr.rel (0) target = $region25
    $region24: #{tpu_custom_call.1} parent=1 // pred_region
      _
    $region25: #{tpu_custom_call.1} parent=1 // pred_fallthru
      _
    // Predicated region
    $region26: #{tpu_custom_call.1} parent=1 // pred_check
      _
    $region27: #{tpu_custom_call.1} parent=1 // pred_check_branch
      %26 = sbr.rel (0) target = $region29
    $region28: #{tpu_custom_call.1} parent=1 // pred_region
      _
    $region29: #{tpu_custom_call.1} parent=1 // pred_fallthru
      _
    %v27 = vld [vmem:[%s1] sm:$0xff]
    %v28 = vld [vmem:[%s1 + $0x8] sm:$0xff]
    %v29 = vld [vmem:[%s1 + $0x10] sm:$0xff]
    %v30 = vld [vmem:[%s1 + $0x18] sm:$0xff]
    %v31 = vld [vmem:[%s1 + $0x20] sm:$0xff]
    %v32 = vld [vmem:[%s1 + $0x28] sm:$0xff]
    %v33 = vld [vmem:[%s1 + $0x30] sm:$0xff]
    %v34 = vld [vmem:[%s1 + $0x38] sm:$0xff]
    %v35 = vld [vmem:[%s1 + $0x40] sm:$0xff]
    %v36 = vld [vmem:[%s1 + $0x48] sm:$0xff]
    %v37 = vld [vmem:[%s1 + $0x50] sm:$0xff]
    %v38 = vld [vmem:[%s1 + $0x58] sm:$0xff]
    %v39 = vld [vmem:[%s1 + $0x60] sm:$0xff]
    %v40 = vld [vmem:[%s1 + $0x68] sm:$0xff]
    %v41 = vld [vmem:[%s1 + $0x70] sm:$0xff]
    %v42 = vld [vmem:[%s1 + $0x78] sm:$0xff]
    %v43 = vld [vmem:[%s1 + $0x80] sm:$0xff]
    %v44 = vld [vmem:[%s1 + $0x88] sm:$0xff]
    %v45 = vld [vmem:[%s1 + $0x90] sm:$0xff]
    %v46 = vld [vmem:[%s1 + $0x98] sm:$0xff]
    %v47 = vld [vmem:[%s1 + $0xa0] sm:$0xff]
    %v48 = vld [vmem:[%s1 + $0xa8] sm:$0xff]
    %v49 = vld [vmem:[%s1 + $0xb0] sm:$0xff]
    %v50 = vld [vmem:[%s1 + $0xb8] sm:$0xff]
    %v51 = vld [vmem:[%s1 + $0xc0] sm:$0xff]
    %v52 = vld [vmem:[%s1 + $0xc8] sm:$0xff]
    %v53 = vld [vmem:[%s1 + $0xd0] sm:$0xff]
    %v54 = vld [vmem:[%s1 + $0xd8] sm:$0xff]
    %v55 = vld [vmem:[%s1 + $0xe0] sm:$0xff]
    %v56 = vld [vmem:[%s1 + $0xe8] sm:$0xff]
    %v57 = vld [vmem:[%s1 + $0xf0] sm:$0xff]
    %v58 = vld [vmem:[%s1 + $0xf8] sm:$0xff]
    %v59 = vld [vmem:[%s1 + $0x100] sm:$0xff]
    %v60 = vld [vmem:[%s1 + $0x108] sm:$0xff]
    %v61 = vld [vmem:[%s1 + $0x110] sm:$0xff]
    %v62 = vld [vmem:[%s1 + $0x118] sm:$0xff]
    %v63 = vld [vmem:[%s1 + $0x120] sm:$0xff]
    %v64 = vld [vmem:[%s1 + $0x128] sm:$0xff]
    %v65 = vld [vmem:[%s1 + $0x130] sm:$0xff]
    %v66 = vld [vmem:[%s1 + $0x138] sm:$0xff]
    %v67 = vld [vmem:[%s1 + $0x140] sm:$0xff]
    %v68 = vld [vmem:[%s1 + $0x148] sm:$0xff]
    %v69 = vld [vmem:[%s1 + $0x150] sm:$0xff]
    %v70 = vld [vmem:[%s1 + $0x158] sm:$0xff]
    %v71 = vld [vmem:[%s1 + $0x160] sm:$0xff]
    %v72 = vld [vmem:[%s1 + $0x168] sm:$0xff]
    %v73 = vld [vmem:[%s1 + $0x170] sm:$0xff]
    %v74 = vld [vmem:[%s1 + $0x178] sm:$0xff]
    %v75 = vld [vmem:[%s1 + $0x180] sm:$0xff]
    %v76 = vld [vmem:[%s1 + $0x188] sm:$0xff]
    %v77 = vld [vmem:[%s1 + $0x190] sm:$0xff]
    %v78 = vld [vmem:[%s1 + $0x198] sm:$0xff]
    %v79 = vld [vmem:[%s1 + $0x1a0] sm:$0xff]
    %v80 = vld [vmem:[%s1 + $0x1a8] sm:$0xff]
    %v81 = vld [vmem:[%s1 + $0x1b0] sm:$0xff]
    %v82 = vld [vmem:[%s1 + $0x1b8] sm:$0xff]
    %v83 = vld [vmem:[%s1 + $0x1c0] sm:$0xff]
    %v84 = vld [vmem:[%s1 + $0x1c8] sm:$0xff]
    %v85 = vld [vmem:[%s1 + $0x1d0] sm:$0xff]
    %v86 = vld [vmem:[%s1 + $0x1d8] sm:$0xff]
    %v87 = vld [vmem:[%s1 + $0x1e0] sm:$0xff]
    %v88 = vld [vmem:[%s1 + $0x1e8] sm:$0xff]
    %v89 = vld [vmem:[%s1 + $0x1f0] sm:$0xff]
    %v90 = vld [vmem:[%s1 + $0x1f8] sm:$0xff]
    %v91 = vld [vmem:[%s1 + $0x200] sm:$0xff]
    %v92 = vld [vmem:[%s1 + $0x208] sm:$0xff]
    %v93 = vld [vmem:[%s1 + $0x210] sm:$0xff]
    %v94 = vld [vmem:[%s1 + $0x218] sm:$0xff]
    %v95 = vld [vmem:[%s1 + $0x220] sm:$0xff]
    %v96 = vld [vmem:[%s1 + $0x228] sm:$0xff]
    %v97 = vld [vmem:[%s1 + $0x230] sm:$0xff]
    %v98 = vld [vmem:[%s1 + $0x238] sm:$0xff]
    %v99 = vld [vmem:[%s1 + $0x240] sm:$0xff]
    %v100 = vld [vmem:[%s1 + $0x248] sm:$0xff]
    %v101 = vld [vmem:[%s1 + $0x250] sm:$0xff]
    %v102 = vld [vmem:[%s1 + $0x258] sm:$0xff]
    %v103 = vld [vmem:[%s1 + $0x260] sm:$0xff]
    %v104 = vld [vmem:[%s1 + $0x268] sm:$0xff]
    %v105 = vld [vmem:[%s1 + $0x270] sm:$0xff]
    %v106 = vld [vmem:[%s1 + $0x278] sm:$0xff]
    %v107 = vld [vmem:[%s1 + $0x280] sm:$0xff]
    %v108 = vld [vmem:[%s1 + $0x288] sm:$0xff]
    %v109 = vld [vmem:[%s1 + $0x290] sm:$0xff]
    %v110 = vld [vmem:[%s1 + $0x298] sm:$0xff]
    %v111 = vld [vmem:[%s1 + $0x2a0] sm:$0xff]
    %v112 = vld [vmem:[%s1 + $0x2a8] sm:$0xff]
    %v113 = vld [vmem:[%s1 + $0x2b0] sm:$0xff]
    %v114 = vld [vmem:[%s1 + $0x2b8] sm:$0xff]
    %v115 = vld [vmem:[%s1 + $0x2c0] sm:$0xff]
    %v116 = vld [vmem:[%s1 + $0x2c8] sm:$0xff]
    %v117 = vld [vmem:[%s1 + $0x2d0] sm:$0xff]
    %v118 = vld [vmem:[%s1 + $0x2d8] sm:$0xff]
    %v119 = vld [vmem:[%s1 + $0x2e0] sm:$0xff]
    %v120 = vld [vmem:[%s1 + $0x2e8] sm:$0xff]
    %v121 = vld [vmem:[%s1 + $0x2f0] sm:$0xff]
    %v122 = vld [vmem:[%s1 + $0x2f8] sm:$0xff]
    %v123 = vld [vmem:[%s1 + $0x300] sm:$0xff]
    %v124 = vld [vmem:[%s1 + $0x308] sm:$0xff]
    %v125 = vld [vmem:[%s1 + $0x310] sm:$0xff]
    %v126 = vld [vmem:[%s1 + $0x318] sm:$0xff]
    %v127 = vld [vmem:[%s1 + $0x320] sm:$0xff]
    %v128 = vld [vmem:[%s1 + $0x328] sm:$0xff]
    %v129 = vld [vmem:[%s1 + $0x330] sm:$0xff]
    %v130 = vld [vmem:[%s1 + $0x338] sm:$0xff]
    %v131 = vld [vmem:[%s1 + $0x340] sm:$0xff]
    %v132 = vld [vmem:[%s1 + $0x348] sm:$0xff]
    %v133 = vld [vmem:[%s1 + $0x350] sm:$0xff]
    %v134 = vld [vmem:[%s1 + $0x358] sm:$0xff]
    %v135 = vld [vmem:[%s1 + $0x360] sm:$0xff]
    %v136 = vld [vmem:[%s1 + $0x368] sm:$0xff]
    %v137 = vld [vmem:[%s1 + $0x370] sm:$0xff]
    %v138 = vld [vmem:[%s1 + $0x378] sm:$0xff]
    %v139 = vld [vmem:[%s1 + $0x380] sm:$0xff]
    %v140 = vld [vmem:[%s1 + $0x388] sm:$0xff]
    %v141 = vld [vmem:[%s1 + $0x390] sm:$0xff]
    %v142 = vld [vmem:[%s1 + $0x398] sm:$0xff]
    %v143 = vld [vmem:[%s1 + $0x3a0] sm:$0xff]
    %v144 = vld [vmem:[%s1 + $0x3a8] sm:$0xff]
    %v145 = vld [vmem:[%s1 + $0x3b0] sm:$0xff]
    %v146 = vld [vmem:[%s1 + $0x3b8] sm:$0xff]
    %v147 = vld [vmem:[%s0] sm:$0xff]
    %v148 = vld [vmem:[%s0 + $0x8] sm:$0xff]
    %v149 = vld [vmem:[%s0 + $0x10] sm:$0xff]
    %v150 = vld [vmem:[%s0 + $0x18] sm:$0xff]
    %v151 = vld [vmem:[%s0 + $0x20] sm:$0xff]
    %v152 = vld [vmem:[%s2] sm:$0xff]
    %v153 = vld [vmem:[%s2 + $0x8] sm:$0xff]
    %v154 = vld [vmem:[%s2 + $0x10] sm:$0xff]
    %v155 = vld [vmem:[%s2 + $0x18] sm:$0xff]
    %v156 = vld [vmem:[%s2 + $0x20] sm:$0xff]
    %v157 = vld [vmem:[%s2 + $0x28] sm:$0xff]
    %v158 = vld [vmem:[%s2 + $0x30] sm:$0xff]
    %v159 = vld [vmem:[%s2 + $0x38] sm:$0xff]
    %v160 = vld [vmem:[%s2 + $0x40] sm:$0xff]
    %v161 = vld [vmem:[%s2 + $0x48] sm:$0xff]
    %v162 = vld [vmem:[%s2 + $0x50] sm:$0xff]
    %v163 = vld [vmem:[%s2 + $0x58] sm:$0xff]
    %v164 = vld [vmem:[%s2 + $0x60] sm:$0xff]
    %v165 = vld [vmem:[%s2 + $0x68] sm:$0xff]
    %v166 = vld [vmem:[%s2 + $0x70] sm:$0xff]
    %v167 = vld [vmem:[%s2 + $0x78] sm:$0xff]
    %v168 = vld [vmem:[%s2 + $0x80] sm:$0xff]
    %v169 = vld [vmem:[%s2 + $0x88] sm:$0xff]
    %v170 = vld [vmem:[%s2 + $0x90] sm:$0xff]
    %v171 = vld [vmem:[%s2 + $0x98] sm:$0xff]
    %v172 = vld [vmem:[%s2 + $0xa0] sm:$0xff]
    %v173 = vld [vmem:[%s2 + $0xa8] sm:$0xff]
    %v174 = vld [vmem:[%s2 + $0xb0] sm:$0xff]
    %v175 = vld [vmem:[%s2 + $0xb8] sm:$0xff]
    %v176 = vld [vmem:[%s2 + $0xc0] sm:$0xff]
    %v177 = vld [vmem:[%s2 + $0xc8] sm:$0xff]
    %v178 = vld [vmem:[%s2 + $0xd0] sm:$0xff]
    %v179 = vld [vmem:[%s2 + $0xd8] sm:$0xff]
    %v180 = vld [vmem:[%s2 + $0xe0] sm:$0xff]
    %v181 = vld [vmem:[%s2 + $0xe8] sm:$0xff]
    %v182 = vld [vmem:[%s2 + $0xf0] sm:$0xff]
    %v183 = vld [vmem:[%s2 + $0xf8] sm:$0xff]
    %v184 = vld [vmem:[%s2 + $0x100] sm:$0xff]
    %v185 = vld [vmem:[%s2 + $0x108] sm:$0xff]
    %v186 = vld [vmem:[%s2 + $0x110] sm:$0xff]
    %v187 = vld [vmem:[%s2 + $0x118] sm:$0xff]
    %v188 = vld [vmem:[%s2 + $0x120] sm:$0xff]
    %v189 = vld [vmem:[%s2 + $0x128] sm:$0xff]
    %v190 = vld [vmem:[%s2 + $0x130] sm:$0xff]
    %v191 = vld [vmem:[%s2 + $0x138] sm:$0xff]
    %v192 = vld [vmem:[%s2 + $0x140] sm:$0xff]
    %v193 = vld [vmem:[%s2 + $0x148] sm:$0xff]
    %v194 = vld [vmem:[%s2 + $0x150] sm:$0xff]
    %v195 = vld [vmem:[%s2 + $0x158] sm:$0xff]
    %v196 = vld [vmem:[%s2 + $0x160] sm:$0xff]
    %v197 = vld [vmem:[%s2 + $0x168] sm:$0xff]
    %v198 = vld [vmem:[%s2 + $0x170] sm:$0xff]
    %v199 = vld [vmem:[%s2 + $0x178] sm:$0xff]
    %v200 = vld [vmem:[%s2 + $0x180] sm:$0xff]
    %v201 = vld [vmem:[%s2 + $0x188] sm:$0xff]
    %v202 = vld [vmem:[%s2 + $0x190] sm:$0xff]
    %v203 = vld [vmem:[%s2 + $0x198] sm:$0xff]
    %v204 = vld [vmem:[%s2 + $0x1a0] sm:$0xff]
    %v205 = vld [vmem:[%s2 + $0x1a8] sm:$0xff]
    %v206 = vld [vmem:[%s2 + $0x1b0] sm:$0xff]
    %v207 = vld [vmem:[%s2 + $0x1b8] sm:$0xff]
    %v208 = vld [vmem:[%s2 + $0x1c0] sm:$0xff]
    %v209 = vld [vmem:[%s2 + $0x1c8] sm:$0xff]
    %v210 = vld [vmem:[%s2 + $0x1d0] sm:$0xff]
    %v211 = vld [vmem:[%s2 + $0x1d8] sm:$0xff]
    %v212 = vld [vmem:[%s2 + $0x1e0] sm:$0xff]
    %v213 = vld [vmem:[%s2 + $0x1e8] sm:$0xff]
    %v214 = vld [vmem:[%s2 + $0x1f0] sm:$0xff]
    %v215 = vld [vmem:[%s2 + $0x1f8] sm:$0xff]
    %v216 = vld [vmem:[%s2 + $0x200] sm:$0xff]
    %v217 = vld [vmem:[%s2 + $0x208] sm:$0xff]
    %v218 = vld [vmem:[%s2 + $0x210] sm:$0xff]
    %v219 = vld [vmem:[%s2 + $0x218] sm:$0xff]
    %v220 = vld [vmem:[%s2 + $0x220] sm:$0xff]
    %v221 = vld [vmem:[%s2 + $0x228] sm:$0xff]
    %v222 = vld [vmem:[%s2 + $0x230] sm:$0xff]
    %v223 = vld [vmem:[%s2 + $0x238] sm:$0xff]
    %v224 = vld [vmem:[%s2 + $0x240] sm:$0xff]
    %v225 = vld [vmem:[%s2 + $0x248] sm:$0xff]
    %v226 = vld [vmem:[%s2 + $0x250] sm:$0xff]
    %v227 = vld [vmem:[%s2 + $0x258] sm:$0xff]
    %v228 = vld [vmem:[%s2 + $0x260] sm:$0xff]
    %v229 = vld [vmem:[%s2 + $0x268] sm:$0xff]
    %v230 = vld [vmem:[%s2 + $0x270] sm:$0xff]
    %v231 = vld [vmem:[%s2 + $0x278] sm:$0xff]
    %v232 = vld [vmem:[%s2 + $0x280] sm:$0xff]
    %v233 = vld [vmem:[%s2 + $0x288] sm:$0xff]
    %v234 = vld [vmem:[%s2 + $0x290] sm:$0xff]
    %v235 = vld [vmem:[%s2 + $0x298] sm:$0xff]
    %v236 = vld [vmem:[%s2 + $0x2a0] sm:$0xff]
    %v237 = vld [vmem:[%s2 + $0x2a8] sm:$0xff]
    %v238 = vld [vmem:[%s2 + $0x2b0] sm:$0xff]
    %v239 = vld [vmem:[%s2 + $0x2b8] sm:$0xff]
    %v240 = vld [vmem:[%s2 + $0x2c0] sm:$0xff]
    %v241 = vld [vmem:[%s2 + $0x2c8] sm:$0xff]
    %v242 = vld [vmem:[%s2 + $0x2d0] sm:$0xff]
    %v243 = vld [vmem:[%s2 + $0x2d8] sm:$0xff]
    %v244 = vld [vmem:[%s2 + $0x2e0] sm:$0xff]
    %v245 = vld [vmem:[%s2 + $0x2e8] sm:$0xff]
    %v246 = vld [vmem:[%s2 + $0x2f0] sm:$0xff]
    %v247 = vld [vmem:[%s2 + $0x2f8] sm:$0xff]
    %v248 = vld [vmem:[%s2 + $0x300] sm:$0xff]
    %v249 = vld [vmem:[%s2 + $0x308] sm:$0xff]
    %v250 = vld [vmem:[%s2 + $0x310] sm:$0xff]
    %v251 = vld [vmem:[%s2 + $0x318] sm:$0xff]
    %v252 = vld [vmem:[%s2 + $0x320] sm:$0xff]
    %v253 = vld [vmem:[%s2 + $0x328] sm:$0xff]
    %v254 = vld [vmem:[%s2 + $0x330] sm:$0xff]
    %v255 = vld [vmem:[%s2 + $0x338] sm:$0xff]
    %v256 = vld [vmem:[%s2 + $0x340] sm:$0xff]
    %v257 = vld [vmem:[%s2 + $0x348] sm:$0xff]
    %v258 = vld [vmem:[%s2 + $0x350] sm:$0xff]
    %v259 = vld [vmem:[%s2 + $0x358] sm:$0xff]
    %v260 = vld [vmem:[%s2 + $0x360] sm:$0xff]
    %v261 = vld [vmem:[%s2 + $0x368] sm:$0xff]
    %v262 = vld [vmem:[%s2 + $0x370] sm:$0xff]
    %v263 = vld [vmem:[%s2 + $0x378] sm:$0xff]
    %v264 = vld [vmem:[%s2 + $0x380] sm:$0xff]
    %v265 = vld [vmem:[%s2 + $0x388] sm:$0xff]
    %v266 = vld [vmem:[%s2 + $0x390] sm:$0xff]
    %v267 = vld [vmem:[%s2 + $0x398] sm:$0xff]
    %v268 = vld [vmem:[%s2 + $0x3a0] sm:$0xff]
    %v269 = vld [vmem:[%s2 + $0x3a8] sm:$0xff]
    %v270 = vld [vmem:[%s2 + $0x3b0] sm:$0xff]
    %v271 = vld [vmem:[%s2 + $0x3b8] sm:$0xff]
    %vm272 = vcmask 326656
    %v274 = vsel %vm272, %v27, 0
    %v277 = vsel %vm272, %v28, 0
    %v280 = vsel %vm272, %v29, 0
    %v283 = vsel %vm272, %v30, 0
    %v286 = vsel %vm272, %v31, 0
    %v289 = vsel %vm272, %v32, 0
    %v292 = vsel %vm272, %v33, 0
    %v295 = vsel %vm272, %v34, 0
    %v298 = vsel %vm272, %v35, 0
    %v301 = vsel %vm272, %v36, 0
    %v304 = vsel %vm272, %v37, 0
    %v307 = vsel %vm272, %v38, 0
    %v310 = vsel %vm272, %v39, 0
    %v313 = vsel %vm272, %v40, 0
    %v316 = vsel %vm272, %v41, 0
    %v319 = vsel %vm272, %v42, 0
    %v322 = vsel %vm272, %v43, 0
    %v325 = vsel %vm272, %v44, 0
    %v328 = vsel %vm272, %v45, 0
    %v331 = vsel %vm272, %v46, 0
    %v334 = vsel %vm272, %v47, 0
    %v337 = vsel %vm272, %v48, 0
    %v340 = vsel %vm272, %v49, 0
    %v343 = vsel %vm272, %v50, 0
    %v346 = vsel %vm272, %v51, 0
    %v349 = vsel %vm272, %v52, 0
    %v352 = vsel %vm272, %v53, 0
    %v355 = vsel %vm272, %v54, 0
    %v358 = vsel %vm272, %v55, 0
    %v361 = vsel %vm272, %v56, 0
    %v364 = vsel %vm272, %v57, 0
    %v367 = vsel %vm272, %v58, 0
    %v370 = vsel %vm272, %v59, 0
    %v373 = vsel %vm272, %v60, 0
    %v376 = vsel %vm272, %v61, 0
    %v379 = vsel %vm272, %v62, 0
    %v382 = vsel %vm272, %v63, 0
    %v385 = vsel %vm272, %v64, 0
    %v388 = vsel %vm272, %v65, 0
    %v391 = vsel %vm272, %v66, 0
    %v394 = vsel %vm272, %v67, 0
    %v397 = vsel %vm272, %v68, 0
    %v400 = vsel %vm272, %v69, 0
    %v403 = vsel %vm272, %v70, 0
    %v406 = vsel %vm272, %v71, 0
    %v409 = vsel %vm272, %v72, 0
    %v412 = vsel %vm272, %v73, 0
    %v415 = vsel %vm272, %v74, 0
    %v418 = vsel %vm272, %v75, 0
    %v421 = vsel %vm272, %v76, 0
    %v424 = vsel %vm272, %v77, 0
    %v427 = vsel %vm272, %v78, 0
    %v430 = vsel %vm272, %v79, 0
    %v433 = vsel %vm272, %v80, 0
    %v436 = vsel %vm272, %v81, 0
    %v439 = vsel %vm272, %v82, 0
    %v442 = vsel %vm272, %v83, 0
    %v445 = vsel %vm272, %v84, 0
    %v448 = vsel %vm272, %v85, 0
    %v451 = vsel %vm272, %v86, 0
    %v454 = vsel %vm272, %v87, 0
    %v457 = vsel %vm272, %v88, 0
    %v460 = vsel %vm272, %v89, 0
    %v463 = vsel %vm272, %v90, 0
    %v466 = vsel %vm272, %v91, 0
    %v469 = vsel %vm272, %v92, 0
    %v472 = vsel %vm272, %v93, 0
    %v475 = vsel %vm272, %v94, 0
    %v478 = vsel %vm272, %v95, 0
    %v481 = vsel %vm272, %v96, 0
    %v484 = vsel %vm272, %v97, 0
    %v487 = vsel %vm272, %v98, 0
    %v490 = vsel %vm272, %v99, 0
    %v493 = vsel %vm272, %v100, 0
    %v496 = vsel %vm272, %v101, 0
    %v499 = vsel %vm272, %v102, 0
    %v502 = vsel %vm272, %v103, 0
    %v505 = vsel %vm272, %v104, 0
    %v508 = vsel %vm272, %v105, 0
    %v511 = vsel %vm272, %v106, 0
    %v514 = vsel %vm272, %v107, 0
    %v517 = vsel %vm272, %v108, 0
    %v520 = vsel %vm272, %v109, 0
    %v523 = vsel %vm272, %v110, 0
    %v526 = vsel %vm272, %v111, 0
    %v529 = vsel %vm272, %v112, 0
    %v532 = vsel %vm272, %v113, 0
    %v535 = vsel %vm272, %v114, 0
    %v538 = vsel %vm272, %v115, 0
    %v541 = vsel %vm272, %v116, 0
    %v544 = vsel %vm272, %v117, 0
    %v547 = vsel %vm272, %v118, 0
    %v550 = vsel %vm272, %v119, 0
    %v553 = vsel %vm272, %v120, 0
    %v556 = vsel %vm272, %v121, 0
    %v559 = vsel %vm272, %v122, 0
    %v562 = vsel %vm272, %v123, 0
    %v565 = vsel %vm272, %v124, 0
    %v568 = vsel %vm272, %v125, 0
    %v571 = vsel %vm272, %v126, 0
    %v574 = vsel %vm272, %v127, 0
    %v577 = vsel %vm272, %v128, 0
    %v580 = vsel %vm272, %v129, 0
    %v583 = vsel %vm272, %v130, 0
    %v586 = vsel %vm272, %v131, 0
    %v589 = vsel %vm272, %v132, 0
    %v592 = vsel %vm272, %v133, 0
    %v595 = vsel %vm272, %v134, 0
    %v598 = vsel %vm272, %v135, 0
    %v601 = vsel %vm272, %v136, 0
    %v604 = vsel %vm272, %v137, 0
    %v607 = vsel %vm272, %v138, 0
    %v610 = vsel %vm272, %v139, 0
    %v613 = vsel %vm272, %v140, 0
    %v616 = vsel %vm272, %v141, 0
    %v619 = vsel %vm272, %v142, 0
    %v622 = vsel %vm272, %v143, 0
    %v625 = vsel %vm272, %v144, 0
    %v628 = vsel %vm272, %v145, 0
    %v631 = vsel %vm272, %v146, 0
    %633 = vmatprep.subr.mxu0 0.0
    %634 = vmatpush1.msra.mxu0 %v147
    %635 = vmatprep.subr.mxu0 0.0
    %636 = vmatpush1.msra.mxu0 %v148
    %637 = vmatprep.subr.mxu0 0.0
    %638 = vmatpush1.msra.mxu0 %v149
    %639 = vmatprep.subr.mxu0 0.0
    %640 = vmatpush1.msra.mxu0 %v150
    %641 = vmatprep.subr.mxu0 0.0
    %642 = vmatpush1.msra.mxu0 %v151
    %643 = vmatprep.subr.mxu0 0.0
    %644 = vmatpush1.msra.mxu0 0.0
    %645 = vmatprep.subr.mxu0 0.0
    %646 = vmatpush1.msra.mxu0 0.0
    %647 = vmatprep.subr.mxu0 0.0
    %648 = vmatpush1.msra.mxu0 0.0
    %649 = vmatprep.subr.mxu0 0.0
    %650 = vmatpush1.msra.mxu0 0.0
    %651 = vmatprep.subr.mxu0 0.0
    %652 = vmatpush1.msra.mxu0 0.0
    %653 = vmatprep.subr.mxu0 0.0
    %654 = vmatpush1.msra.mxu0 0.0
    %655 = vmatprep.subr.mxu0 0.0
    %656 = vmatpush1.msra.mxu0 0.0
    %657 = vmatprep.subr.mxu0 0.0
    %658 = vmatpush1.msra.mxu0 0.0
    %659 = vmatprep.subr.mxu0 0.0
    %660 = vmatpush1.msra.mxu0 0.0
    %661 = vmatprep.subr.mxu0 0.0
    %662 = vmatpush1.msra.mxu0 0.0
    %663 = vmatprep.subr.mxu0 0.0
    %664 = vmatpush1.msra.mxu0 0.0
    %665 = vmatprep.subr.mxu0 0.0
    %666 = vmatpush1.msra.mxu0 0.0
    %667 = vmatprep.subr.mxu0 0.0
    %668 = vmatpush1.msra.mxu0 0.0
    %669 = vmatprep.subr.mxu0 0.0
    %670 = vmatpush1.msra.mxu0 0.0
    %671 = vmatprep.subr.mxu0 0.0
    %672 = vmatpush1.msra.mxu0 0.0
    %673 = vmatprep.subr.mxu0 0.0
    %674 = vmatpush1.msra.mxu0 0.0
    %675 = vmatprep.subr.mxu0 0.0
    %676 = vmatpush1.msra.mxu0 0.0
    %677 = vmatprep.subr.mxu0 0.0
    %678 = vmatpush1.msra.mxu0 0.0
    %679 = vmatprep.subr.mxu0 0.0
    %680 = vmatpush1.msra.mxu0 0.0
    %681 = vmatprep.subr.mxu0 0.0
    %682 = vmatpush1.msra.mxu0 0.0
    %683 = vmatprep.subr.mxu0 0.0
    %684 = vmatpush1.msra.mxu0 0.0
    %685 = vmatprep.subr.mxu0 0.0
    %686 = vmatpush1.msra.mxu0 0.0
    %687 = vmatprep.subr.mxu0 0.0
    %688 = vmatpush1.msra.mxu0 0.0
    %689 = vmatprep.subr.mxu0 0.0
    %690 = vmatpush1.msra.mxu0 0.0
    %691 = vmatprep.subr.mxu0 0.0
    %692 = vmatpush1.msra.mxu0 0.0
    %693 = vmatprep.subr.mxu0 0.0
    %694 = vmatpush1.msra.mxu0 0.0
    %695 = vmatprep.subr.mxu0 0.0
    %696 = vmatpush1.msra.mxu0 0.0
    %697 = vmatprep.mubr.f32.mxu0 0.0
    %698 = vmatmul.mubr.f32.gmra.mrb[0].mxu0 %v274
    %v699 = vpop.f32.mrb[0].mxu0
    %v700 = vadd.f32 %v152, %v699
    %v701 = vpop.f32.mrb[0].mxu0
    %702 = vmatprep.mubr.f32.mxu0 0.0
    %703 = vmatmul.mubr.f32.gmra.mrb[0].mxu0 %v277
    %v704 = vpop.f32.mrb[0].mxu0
    %v705 = vadd.f32 %v153, %v704
    %v706 = vpop.f32.mrb[0].mxu0
    %707 = vmatprep.mubr.f32.mxu0 0.0
    %708 = vmatmul.mubr.f32.gmra.mrb[0].mxu0 %v280
    %v709 = vpop.f32.mrb[0].mxu0
    %v710 = vadd.f32 %v154, %v709
    %v711 = vpop.f32.mrb[0].mxu0
    %712 = vmatprep.mubr.f32.mxu0 0.0
    %713 = vmatmul.mubr.f32.gmra.mrb[0].mxu0 %v283
    %v714 = vpop.f32.mrb[0].mxu0
    %v715 = vadd.f32 %v155, %v714
    %v716 = vpop.f32.mrb[0].mxu0
    %717 = vmatprep.mubr.f32.mxu0 0.0
    %718 = vmatmul.mubr.f32.gmra.mrb[0].mxu0 %v286
    %v719 = vpop.f32.mrb[0].mxu0
    %v720 = vadd.f32 %v156, %v719
    %v721 = vpop.f32.mrb[0].mxu0
    %722 = vmatprep.mubr.f32.mxu0 0.0
    %723 = vmatmul.mubr.f32.gmra.mrb[0].mxu0 %v289
    %v724 = vpop.f32.mrb[0].mxu0
    %v725 = vadd.f32 %v157, %v724
    %v726 = vpop.f32.mrb[0].mxu0
    %727 = vmatprep.mubr.f32.mxu0 0.0
    %728 = vmatmul.mubr.f32.gmra.mrb[0].mxu0 %v292
    %v729 = vpop.f32.mrb[0].mxu0
    %v730 = vadd.f32 %v158, %v729
    %v731 = vpop.f32.mrb[0].mxu0
    %732 = vmatprep.mubr.f32.mxu0 0.0
    %733 = vmatmul.mubr.f32.gmra.mrb[0].mxu0 %v295
    %v734 = vpop.f32.mrb[0].mxu0
    %v735 = vadd.f32 %v159, %v734
    %v736 = vpop.f32.mrb[0].mxu0
    %737 = vmatprep.mubr.f32.mxu0 0.0
    %738 = vmatmul.mubr.f32.gmra.mrb[0].mxu0 %v298
    %v739 = vpop.f32.mrb[0].mxu0
    %v740 = vadd.f32 %v160, %v739
    %v741 = vpop.f32.mrb[0].mxu0
    %742 = vmatprep.mubr.f32.mxu0 0.0
    %743 = vmatmul.mubr.f32.gmra.mrb[0].mxu0 %v301
    %v744 = vpop.f32.mrb[0].mxu0
    %v745 = vadd.f32 %v161, %v744
    %v746 = vpop.f32.mrb[0].mxu0
    %747 = vmatprep.mubr.f32.mxu0 0.0
    %748 = vmatmul.mubr.f32.gmra.mrb[0].mxu0 %v304
    %v749 = vpop.f32.mrb[0].mxu0
    %v750 = vadd.f32 %v162, %v749
    %v751 = vpop.f32.mrb[0].mxu0
    %752 = vmatprep.mubr.f32.mxu0 0.0
    %753 = vmatmul.mubr.f32.gmra.mrb[0].mxu0 %v307
    %v754 = vpop.f32.mrb[0].mxu0
    %v755 = vadd.f32 %v163, %v754
    %v756 = vpop.f32.mrb[0].mxu0
    %757 = vmatprep.mubr.f32.mxu0 0.0
    %758 = vmatmul.mubr.f32.gmra.mrb[0].mxu0 %v310
    %v759 = vpop.f32.mrb[0].mxu0
    %v760 = vadd.f32 %v164, %v759
    %v761 = vpop.f32.mrb[0].mxu0
    %762 = vmatprep.mubr.f32.mxu0 0.0
    %763 = vmatmul.mubr.f32.gmra.mrb[0].mxu0 %v313
    %v764 = vpop.f32.mrb[0].mxu0
    %v765 = vadd.f32 %v165, %v764
    %v766 = vpop.f32.mrb[0].mxu0
    %767 = vmatprep.mubr.f32.mxu0 0.0
    %768 = vmatmul.mubr.f32.gmra.mrb[0].mxu0 %v316
    %v769 = vpop.f32.mrb[0].mxu0
    %v770 = vadd.f32 %v166, %v769
    %v771 = vpop.f32.mrb[0].mxu0
    %772 = vmatprep.mubr.f32.mxu0 0.0
    %773 = vmatmul.mubr.f32.gmra.mrb[0].mxu0 %v319
    %v774 = vpop.f32.mrb[0].mxu0
    %v775 = vadd.f32 %v167, %v774
    %v776 = vpop.f32.mrb[0].mxu0
    %777 = vmatprep.mubr.f32.mxu0 0.0
    %778 = vmatmul.mubr.f32.gmra.mrb[0].mxu0 %v322
    %v779 = vpop.f32.mrb[0].mxu0
    %v780 = vadd.f32 %v168, %v779
    %v781 = vpop.f32.mrb[0].mxu0
    %782 = vmatprep.mubr.f32.mxu0 0.0
    %783 = vmatmul.mubr.f32.gmra.mrb[0].mxu0 %v325
    %v784 = vpop.f32.mrb[0].mxu0
    %v785 = vadd.f32 %v169, %v784
    %v786 = vpop.f32.mrb[0].mxu0
    %787 = vmatprep.mubr.f32.mxu0 0.0
    %788 = vmatmul.mubr.f32.gmra.mrb[0].mxu0 %v328
    %v789 = vpop.f32.mrb[0].mxu0
    %v790 = vadd.f32 %v170, %v789
    %v791 = vpop.f32.mrb[0].mxu0
    %792 = vmatprep.mubr.f32.mxu0 0.0
    %793 = vmatmul.mubr.f32.gmra.mrb[0].mxu0 %v331
    %v794 = vpop.f32.mrb[0].mxu0
    %v795 = vadd.f32 %v171, %v794
    %v796 = vpop.f32.mrb[0].mxu0
    %797 = vmatprep.mubr.f32.mxu0 0.0
    %798 = vmatmul.mubr.f32.gmra.mrb[0].mxu0 %v334
    %v799 = vpop.f32.mrb[0].mxu0
    %v800 = vadd.f32 %v172, %v799
    %v801 = vpop.f32.mrb[0].mxu0
    %802 = vmatprep.mubr.f32.mxu0 0.0
    %803 = vmatmul.mubr.f32.gmra.mrb[0].mxu0 %v337
    %v804 = vpop.f32.mrb[0].mxu0
    %v805 = vadd.f32 %v173, %v804
    %v806 = vpop.f32.mrb[0].mxu0
    %807 = vmatprep.mubr.f32.mxu0 0.0
    %808 = vmatmul.mubr.f32.gmra.mrb[0].mxu0 %v340
    %v809 = vpop.f32.mrb[0].mxu0
    %v810 = vadd.f32 %v174, %v809
    %v811 = vpop.f32.mrb[0].mxu0
    %812 = vmatprep.mubr.f32.mxu0 0.0
    %813 = vmatmul.mubr.f32.gmra.mrb[0].mxu0 %v343
    %v814 = vpop.f32.mrb[0].mxu0
    %v815 = vadd.f32 %v175, %v814
    %v816 = vpop.f32.mrb[0].mxu0
    %817 = vmatprep.mubr.f32.mxu0 0.0
    %818 = vmatmul.mubr.f32.gmra.mrb[0].mxu0 %v346
    %v819 = vpop.f32.mrb[0].mxu0
    %v820 = vadd.f32 %v176, %v819
    %v821 = vpop.f32.mrb[0].mxu0
    %822 = vmatprep.mubr.f32.mxu0 0.0
    %823 = vmatmul.mubr.f32.gmra.mrb[0].mxu0 %v349
    %v824 = vpop.f32.mrb[0].mxu0
    %v825 = vadd.f32 %v177, %v824
    %v826 = vpop.f32.mrb[0].mxu0
    %827 = vmatprep.mubr.f32.mxu0 0.0
    %828 = vmatmul.mubr.f32.gmra.mrb[0].mxu0 %v352
    %v829 = vpop.f32.mrb[0].mxu0
    %v830 = vadd.f32 %v178, %v829
    %v831 = vpop.f32.mrb[0].mxu0
    %832 = vmatprep.mubr.f32.mxu0 0.0
    %833 = vmatmul.mubr.f32.gmra.mrb[0].mxu0 %v355
    %v834 = vpop.f32.mrb[0].mxu0
    %v835 = vadd.f32 %v179, %v834
    %v836 = vpop.f32.mrb[0].mxu0
    %837 = vmatprep.mubr.f32.mxu0 0.0
    %838 = vmatmul.mubr.f32.gmra.mrb[0].mxu0 %v358
    %v839 = vpop.f32.mrb[0].mxu0
    %v840 = vadd.f32 %v180, %v839
    %v841 = vpop.f32.mrb[0].mxu0
    %842 = vmatprep.mubr.f32.mxu0 0.0
    %843 = vmatmul.mubr.f32.gmra.mrb[0].mxu0 %v361
    %v844 = vpop.f32.mrb[0].mxu0
    %v845 = vadd.f32 %v181, %v844
    %v846 = vpop.f32.mrb[0].mxu0
    %847 = vmatprep.mubr.f32.mxu0 0.0
    %848 = vmatmul.mubr.f32.gmra.mrb[0].mxu0 %v364
    %v849 = vpop.f32.mrb[0].mxu0
    %v850 = vadd.f32 %v182, %v849
    %v851 = vpop.f32.mrb[0].mxu0
    %852 = vmatprep.mubr.f32.mxu0 0.0
    %853 = vmatmul.mubr.f32.gmra.mrb[0].mxu0 %v367
    %v854 = vpop.f32.mrb[0].mxu0
    %v855 = vadd.f32 %v183, %v854
    %v856 = vpop.f32.mrb[0].mxu0
    %857 = vmatprep.mubr.f32.mxu0 0.0
    %858 = vmatmul.mubr.f32.gmra.mrb[0].mxu0 %v370
    %v859 = vpop.f32.mrb[0].mxu0
    %v860 = vadd.f32 %v184, %v859
    %v861 = vpop.f32.mrb[0].mxu0
    %862 = vmatprep.mubr.f32.mxu0 0.0
    %863 = vmatmul.mubr.f32.gmra.mrb[0].mxu0 %v373
    %v864 = vpop.f32.mrb[0].mxu0
    %v865 = vadd.f32 %v185, %v864
    %v866 = vpop.f32.mrb[0].mxu0
    %867 = vmatprep.mubr.f32.mxu0 0.0
    %868 = vmatmul.mubr.f32.gmra.mrb[0].mxu0 %v376
    %v869 = vpop.f32.mrb[0].mxu0
    %v870 = vadd.f32 %v186, %v869
    %v871 = vpop.f32.mrb[0].mxu0
    %872 = vmatprep.mubr.f32.mxu0 0.0
    %873 = vmatmul.mubr.f32.gmra.mrb[0].mxu0 %v379
    %v874 = vpop.f32.mrb[0].mxu0
    %v875 = vadd.f32 %v187, %v874
    %v876 = vpop.f32.mrb[0].mxu0
    %877 = vmatprep.mubr.f32.mxu0 0.0
    %878 = vmatmul.mubr.f32.gmra.mrb[0].mxu0 %v382
    %v879 = vpop.f32.mrb[0].mxu0
    %v880 = vadd.f32 %v188, %v879
    %v881 = vpop.f32.mrb[0].mxu0
    %882 = vmatprep.mubr.f32.mxu0 0.0
    %883 = vmatmul.mubr.f32.gmra.mrb[0].mxu0 %v385
    %v884 = vpop.f32.mrb[0].mxu0
    %v885 = vadd.f32 %v189, %v884
    %v886 = vpop.f32.mrb[0].mxu0
    %887 = vmatprep.mubr.f32.mxu0 0.0
    %888 = vmatmul.mubr.f32.gmra.mrb[0].mxu0 %v388
    %v889 = vpop.f32.mrb[0].mxu0
    %v890 = vadd.f32 %v190, %v889
    %v891 = vpop.f32.mrb[0].mxu0
    %892 = vmatprep.mubr.f32.mxu0 0.0
    %893 = vmatmul.mubr.f32.gmra.mrb[0].mxu0 %v391
    %v894 = vpop.f32.mrb[0].mxu0
    %v895 = vadd.f32 %v191, %v894
    %v896 = vpop.f32.mrb[0].mxu0
    %897 = vmatprep.mubr.f32.mxu0 0.0
    %898 = vmatmul.mubr.f32.gmra.mrb[0].mxu0 %v394
    %v899 = vpop.f32.mrb[0].mxu0
    %v900 = vadd.f32 %v192, %v899
    %v901 = vpop.f32.mrb[0].mxu0
    %902 = vmatprep.mubr.f32.mxu0 0.0
    %903 = vmatmul.mubr.f32.gmra.mrb[0].mxu0 %v397
    %v904 = vpop.f32.mrb[0].mxu0
    %v905 = vadd.f32 %v193, %v904
    %v906 = vpop.f32.mrb[0].mxu0
    %907 = vmatprep.mubr.f32.mxu0 0.0
    %908 = vmatmul.mubr.f32.gmra.mrb[0].mxu0 %v400
    %v909 = vpop.f32.mrb[0].mxu0
    %v910 = vadd.f32 %v194, %v909
    %v911 = vpop.f32.mrb[0].mxu0
    %912 = vmatprep.mubr.f32.mxu0 0.0
    %913 = vmatmul.mubr.f32.gmra.mrb[0].mxu0 %v403
    %v914 = vpop.f32.mrb[0].mxu0
    %v915 = vadd.f32 %v195, %v914
    %v916 = vpop.f32.mrb[0].mxu0
    %917 = vmatprep.mubr.f32.mxu0 0.0
    %918 = vmatmul.mubr.f32.gmra.mrb[0].mxu0 %v406
    %v919 = vpop.f32.mrb[0].mxu0
    %v920 = vadd.f32 %v196, %v919
    %v921 = vpop.f32.mrb[0].mxu0
    %922 = vmatprep.mubr.f32.mxu0 0.0
    %923 = vmatmul.mubr.f32.gmra.mrb[0].mxu0 %v409
    %v924 = vpop.f32.mrb[0].mxu0
    %v925 = vadd.f32 %v197, %v924
    %v926 = vpop.f32.mrb[0].mxu0
    %927 = vmatprep.mubr.f32.mxu0 0.0
    %928 = vmatmul.mubr.f32.gmra.mrb[0].mxu0 %v412
    %v929 = vpop.f32.mrb[0].mxu0
    %v930 = vadd.f32 %v198, %v929
    %v931 = vpop.f32.mrb[0].mxu0
    %932 = vmatprep.mubr.f32.mxu0 0.0
    %933 = vmatmul.mubr.f32.gmra.mrb[0].mxu0 %v415
    %v934 = vpop.f32.mrb[0].mxu0
    %v935 = vadd.f32 %v199, %v934
    %v936 = vpop.f32.mrb[0].mxu0
    %937 = vmatprep.mubr.f32.mxu0 0.0
    %938 = vmatmul.mubr.f32.gmra.mrb[0].mxu0 %v418
    %v939 = vpop.f32.mrb[0].mxu0
    %v940 = vadd.f32 %v200, %v939
    %v941 = vpop.f32.mrb[0].mxu0
    %942 = vmatprep.mubr.f32.mxu0 0.0
    %943 = vmatmul.mubr.f32.gmra.mrb[0].mxu0 %v421
    %v944 = vpop.f32.mrb[0].mxu0
    %v945 = vadd.f32 %v201, %v944
    %v946 = vpop.f32.mrb[0].mxu0
    %947 = vmatprep.mubr.f32.mxu0 0.0
    %948 = vmatmul.mubr.f32.gmra.mrb[0].mxu0 %v424
    %v949 = vpop.f32.mrb[0].mxu0
    %v950 = vadd.f32 %v202, %v949
    %v951 = vpop.f32.mrb[0].mxu0
    %952 = vmatprep.mubr.f32.mxu0 0.0
    %953 = vmatmul.mubr.f32.gmra.mrb[0].mxu0 %v427
    %v954 = vpop.f32.mrb[0].mxu0
    %v955 = vadd.f32 %v203, %v954
    %v956 = vpop.f32.mrb[0].mxu0
    %957 = vmatprep.mubr.f32.mxu0 0.0
    %958 = vmatmul.mubr.f32.gmra.mrb[0].mxu0 %v430
    %v959 = vpop.f32.mrb[0].mxu0
    %v960 = vadd.f32 %v204, %v959
    %v961 = vpop.f32.mrb[0].mxu0
    %962 = vmatprep.mubr.f32.mxu0 0.0
    %963 = vmatmul.mubr.f32.gmra.mrb[0].mxu0 %v433
    %v964 = vpop.f32.mrb[0].mxu0
    %v965 = vadd.f32 %v205, %v964
    %v966 = vpop.f32.mrb[0].mxu0
    %967 = vmatprep.mubr.f32.mxu0 0.0
    %968 = vmatmul.mubr.f32.gmra.mrb[0].mxu0 %v436
    %v969 = vpop.f32.mrb[0].mxu0
    %v970 = vadd.f32 %v206, %v969
    %v971 = vpop.f32.mrb[0].mxu0
    %972 = vmatprep.mubr.f32.mxu0 0.0
    %973 = vmatmul.mubr.f32.gmra.mrb[0].mxu0 %v439
    %v974 = vpop.f32.mrb[0].mxu0
    %v975 = vadd.f32 %v207, %v974
    %v976 = vpop.f32.mrb[0].mxu0
    %977 = vmatprep.mubr.f32.mxu0 0.0
    %978 = vmatmul.mubr.f32.gmra.mrb[0].mxu0 %v442
    %v979 = vpop.f32.mrb[0].mxu0
    %v980 = vadd.f32 %v208, %v979
    %v981 = vpop.f32.mrb[0].mxu0
    %982 = vmatprep.mubr.f32.mxu0 0.0
    %983 = vmatmul.mubr.f32.gmra.mrb[0].mxu0 %v445
    %v984 = vpop.f32.mrb[0].mxu0
    %v985 = vadd.f32 %v209, %v984
    %v986 = vpop.f32.mrb[0].mxu0
    %987 = vmatprep.mubr.f32.mxu0 0.0
    %988 = vmatmul.mubr.f32.gmra.mrb[0].mxu0 %v448
    %v989 = vpop.f32.mrb[0].mxu0
    %v990 = vadd.f32 %v210, %v989
    %v991 = vpop.f32.mrb[0].mxu0
    %992 = vmatprep.mubr.f32.mxu0 0.0
    %993 = vmatmul.mubr.f32.gmra.mrb[0].mxu0 %v451
    %v994 = vpop.f32.mrb[0].mxu0
    %v995 = vadd.f32 %v211, %v994
    %v996 = vpop.f32.mrb[0].mxu0
    %997 = vmatprep.mubr.f32.mxu0 0.0
    %998 = vmatmul.mubr.f32.gmra.mrb[0].mxu0 %v454
    %v999 = vpop.f32.mrb[0].mxu0
    %v1000 = vadd.f32 %v212, %v999
    %v1001 = vpop.f32.mrb[0].mxu0
    %1002 = vmatprep.mubr.f32.mxu0 0.0
    %1003 = vmatmul.mubr.f32.gmra.mrb[0].mxu0 %v457
    %v1004 = vpop.f32.mrb[0].mxu0
    %v1005 = vadd.f32 %v213, %v1004
    %v1006 = vpop.f32.mrb[0].mxu0
    %1007 = vmatprep.mubr.f32.mxu0 0.0
    %1008 = vmatmul.mubr.f32.gmra.mrb[0].mxu0 %v460
    %v1009 = vpop.f32.mrb[0].mxu0
    %v1010 = vadd.f32 %v214, %v1009
    %v1011 = vpop.f32.mrb[0].mxu0
    %1012 = vmatprep.mubr.f32.mxu0 0.0
    %1013 = vmatmul.mubr.f32.gmra.mrb[0].mxu0 %v463
    %v1014 = vpop.f32.mrb[0].mxu0
    %v1015 = vadd.f32 %v215, %v1014
    %v1016 = vpop.f32.mrb[0].mxu0
    %1017 = vmatprep.mubr.f32.mxu0 0.0
    %1018 = vmatmul.mubr.f32.gmra.mrb[0].mxu0 %v466
    %v1019 = vpop.f32.mrb[0].mxu0
    %v1020 = vadd.f32 %v216, %v1019
    %v1021 = vpop.f32.mrb[0].mxu0
    %1022 = vmatprep.mubr.f32.mxu0 0.0
    %1023 = vmatmul.mubr.f32.gmra.mrb[0].mxu0 %v469
    %v1024 = vpop.f32.mrb[0].mxu0
    %v1025 = vadd.f32 %v217, %v1024
    %v1026 = vpop.f32.mrb[0].mxu0
    %1027 = vmatprep.mubr.f32.mxu0 0.0
    %1028 = vmatmul.mubr.f32.gmra.mrb[0].mxu0 %v472
    %v1029 = vpop.f32.mrb[0].mxu0
    %v1030 = vadd.f32 %v218, %v1029
    %v1031 = vpop.f32.mrb[0].mxu0
    %1032 = vmatprep.mubr.f32.mxu0 0.0
    %1033 = vmatmul.mubr.f32.gmra.mrb[0].mxu0 %v475
    %v1034 = vpop.f32.mrb[0].mxu0
    %v1035 = vadd.f32 %v219, %v1034
    %v1036 = vpop.f32.mrb[0].mxu0
    %1037 = vmatprep.mubr.f32.mxu0 0.0
    %1038 = vmatmul.mubr.f32.gmra.mrb[0].mxu0 %v478
    %v1039 = vpop.f32.mrb[0].mxu0
    %v1040 = vadd.f32 %v220, %v1039
    %v1041 = vpop.f32.mrb[0].mxu0
    %1042 = vmatprep.mubr.f32.mxu0 0.0
    %1043 = vmatmul.mubr.f32.gmra.mrb[0].mxu0 %v481
    %v1044 = vpop.f32.mrb[0].mxu0
    %v1045 = vadd.f32 %v221, %v1044
    %v1046 = vpop.f32.mrb[0].mxu0
    %1047 = vmatprep.mubr.f32.mxu0 0.0
    %1048 = vmatmul.mubr.f32.gmra.mrb[0].mxu0 %v484
    %v1049 = vpop.f32.mrb[0].mxu0
    %v1050 = vadd.f32 %v222, %v1049
    %v1051 = vpop.f32.mrb[0].mxu0
    %1052 = vmatprep.mubr.f32.mxu0 0.0
    %1053 = vmatmul.mubr.f32.gmra.mrb[0].mxu0 %v487
    %v1054 = vpop.f32.mrb[0].mxu0
    %v1055 = vadd.f32 %v223, %v1054
    %v1056 = vpop.f32.mrb[0].mxu0
    %1057 = vmatprep.mubr.f32.mxu0 0.0
    %1058 = vmatmul.mubr.f32.gmra.mrb[0].mxu0 %v490
    %v1059 = vpop.f32.mrb[0].mxu0
    %v1060 = vadd.f32 %v224, %v1059
    %v1061 = vpop.f32.mrb[0].mxu0
    %1062 = vmatprep.mubr.f32.mxu0 0.0
    %1063 = vmatmul.mubr.f32.gmra.mrb[0].mxu0 %v493
    %v1064 = vpop.f32.mrb[0].mxu0
    %v1065 = vadd.f32 %v225, %v1064
    %v1066 = vpop.f32.mrb[0].mxu0
    %1067 = vmatprep.mubr.f32.mxu0 0.0
    %1068 = vmatmul.mubr.f32.gmra.mrb[0].mxu0 %v496
    %v1069 = vpop.f32.mrb[0].mxu0
    %v1070 = vadd.f32 %v226, %v1069
    %v1071 = vpop.f32.mrb[0].mxu0
    %1072 = vmatprep.mubr.f32.mxu0 0.0
    %1073 = vmatmul.mubr.f32.gmra.mrb[0].mxu0 %v499
    %v1074 = vpop.f32.mrb[0].mxu0
    %v1075 = vadd.f32 %v227, %v1074
    %v1076 = vpop.f32.mrb[0].mxu0
    %1077 = vmatprep.mubr.f32.mxu0 0.0
    %1078 = vmatmul.mubr.f32.gmra.mrb[0].mxu0 %v502
    %v1079 = vpop.f32.mrb[0].mxu0
    %v1080 = vadd.f32 %v228, %v1079
    %v1081 = vpop.f32.mrb[0].mxu0
    %1082 = vmatprep.mubr.f32.mxu0 0.0
    %1083 = vmatmul.mubr.f32.gmra.mrb[0].mxu0 %v505
    %v1084 = vpop.f32.mrb[0].mxu0
    %v1085 = vadd.f32 %v229, %v1084
    %v1086 = vpop.f32.mrb[0].mxu0
    %1087 = vmatprep.mubr.f32.mxu0 0.0
    %1088 = vmatmul.mubr.f32.gmra.mrb[0].mxu0 %v508
    %v1089 = vpop.f32.mrb[0].mxu0
    %v1090 = vadd.f32 %v230, %v1089
    %v1091 = vpop.f32.mrb[0].mxu0
    %1092 = vmatprep.mubr.f32.mxu0 0.0
    %1093 = vmatmul.mubr.f32.gmra.mrb[0].mxu0 %v511
    %v1094 = vpop.f32.mrb[0].mxu0
    %v1095 = vadd.f32 %v231, %v1094
    %v1096 = vpop.f32.mrb[0].mxu0
    %1097 = vmatprep.mubr.f32.mxu0 0.0
    %1098 = vmatmul.mubr.f32.gmra.mrb[0].mxu0 %v514
    %v1099 = vpop.f32.mrb[0].mxu0
    %v1100 = vadd.f32 %v232, %v1099
    %v1101 = vpop.f32.mrb[0].mxu0
    %1102 = vmatprep.mubr.f32.mxu0 0.0
    %1103 = vmatmul.mubr.f32.gmra.mrb[0].mxu0 %v517
    %v1104 = vpop.f32.mrb[0].mxu0
    %v1105 = vadd.f32 %v233, %v1104
    %v1106 = vpop.f32.mrb[0].mxu0
    %1107 = vmatprep.mubr.f32.mxu0 0.0
    %1108 = vmatmul.mubr.f32.gmra.mrb[0].mxu0 %v520
    %v1109 = vpop.f32.mrb[0].mxu0
    %v1110 = vadd.f32 %v234, %v1109
    %v1111 = vpop.f32.mrb[0].mxu0
    %1112 = vmatprep.mubr.f32.mxu0 0.0
    %1113 = vmatmul.mubr.f32.gmra.mrb[0].mxu0 %v523
    %v1114 = vpop.f32.mrb[0].mxu0
    %v1115 = vadd.f32 %v235, %v1114
    %v1116 = vpop.f32.mrb[0].mxu0
    %1117 = vmatprep.mubr.f32.mxu0 0.0
    %1118 = vmatmul.mubr.f32.gmra.mrb[0].mxu0 %v526
    %v1119 = vpop.f32.mrb[0].mxu0
    %v1120 = vadd.f32 %v236, %v1119
    %v1121 = vpop.f32.mrb[0].mxu0
    %1122 = vmatprep.mubr.f32.mxu0 0.0
    %1123 = vmatmul.mubr.f32.gmra.mrb[0].mxu0 %v529
    %v1124 = vpop.f32.mrb[0].mxu0
    %v1125 = vadd.f32 %v237, %v1124
    %v1126 = vpop.f32.mrb[0].mxu0
    %1127 = vmatprep.mubr.f32.mxu0 0.0
    %1128 = vmatmul.mubr.f32.gmra.mrb[0].mxu0 %v532
    %v1129 = vpop.f32.mrb[0].mxu0
    %v1130 = vadd.f32 %v238, %v1129
    %v1131 = vpop.f32.mrb[0].mxu0
    %1132 = vmatprep.mubr.f32.mxu0 0.0
    %1133 = vmatmul.mubr.f32.gmra.mrb[0].mxu0 %v535
    %v1134 = vpop.f32.mrb[0].mxu0
    %v1135 = vadd.f32 %v239, %v1134
    %v1136 = vpop.f32.mrb[0].mxu0
    %1137 = vmatprep.mubr.f32.mxu0 0.0
    %1138 = vmatmul.mubr.f32.gmra.mrb[0].mxu0 %v538
    %v1139 = vpop.f32.mrb[0].mxu0
    %v1140 = vadd.f32 %v240, %v1139
    %v1141 = vpop.f32.mrb[0].mxu0
    %1142 = vmatprep.mubr.f32.mxu0 0.0
    %1143 = vmatmul.mubr.f32.gmra.mrb[0].mxu0 %v541
    %v1144 = vpop.f32.mrb[0].mxu0
    %v1145 = vadd.f32 %v241, %v1144
    %v1146 = vpop.f32.mrb[0].mxu0
    %1147 = vmatprep.mubr.f32.mxu0 0.0
    %1148 = vmatmul.mubr.f32.gmra.mrb[0].mxu0 %v544
    %v1149 = vpop.f32.mrb[0].mxu0
    %v1150 = vadd.f32 %v242, %v1149
    %v1151 = vpop.f32.mrb[0].mxu0
    %1152 = vmatprep.mubr.f32.mxu0 0.0
    %1153 = vmatmul.mubr.f32.gmra.mrb[0].mxu0 %v547
    %v1154 = vpop.f32.mrb[0].mxu0
    %v1155 = vadd.f32 %v243, %v1154
    %v1156 = vpop.f32.mrb[0].mxu0
    %1157 = vmatprep.mubr.f32.mxu0 0.0
    %1158 = vmatmul.mubr.f32.gmra.mrb[0].mxu0 %v550
    %v1159 = vpop.f32.mrb[0].mxu0
    %v1160 = vadd.f32 %v244, %v1159
    %v1161 = vpop.f32.mrb[0].mxu0
    %1162 = vmatprep.mubr.f32.mxu0 0.0
    %1163 = vmatmul.mubr.f32.gmra.mrb[0].mxu0 %v553
    %v1164 = vpop.f32.mrb[0].mxu0
    %v1165 = vadd.f32 %v245, %v1164
    %v1166 = vpop.f32.mrb[0].mxu0
    %1167 = vmatprep.mubr.f32.mxu0 0.0
    %1168 = vmatmul.mubr.f32.gmra.mrb[0].mxu0 %v556
    %v1169 = vpop.f32.mrb[0].mxu0
    %v1170 = vadd.f32 %v246, %v1169
    %v1171 = vpop.f32.mrb[0].mxu0
    %1172 = vmatprep.mubr.f32.mxu0 0.0
    %1173 = vmatmul.mubr.f32.gmra.mrb[0].mxu0 %v559
    %v1174 = vpop.f32.mrb[0].mxu0
    %v1175 = vadd.f32 %v247, %v1174
    %v1176 = vpop.f32.mrb[0].mxu0
    %1177 = vmatprep.mubr.f32.mxu0 0.0
    %1178 = vmatmul.mubr.f32.gmra.mrb[0].mxu0 %v562
    %v1179 = vpop.f32.mrb[0].mxu0
    %v1180 = vadd.f32 %v248, %v1179
    %v1181 = vpop.f32.mrb[0].mxu0
    %1182 = vmatprep.mubr.f32.mxu0 0.0
    %1183 = vmatmul.mubr.f32.gmra.mrb[0].mxu0 %v565
    %v1184 = vpop.f32.mrb[0].mxu0
    %v1185 = vadd.f32 %v249, %v1184
    %v1186 = vpop.f32.mrb[0].mxu0
    %1187 = vmatprep.mubr.f32.mxu0 0.0
    %1188 = vmatmul.mubr.f32.gmra.mrb[0].mxu0 %v568
    %v1189 = vpop.f32.mrb[0].mxu0
    %v1190 = vadd.f32 %v250, %v1189
    %v1191 = vpop.f32.mrb[0].mxu0
    %1192 = vmatprep.mubr.f32.mxu0 0.0
    %1193 = vmatmul.mubr.f32.gmra.mrb[0].mxu0 %v571
    %v1194 = vpop.f32.mrb[0].mxu0
    %v1195 = vadd.f32 %v251, %v1194
    %v1196 = vpop.f32.mrb[0].mxu0
    %1197 = vmatprep.mubr.f32.mxu0 0.0
    %1198 = vmatmul.mubr.f32.gmra.mrb[0].mxu0 %v574
    %v1199 = vpop.f32.mrb[0].mxu0
    %v1200 = vadd.f32 %v252, %v1199
    %v1201 = vpop.f32.mrb[0].mxu0
    %1202 = vmatprep.mubr.f32.mxu0 0.0
    %1203 = vmatmul.mubr.f32.gmra.mrb[0].mxu0 %v577
    %v1204 = vpop.f32.mrb[0].mxu0
    %v1205 = vadd.f32 %v253, %v1204
    %v1206 = vpop.f32.mrb[0].mxu0
    %1207 = vmatprep.mubr.f32.mxu0 0.0
    %1208 = vmatmul.mubr.f32.gmra.mrb[0].mxu0 %v580
    %v1209 = vpop.f32.mrb[0].mxu0
    %v1210 = vadd.f32 %v254, %v1209
    %v1211 = vpop.f32.mrb[0].mxu0
    %1212 = vmatprep.mubr.f32.mxu0 0.0
    %1213 = vmatmul.mubr.f32.gmra.mrb[0].mxu0 %v583
    %v1214 = vpop.f32.mrb[0].mxu0
    %v1215 = vadd.f32 %v255, %v1214
    %v1216 = vpop.f32.mrb[0].mxu0
    %1217 = vmatprep.mubr.f32.mxu0 0.0
    %1218 = vmatmul.mubr.f32.gmra.mrb[0].mxu0 %v586
    %v1219 = vpop.f32.mrb[0].mxu0
    %v1220 = vadd.f32 %v256, %v1219
    %v1221 = vpop.f32.mrb[0].mxu0
    %1222 = vmatprep.mubr.f32.mxu0 0.0
    %1223 = vmatmul.mubr.f32.gmra.mrb[0].mxu0 %v589
    %v1224 = vpop.f32.mrb[0].mxu0
    %v1225 = vadd.f32 %v257, %v1224
    %v1226 = vpop.f32.mrb[0].mxu0
    %1227 = vmatprep.mubr.f32.mxu0 0.0
    %1228 = vmatmul.mubr.f32.gmra.mrb[0].mxu0 %v592
    %v1229 = vpop.f32.mrb[0].mxu0
    %v1230 = vadd.f32 %v258, %v1229
    %v1231 = vpop.f32.mrb[0].mxu0
    %1232 = vmatprep.mubr.f32.mxu0 0.0
    %1233 = vmatmul.mubr.f32.gmra.mrb[0].mxu0 %v595
    %v1234 = vpop.f32.mrb[0].mxu0
    %v1235 = vadd.f32 %v259, %v1234
    %v1236 = vpop.f32.mrb[0].mxu0
    %1237 = vmatprep.mubr.f32.mxu0 0.0
    %1238 = vmatmul.mubr.f32.gmra.mrb[0].mxu0 %v598
    %v1239 = vpop.f32.mrb[0].mxu0
    %v1240 = vadd.f32 %v260, %v1239
    %v1241 = vpop.f32.mrb[0].mxu0
    %1242 = vmatprep.mubr.f32.mxu0 0.0
    %1243 = vmatmul.mubr.f32.gmra.mrb[0].mxu0 %v601
    %v1244 = vpop.f32.mrb[0].mxu0
    %v1245 = vadd.f32 %v261, %v1244
    %v1246 = vpop.f32.mrb[0].mxu0
    %1247 = vmatprep.mubr.f32.mxu0 0.0
    %1248 = vmatmul.mubr.f32.gmra.mrb[0].mxu0 %v604
    %v1249 = vpop.f32.mrb[0].mxu0
    %v1250 = vadd.f32 %v262, %v1249
    %v1251 = vpop.f32.mrb[0].mxu0
    %1252 = vmatprep.mubr.f32.mxu0 0.0
    %1253 = vmatmul.mubr.f32.gmra.mrb[0].mxu0 %v607
    %v1254 = vpop.f32.mrb[0].mxu0
    %v1255 = vadd.f32 %v263, %v1254
    %v1256 = vpop.f32.mrb[0].mxu0
    %1257 = vmatprep.mubr.f32.mxu0 0.0
    %1258 = vmatmul.mubr.f32.gmra.mrb[0].mxu0 %v610
    %v1259 = vpop.f32.mrb[0].mxu0
    %v1260 = vadd.f32 %v264, %v1259
    %v1261 = vpop.f32.mrb[0].mxu0
    %1262 = vmatprep.mubr.f32.mxu0 0.0
    %1263 = vmatmul.mubr.f32.gmra.mrb[0].mxu0 %v613
    %v1264 = vpop.f32.mrb[0].mxu0
    %v1265 = vadd.f32 %v265, %v1264
    %v1266 = vpop.f32.mrb[0].mxu0
    %1267 = vmatprep.mubr.f32.mxu0 0.0
    %1268 = vmatmul.mubr.f32.gmra.mrb[0].mxu0 %v616
    %v1269 = vpop.f32.mrb[0].mxu0
    %v1270 = vadd.f32 %v266, %v1269
    %v1271 = vpop.f32.mrb[0].mxu0
    %1272 = vmatprep.mubr.f32.mxu0 0.0
    %1273 = vmatmul.mubr.f32.gmra.mrb[0].mxu0 %v619
    %v1274 = vpop.f32.mrb[0].mxu0
    %v1275 = vadd.f32 %v267, %v1274
    %v1276 = vpop.f32.mrb[0].mxu0
    %1277 = vmatprep.mubr.f32.mxu0 0.0
    %1278 = vmatmul.mubr.f32.gmra.mrb[0].mxu0 %v622
    %v1279 = vpop.f32.mrb[0].mxu0
    %v1280 = vadd.f32 %v268, %v1279
    %v1281 = vpop.f32.mrb[0].mxu0
    %1282 = vmatprep.mubr.f32.mxu0 0.0
    %1283 = vmatmul.mubr.f32.gmra.mrb[0].mxu0 %v625
    %v1284 = vpop.f32.mrb[0].mxu0
    %v1285 = vadd.f32 %v269, %v1284
    %v1286 = vpop.f32.mrb[0].mxu0
    %1287 = vmatprep.mubr.f32.mxu0 0.0
    %1288 = vmatmul.mubr.f32.gmra.mrb[0].mxu0 %v628
    %v1289 = vpop.f32.mrb[0].mxu0
    %v1290 = vadd.f32 %v270, %v1289
    %v1291 = vpop.f32.mrb[0].mxu0
    %1292 = vmatprep.mubr.f32.mxu0 0.0
    %1293 = vmatmul.mubr.f32.gmra.mrb[0].mxu0 %v631
    %v1294 = vpop.f32.mrb[0].mxu0
    %v1295 = vadd.f32 %v271, %v1294
    %v1296 = vpop.f32.mrb[0].mxu0
    %1297 = vdwg.mxu0
    %v1298 = vxor.u32 %v700, 2147483648
    %v1299 = vxor.u32 %v705, 2147483648
    %v1300 = vxor.u32 %v710, 2147483648
    %v1301 = vxor.u32 %v715, 2147483648
    %v1302 = vxor.u32 %v720, 2147483648
    %v1303 = vxor.u32 %v725, 2147483648
    %v1304 = vxor.u32 %v730, 2147483648
    %v1305 = vxor.u32 %v735, 2147483648
    %v1306 = vxor.u32 %v740, 2147483648
    %v1307 = vxor.u32 %v745, 2147483648
    %v1308 = vxor.u32 %v750, 2147483648
    %v1309 = vxor.u32 %v755, 2147483648
    %v1310 = vxor.u32 %v760, 2147483648
    %v1311 = vxor.u32 %v765, 2147483648
    %v1312 = vxor.u32 %v770, 2147483648
    %v1313 = vxor.u32 %v775, 2147483648
    %v1314 = vxor.u32 %v780, 2147483648
    %v1315 = vxor.u32 %v785, 2147483648
    %v1316 = vxor.u32 %v790, 2147483648
    %v1317 = vxor.u32 %v795, 2147483648
    %v1318 = vxor.u32 %v800, 2147483648
    %v1319 = vxor.u32 %v805, 2147483648
    %v1320 = vxor.u32 %v810, 2147483648
    %v1321 = vxor.u32 %v815, 2147483648
    %v1322 = vxor.u32 %v820, 2147483648
    %v1323 = vxor.u32 %v825, 2147483648
    %v1324 = vxor.u32 %v830, 2147483648
    %v1325 = vxor.u32 %v835, 2147483648
    %v1326 = vxor.u32 %v840, 2147483648
    %v1327 = vxor.u32 %v845, 2147483648
    %v1328 = vxor.u32 %v850, 2147483648
    %v1329 = vxor.u32 %v855, 2147483648
    %v1330 = vxor.u32 %v860, 2147483648
    %v1331 = vxor.u32 %v865, 2147483648
    %v1332 = vxor.u32 %v870, 2147483648
    %v1333 = vxor.u32 %v875, 2147483648
    %v1334 = vxor.u32 %v880, 2147483648
    %v1335 = vxor.u32 %v885, 2147483648
    %v1336 = vxor.u32 %v890, 2147483648
    %v1337 = vxor.u32 %v895, 2147483648
    %v1338 = vxor.u32 %v900, 2147483648
    %v1339 = vxor.u32 %v905, 2147483648
    %v1340 = vxor.u32 %v910, 2147483648
    %v1341 = vxor.u32 %v915, 2147483648
    %v1342 = vxor.u32 %v920, 2147483648
    %v1343 = vxor.u32 %v925, 2147483648
    %v1344 = vxor.u32 %v930, 2147483648
    %v1345 = vxor.u32 %v935, 2147483648
    %v1346 = vxor.u32 %v940, 2147483648
    %v1347 = vxor.u32 %v945, 2147483648
    %v1348 = vxor.u32 %v950, 2147483648
    %v1349 = vxor.u32 %v955, 2147483648
    %v1350 = vxor.u32 %v960, 2147483648
    %v1351 = vxor.u32 %v965, 2147483648
    %v1352 = vxor.u32 %v970, 2147483648
    %v1353 = vxor.u32 %v975, 2147483648
    %v1354 = vxor.u32 %v980, 2147483648
    %v1355 = vxor.u32 %v985, 2147483648
    %v1356 = vxor.u32 %v990, 2147483648
    %v1357 = vxor.u32 %v995, 2147483648
    %v1358 = vxor.u32 %v1000, 2147483648
    %v1359 = vxor.u32 %v1005, 2147483648
    %v1360 = vxor.u32 %v1010, 2147483648
    %v1361 = vxor.u32 %v1015, 2147483648
    %v1362 = vxor.u32 %v1020, 2147483648
    %v1363 = vxor.u32 %v1025, 2147483648
    %v1364 = vxor.u32 %v1030, 2147483648
    %v1365 = vxor.u32 %v1035, 2147483648
    %v1366 = vxor.u32 %v1040, 2147483648
    %v1367 = vxor.u32 %v1045, 2147483648
    %v1368 = vxor.u32 %v1050, 2147483648
    %v1369 = vxor.u32 %v1055, 2147483648
    %v1370 = vxor.u32 %v1060, 2147483648
    %v1371 = vxor.u32 %v1065, 2147483648
    %v1372 = vxor.u32 %v1070, 2147483648
    %v1373 = vxor.u32 %v1075, 2147483648
    %v1374 = vxor.u32 %v1080, 2147483648
    %v1375 = vxor.u32 %v1085, 2147483648
    %v1376 = vxor.u32 %v1090, 2147483648
    %v1377 = vxor.u32 %v1095, 2147483648
    %v1378 = vxor.u32 %v1100, 2147483648
    %v1379 = vxor.u32 %v1105, 2147483648
    %v1380 = vxor.u32 %v1110, 2147483648
    %v1381 = vxor.u32 %v1115, 2147483648
    %v1382 = vxor.u32 %v1120, 2147483648
    %v1383 = vxor.u32 %v1125, 2147483648
    %v1384 = vxor.u32 %v1130, 2147483648
    %v1385 = vxor.u32 %v1135, 2147483648
    %v1386 = vxor.u32 %v1140, 2147483648
    %v1387 = vxor.u32 %v1145, 2147483648
    %v1388 = vxor.u32 %v1150, 2147483648
    %v1389 = vxor.u32 %v1155, 2147483648
    %v1390 = vxor.u32 %v1160, 2147483648
    %v1391 = vxor.u32 %v1165, 2147483648
    %v1392 = vxor.u32 %v1170, 2147483648
    %v1393 = vxor.u32 %v1175, 2147483648
    %v1394 = vxor.u32 %v1180, 2147483648
    %v1395 = vxor.u32 %v1185, 2147483648
    %v1396 = vxor.u32 %v1190, 2147483648
    %v1397 = vxor.u32 %v1195, 2147483648
    %v1398 = vxor.u32 %v1200, 2147483648
    %v1399 = vxor.u32 %v1205, 2147483648
    %v1400 = vxor.u32 %v1210, 2147483648
    %v1401 = vxor.u32 %v1215, 2147483648
    %v1402 = vxor.u32 %v1220, 2147483648
    %v1403 = vxor.u32 %v1225, 2147483648
    %v1404 = vxor.u32 %v1230, 2147483648
    %v1405 = vxor.u32 %v1235, 2147483648
    %v1406 = vxor.u32 %v1240, 2147483648
    %v1407 = vxor.u32 %v1245, 2147483648
    %v1408 = vxor.u32 %v1250, 2147483648
    %v1409 = vxor.u32 %v1255, 2147483648
    %v1410 = vxor.u32 %v1260, 2147483648
    %v1411 = vxor.u32 %v1265, 2147483648
    %v1412 = vxor.u32 %v1270, 2147483648
    %v1413 = vxor.u32 %v1275, 2147483648
    %v1414 = vxor.u32 %v1280, 2147483648
    %v1415 = vxor.u32 %v1285, 2147483648
    %v1416 = vxor.u32 %v1290, 2147483648
    %v1417 = vxor.u32 %v1295, 2147483648
    %v1418 = vmul.f32 %v1298, 1.442695
    %v1419 = vpow.pop %v1418
    %v1420 = vmul.f32 %v1299, 1.442695
    %v1421 = vpow.pop %v1420
    %v1422 = vmul.f32 %v1300, 1.442695
    %v1423 = vpow.pop %v1422
    %v1424 = vmul.f32 %v1301, 1.442695
    %v1425 = vpow.pop %v1424
    %v1426 = vmul.f32 %v1302, 1.442695
    %v1427 = vpow.pop %v1426
    %v1428 = vmul.f32 %v1303, 1.442695
    %v1429 = vpow.pop %v1428
    %v1430 = vmul.f32 %v1304, 1.442695
    %v1431 = vpow.pop %v1430
    %v1432 = vmul.f32 %v1305, 1.442695
    %v1433 = vpow.pop %v1432
    %v1434 = vmul.f32 %v1306, 1.442695
    %v1435 = vpow.pop %v1434
    %v1436 = vmul.f32 %v1307, 1.442695
    %v1437 = vpow.pop %v1436
    %v1438 = vmul.f32 %v1308, 1.442695
    %v1439 = vpow.pop %v1438
    %v1440 = vmul.f32 %v1309, 1.442695
    %v1441 = vpow.pop %v1440
    %v1442 = vmul.f32 %v1310, 1.442695
    %v1443 = vpow.pop %v1442
    %v1444 = vmul.f32 %v1311, 1.442695
    %v1445 = vpow.pop %v1444
    %v1446 = vmul.f32 %v1312, 1.442695
    %v1447 = vpow.pop %v1446
    %v1448 = vmul.f32 %v1313, 1.442695
    %v1449 = vpow.pop %v1448
    %v1450 = vmul.f32 %v1314, 1.442695
    %v1451 = vpow.pop %v1450
    %v1452 = vmul.f32 %v1315, 1.442695
    %v1453 = vpow.pop %v1452
    %v1454 = vmul.f32 %v1316, 1.442695
    %v1455 = vpow.pop %v1454
    %v1456 = vmul.f32 %v1317, 1.442695
    %v1457 = vpow.pop %v1456
    %v1458 = vmul.f32 %v1318, 1.442695
    %v1459 = vpow.pop %v1458
    %v1460 = vmul.f32 %v1319, 1.442695
    %v1461 = vpow.pop %v1460
    %v1462 = vmul.f32 %v1320, 1.442695
    %v1463 = vpow.pop %v1462
    %v1464 = vmul.f32 %v1321, 1.442695
    %v1465 = vpow.pop %v1464
    %v1466 = vmul.f32 %v1322, 1.442695
    %v1467 = vpow.pop %v1466
    %v1468 = vmul.f32 %v1323, 1.442695
    %v1469 = vpow.pop %v1468
    %v1470 = vmul.f32 %v1324, 1.442695
    %v1471 = vpow.pop %v1470
    %v1472 = vmul.f32 %v1325, 1.442695
    %v1473 = vpow.pop %v1472
    %v1474 = vmul.f32 %v1326, 1.442695
    %v1475 = vpow.pop %v1474
    %v1476 = vmul.f32 %v1327, 1.442695
    %v1477 = vpow.pop %v1476
    %v1478 = vmul.f32 %v1328, 1.442695
    %v1479 = vpow.pop %v1478
    %v1480 = vmul.f32 %v1329, 1.442695
    %v1481 = vpow.pop %v1480
    %v1482 = vmul.f32 %v1330, 1.442695
    %v1483 = vpow.pop %v1482
    %v1484 = vmul.f32 %v1331, 1.442695
    %v1485 = vpow.pop %v1484
    %v1486 = vmul.f32 %v1332, 1.442695
    %v1487 = vpow.pop %v1486
    %v1488 = vmul.f32 %v1333, 1.442695
    %v1489 = vpow.pop %v1488
    %v1490 = vmul.f32 %v1334, 1.442695
    %v1491 = vpow.pop %v1490
    %v1492 = vmul.f32 %v1335, 1.442695
    %v1493 = vpow.pop %v1492
    %v1494 = vmul.f32 %v1336, 1.442695
    %v1495 = vpow.pop %v1494
    %v1496 = vmul.f32 %v1337, 1.442695
    %v1497 = vpow.pop %v1496
    %v1498 = vmul.f32 %v1338, 1.442695
    %v1499 = vpow.pop %v1498
    %v1500 = vmul.f32 %v1339, 1.442695
    %v1501 = vpow.pop %v1500
    %v1502 = vmul.f32 %v1340, 1.442695
    %v1503 = vpow.pop %v1502
    %v1504 = vmul.f32 %v1341, 1.442695
    %v1505 = vpow.pop %v1504
    %v1506 = vmul.f32 %v1342, 1.442695
    %v1507 = vpow.pop %v1506
    %v1508 = vmul.f32 %v1343, 1.442695
    %v1509 = vpow.pop %v1508
    %v1510 = vmul.f32 %v1344, 1.442695
    %v1511 = vpow.pop %v1510
    %v1512 = vmul.f32 %v1345, 1.442695
    %v1513 = vpow.pop %v1512
    %v1514 = vmul.f32 %v1346, 1.442695
    %v1515 = vpow.pop %v1514
    %v1516 = vmul.f32 %v1347, 1.442695
    %v1517 = vpow.pop %v1516
    %v1518 = vmul.f32 %v1348, 1.442695
    %v1519 = vpow.pop %v1518
    %v1520 = vmul.f32 %v1349, 1.442695
    %v1521 = vpow.pop %v1520
    %v1522 = vmul.f32 %v1350, 1.442695
    %v1523 = vpow.pop %v1522
    %v1524 = vmul.f32 %v1351, 1.442695
    %v1525 = vpow.pop %v1524
    %v1526 = vmul.f32 %v1352, 1.442695
    %v1527 = vpow.pop %v1526
    %v1528 = vmul.f32 %v1353, 1.442695
    %v1529 = vpow.pop %v1528
    %v1530 = vmul.f32 %v1354, 1.442695
    %v1531 = vpow.pop %v1530
    %v1532 = vmul.f32 %v1355, 1.442695
    %v1533 = vpow.pop %v1532
    %v1534 = vmul.f32 %v1356, 1.442695
    %v1535 = vpow.pop %v1534
    %v1536 = vmul.f32 %v1357, 1.442695
    %v1537 = vpow.pop %v1536
    %v1538 = vmul.f32 %v1358, 1.442695
    %v1539 = vpow.pop %v1538
    %v1540 = vmul.f32 %v1359, 1.442695
    %v1541 = vpow.pop %v1540
    %v1542 = vmul.f32 %v1360, 1.442695
    %v1543 = vpow.pop %v1542
    %v1544 = vmul.f32 %v1361, 1.442695
    %v1545 = vpow.pop %v1544
    %v1546 = vmul.f32 %v1362, 1.442695
    %v1547 = vpow.pop %v1546
    %v1548 = vmul.f32 %v1363, 1.442695
    %v1549 = vpow.pop %v1548
    %v1550 = vmul.f32 %v1364, 1.442695
    %v1551 = vpow.pop %v1550
    %v1552 = vmul.f32 %v1365, 1.442695
    %v1553 = vpow.pop %v1552
    %v1554 = vmul.f32 %v1366, 1.442695
    %v1555 = vpow.pop %v1554
    %v1556 = vmul.f32 %v1367, 1.442695
    %v1557 = vpow.pop %v1556
    %v1558 = vmul.f32 %v1368, 1.442695
    %v1559 = vpow.pop %v1558
    %v1560 = vmul.f32 %v1369, 1.442695
    %v1561 = vpow.pop %v1560
    %v1562 = vmul.f32 %v1370, 1.442695
    %v1563 = vpow.pop %v1562
    %v1564 = vmul.f32 %v1371, 1.442695
    %v1565 = vpow.pop %v1564
    %v1566 = vmul.f32 %v1372, 1.442695
    %v1567 = vpow.pop %v1566
    %v1568 = vmul.f32 %v1373, 1.442695
    %v1569 = vpow.pop %v1568
    %v1570 = vmul.f32 %v1374, 1.442695
    %v1571 = vpow.pop %v1570
    %v1572 = vmul.f32 %v1375, 1.442695
    %v1573 = vpow.pop %v1572
    %v1574 = vmul.f32 %v1376, 1.442695
    %v1575 = vpow.pop %v1574
    %v1576 = vmul.f32 %v1377, 1.442695
    %v1577 = vpow.pop %v1576
    %v1578 = vmul.f32 %v1378, 1.442695
    %v1579 = vpow.pop %v1578
    %v1580 = vmul.f32 %v1379, 1.442695
    %v1581 = vpow.pop %v1580
    %v1582 = vmul.f32 %v1380, 1.442695
    %v1583 = vpow.pop %v1582
    %v1584 = vmul.f32 %v1381, 1.442695
    %v1585 = vpow.pop %v1584
    %v1586 = vmul.f32 %v1382, 1.442695
    %v1587 = vpow.pop %v1586
    %v1588 = vmul.f32 %v1383, 1.442695
    %v1589 = vpow.pop %v1588
    %v1590 = vmul.f32 %v1384, 1.442695
    %v1591 = vpow.pop %v1590
    %v1592 = vmul.f32 %v1385, 1.442695
    %v1593 = vpow.pop %v1592
    %v1594 = vmul.f32 %v1386, 1.442695
    %v1595 = vpow.pop %v1594
    %v1596 = vmul.f32 %v1387, 1.442695
    %v1597 = vpow.pop %v1596
    %v1598 = vmul.f32 %v1388, 1.442695
    %v1599 = vpow.pop %v1598
    %v1600 = vmul.f32 %v1389, 1.442695
    %v1601 = vpow.pop %v1600
    %v1602 = vmul.f32 %v1390, 1.442695
    %v1603 = vpow.pop %v1602
    %v1604 = vmul.f32 %v1391, 1.442695
    %v1605 = vpow.pop %v1604
    %v1606 = vmul.f32 %v1392, 1.442695
    %v1607 = vpow.pop %v1606
    %v1608 = vmul.f32 %v1393, 1.442695
    %v1609 = vpow.pop %v1608
    %v1610 = vmul.f32 %v1394, 1.442695
    %v1611 = vpow.pop %v1610
    %v1612 = vmul.f32 %v1395, 1.442695
    %v1613 = vpow.pop %v1612
    %v1614 = vmul.f32 %v1396, 1.442695
    %v1615 = vpow.pop %v1614
    %v1616 = vmul.f32 %v1397, 1.442695
    %v1617 = vpow.pop %v1616
    %v1618 = vmul.f32 %v1398, 1.442695
    %v1619 = vpow.pop %v1618
    %v1620 = vmul.f32 %v1399, 1.442695
    %v1621 = vpow.pop %v1620
    %v1622 = vmul.f32 %v1400, 1.442695
    %v1623 = vpow.pop %v1622
    %v1624 = vmul.f32 %v1401, 1.442695
    %v1625 = vpow.pop %v1624
    %v1626 = vmul.f32 %v1402, 1.442695
    %v1627 = vpow.pop %v1626
    %v1628 = vmul.f32 %v1403, 1.442695
    %v1629 = vpow.pop %v1628
    %v1630 = vmul.f32 %v1404, 1.442695
    %v1631 = vpow.pop %v1630
    %v1632 = vmul.f32 %v1405, 1.442695
    %v1633 = vpow.pop %v1632
    %v1634 = vmul.f32 %v1406, 1.442695
    %v1635 = vpow.pop %v1634
    %v1636 = vmul.f32 %v1407, 1.442695
    %v1637 = vpow.pop %v1636
    %v1638 = vmul.f32 %v1408, 1.442695
    %v1639 = vpow.pop %v1638
    %v1640 = vmul.f32 %v1409, 1.442695
    %v1641 = vpow.pop %v1640
    %v1642 = vmul.f32 %v1410, 1.442695
    %v1643 = vpow.pop %v1642
    %v1644 = vmul.f32 %v1411, 1.442695
    %v1645 = vpow.pop %v1644
    %v1646 = vmul.f32 %v1412, 1.442695
    %v1647 = vpow.pop %v1646
    %v1648 = vmul.f32 %v1413, 1.442695
    %v1649 = vpow.pop %v1648
    %v1650 = vmul.f32 %v1414, 1.442695
    %v1651 = vpow.pop %v1650
    %v1652 = vmul.f32 %v1415, 1.442695
    %v1653 = vpow.pop %v1652
    %v1654 = vmul.f32 %v1416, 1.442695
    %v1655 = vpow.pop %v1654
    %v1656 = vmul.f32 %v1417, 1.442695
    %v1657 = vpow.pop %v1656
    %v1658 = vadd.f32 %v1419, 1.0
    %v1659 = vadd.f32 %v1421, 1.0
    %v1660 = vadd.f32 %v1423, 1.0
    %v1661 = vadd.f32 %v1425, 1.0
    %v1662 = vadd.f32 %v1427, 1.0
    %v1663 = vadd.f32 %v1429, 1.0
    %v1664 = vadd.f32 %v1431, 1.0
    %v1665 = vadd.f32 %v1433, 1.0
    %v1666 = vadd.f32 %v1435, 1.0
    %v1667 = vadd.f32 %v1437, 1.0
    %v1668 = vadd.f32 %v1439, 1.0
    %v1669 = vadd.f32 %v1441, 1.0
    %v1670 = vadd.f32 %v1443, 1.0
    %v1671 = vadd.f32 %v1445, 1.0
    %v1672 = vadd.f32 %v1447, 1.0
    %v1673 = vadd.f32 %v1449, 1.0
    %v1674 = vadd.f32 %v1451, 1.0
    %v1675 = vadd.f32 %v1453, 1.0
    %v1676 = vadd.f32 %v1455, 1.0
    %v1677 = vadd.f32 %v1457, 1.0
    %v1678 = vadd.f32 %v1459, 1.0
    %v1679 = vadd.f32 %v1461, 1.0
    %v1680 = vadd.f32 %v1463, 1.0
    %v1681 = vadd.f32 %v1465, 1.0
    %v1682 = vadd.f32 %v1467, 1.0
    %v1683 = vadd.f32 %v1469, 1.0
    %v1684 = vadd.f32 %v1471, 1.0
    %v1685 = vadd.f32 %v1473, 1.0
    %v1686 = vadd.f32 %v1475, 1.0
    %v1687 = vadd.f32 %v1477, 1.0
    %v1688 = vadd.f32 %v1479, 1.0
    %v1689 = vadd.f32 %v1481, 1.0
    %v1690 = vadd.f32 %v1483, 1.0
    %v1691 = vadd.f32 %v1485, 1.0
    %v1692 = vadd.f32 %v1487, 1.0
    %v1693 = vadd.f32 %v1489, 1.0
    %v1694 = vadd.f32 %v1491, 1.0
    %v1695 = vadd.f32 %v1493, 1.0
    %v1696 = vadd.f32 %v1495, 1.0
    %v1697 = vadd.f32 %v1497, 1.0
    %v1698 = vadd.f32 %v1499, 1.0
    %v1699 = vadd.f32 %v1501, 1.0
    %v1700 = vadd.f32 %v1503, 1.0
    %v1701 = vadd.f32 %v1505, 1.0
    %v1702 = vadd.f32 %v1507, 1.0
    %v1703 = vadd.f32 %v1509, 1.0
    %v1704 = vadd.f32 %v1511, 1.0
    %v1705 = vadd.f32 %v1513, 1.0
    %v1706 = vadd.f32 %v1515, 1.0
    %v1707 = vadd.f32 %v1517, 1.0
    %v1708 = vadd.f32 %v1519, 1.0
    %v1709 = vadd.f32 %v1521, 1.0
    %v1710 = vadd.f32 %v1523, 1.0
    %v1711 = vadd.f32 %v1525, 1.0
    %v1712 = vadd.f32 %v1527, 1.0
    %v1713 = vadd.f32 %v1529, 1.0
    %v1714 = vadd.f32 %v1531, 1.0
    %v1715 = vadd.f32 %v1533, 1.0
    %v1716 = vadd.f32 %v1535, 1.0
    %v1717 = vadd.f32 %v1537, 1.0
    %v1718 = vadd.f32 %v1539, 1.0
    %v1719 = vadd.f32 %v1541, 1.0
    %v1720 = vadd.f32 %v1543, 1.0
    %v1721 = vadd.f32 %v1545, 1.0
    %v1722 = vadd.f32 %v1547, 1.0
    %v1723 = vadd.f32 %v1549, 1.0
    %v1724 = vadd.f32 %v1551, 1.0
    %v1725 = vadd.f32 %v1553, 1.0
    %v1726 = vadd.f32 %v1555, 1.0
    %v1727 = vadd.f32 %v1557, 1.0
    %v1728 = vadd.f32 %v1559, 1.0
    %v1729 = vadd.f32 %v1561, 1.0
    %v1730 = vadd.f32 %v1563, 1.0
    %v1731 = vadd.f32 %v1565, 1.0
    %v1732 = vadd.f32 %v1567, 1.0
    %v1733 = vadd.f32 %v1569, 1.0
    %v1734 = vadd.f32 %v1571, 1.0
    %v1735 = vadd.f32 %v1573, 1.0
    %v1736 = vadd.f32 %v1575, 1.0
    %v1737 = vadd.f32 %v1577, 1.0
    %v1738 = vadd.f32 %v1579, 1.0
    %v1739 = vadd.f32 %v1581, 1.0
    %v1740 = vadd.f32 %v1583, 1.0
    %v1741 = vadd.f32 %v1585, 1.0
    %v1742 = vadd.f32 %v1587, 1.0
    %v1743 = vadd.f32 %v1589, 1.0
    %v1744 = vadd.f32 %v1591, 1.0
    %v1745 = vadd.f32 %v1593, 1.0
    %v1746 = vadd.f32 %v1595, 1.0
    %v1747 = vadd.f32 %v1597, 1.0
    %v1748 = vadd.f32 %v1599, 1.0
    %v1749 = vadd.f32 %v1601, 1.0
    %v1750 = vadd.f32 %v1603, 1.0
    %v1751 = vadd.f32 %v1605, 1.0
    %v1752 = vadd.f32 %v1607, 1.0
    %v1753 = vadd.f32 %v1609, 1.0
    %v1754 = vadd.f32 %v1611, 1.0
    %v1755 = vadd.f32 %v1613, 1.0
    %v1756 = vadd.f32 %v1615, 1.0
    %v1757 = vadd.f32 %v1617, 1.0
    %v1758 = vadd.f32 %v1619, 1.0
    %v1759 = vadd.f32 %v1621, 1.0
    %v1760 = vadd.f32 %v1623, 1.0
    %v1761 = vadd.f32 %v1625, 1.0
    %v1762 = vadd.f32 %v1627, 1.0
    %v1763 = vadd.f32 %v1629, 1.0
    %v1764 = vadd.f32 %v1631, 1.0
    %v1765 = vadd.f32 %v1633, 1.0
    %v1766 = vadd.f32 %v1635, 1.0
    %v1767 = vadd.f32 %v1637, 1.0
    %v1768 = vadd.f32 %v1639, 1.0
    %v1769 = vadd.f32 %v1641, 1.0
    %v1770 = vadd.f32 %v1643, 1.0
    %v1771 = vadd.f32 %v1645, 1.0
    %v1772 = vadd.f32 %v1647, 1.0
    %v1773 = vadd.f32 %v1649, 1.0
    %v1774 = vadd.f32 %v1651, 1.0
    %v1775 = vadd.f32 %v1653, 1.0
    %v1776 = vadd.f32 %v1655, 1.0
    %v1777 = vadd.f32 %v1657, 1.0
    %v1778 = vrcp.pop %v1658
    %v1779 = vmul.f32 1.0, %v1778
    %v1780 = vrcp.pop %v1659
    %v1781 = vmul.f32 1.0, %v1780
    %v1782 = vrcp.pop %v1660
    %v1783 = vmul.f32 1.0, %v1782
    %v1784 = vrcp.pop %v1661
    %v1785 = vmul.f32 1.0, %v1784
    %v1786 = vrcp.pop %v1662
    %v1787 = vmul.f32 1.0, %v1786
    %v1788 = vrcp.pop %v1663
    %v1789 = vmul.f32 1.0, %v1788
    %v1790 = vrcp.pop %v1664
    %v1791 = vmul.f32 1.0, %v1790
    %v1792 = vrcp.pop %v1665
    %v1793 = vmul.f32 1.0, %v1792
    %v1794 = vrcp.pop %v1666
    %v1795 = vmul.f32 1.0, %v1794
    %v1796 = vrcp.pop %v1667
    %v1797 = vmul.f32 1.0, %v1796
    %v1798 = vrcp.pop %v1668
    %v1799 = vmul.f32 1.0, %v1798
    %v1800 = vrcp.pop %v1669
    %v1801 = vmul.f32 1.0, %v1800
    %v1802 = vrcp.pop %v1670
    %v1803 = vmul.f32 1.0, %v1802
    %v1804 = vrcp.pop %v1671
    %v1805 = vmul.f32 1.0, %v1804
    %v1806 = vrcp.pop %v1672
    %v1807 = vmul.f32 1.0, %v1806
    %v1808 = vrcp.pop %v1673
    %v1809 = vmul.f32 1.0, %v1808
    %v1810 = vrcp.pop %v1674
    %v1811 = vmul.f32 1.0, %v1810
    %v1812 = vrcp.pop %v1675
    %v1813 = vmul.f32 1.0, %v1812
    %v1814 = vrcp.pop %v1676
    %v1815 = vmul.f32 1.0, %v1814
    %v1816 = vrcp.pop %v1677
    %v1817 = vmul.f32 1.0, %v1816
    %v1818 = vrcp.pop %v1678
    %v1819 = vmul.f32 1.0, %v1818
    %v1820 = vrcp.pop %v1679
    %v1821 = vmul.f32 1.0, %v1820
    %v1822 = vrcp.pop %v1680
    %v1823 = vmul.f32 1.0, %v1822
    %v1824 = vrcp.pop %v1681
    %v1825 = vmul.f32 1.0, %v1824
    %v1826 = vrcp.pop %v1682
    %v1827 = vmul.f32 1.0, %v1826
    %v1828 = vrcp.pop %v1683
    %v1829 = vmul.f32 1.0, %v1828
    %v1830 = vrcp.pop %v1684
    %v1831 = vmul.f32 1.0, %v1830
    %v1832 = vrcp.pop %v1685
    %v1833 = vmul.f32 1.0, %v1832
    %v1834 = vrcp.pop %v1686
    %v1835 = vmul.f32 1.0, %v1834
    %v1836 = vrcp.pop %v1687
    %v1837 = vmul.f32 1.0, %v1836
    %v1838 = vrcp.pop %v1688
    %v1839 = vmul.f32 1.0, %v1838
    %v1840 = vrcp.pop %v1689
    %v1841 = vmul.f32 1.0, %v1840
    %v1842 = vrcp.pop %v1690
    %v1843 = vmul.f32 1.0, %v1842
    %v1844 = vrcp.pop %v1691
    %v1845 = vmul.f32 1.0, %v1844
    %v1846 = vrcp.pop %v1692
    %v1847 = vmul.f32 1.0, %v1846
    %v1848 = vrcp.pop %v1693
    %v1849 = vmul.f32 1.0, %v1848
    %v1850 = vrcp.pop %v1694
    %v1851 = vmul.f32 1.0, %v1850
    %v1852 = vrcp.pop %v1695
    %v1853 = vmul.f32 1.0, %v1852
    %v1854 = vrcp.pop %v1696
    %v1855 = vmul.f32 1.0, %v1854
    %v1856 = vrcp.pop %v1697
    %v1857 = vmul.f32 1.0, %v1856
    %v1858 = vrcp.pop %v1698
    %v1859 = vmul.f32 1.0, %v1858
    %v1860 = vrcp.pop %v1699
    %v1861 = vmul.f32 1.0, %v1860
    %v1862 = vrcp.pop %v1700
    %v1863 = vmul.f32 1.0, %v1862
    %v1864 = vrcp.pop %v1701
    %v1865 = vmul.f32 1.0, %v1864
    %v1866 = vrcp.pop %v1702
    %v1867 = vmul.f32 1.0, %v1866
    %v1868 = vrcp.pop %v1703
    %v1869 = vmul.f32 1.0, %v1868
    %v1870 = vrcp.pop %v1704
    %v1871 = vmul.f32 1.0, %v1870
    %v1872 = vrcp.pop %v1705
    %v1873 = vmul.f32 1.0, %v1872
    %v1874 = vrcp.pop %v1706
    %v1875 = vmul.f32 1.0, %v1874
    %v1876 = vrcp.pop %v1707
    %v1877 = vmul.f32 1.0, %v1876
    %v1878 = vrcp.pop %v1708
    %v1879 = vmul.f32 1.0, %v1878
    %v1880 = vrcp.pop %v1709
    %v1881 = vmul.f32 1.0, %v1880
    %v1882 = vrcp.pop %v1710
    %v1883 = vmul.f32 1.0, %v1882
    %v1884 = vrcp.pop %v1711
    %v1885 = vmul.f32 1.0, %v1884
    %v1886 = vrcp.pop %v1712
    %v1887 = vmul.f32 1.0, %v1886
    %v1888 = vrcp.pop %v1713
    %v1889 = vmul.f32 1.0, %v1888
    %v1890 = vrcp.pop %v1714
    %v1891 = vmul.f32 1.0, %v1890
    %v1892 = vrcp.pop %v1715
    %v1893 = vmul.f32 1.0, %v1892
    %v1894 = vrcp.pop %v1716
    %v1895 = vmul.f32 1.0, %v1894
    %v1896 = vrcp.pop %v1717
    %v1897 = vmul.f32 1.0, %v1896
    %v1898 = vrcp.pop %v1718
    %v1899 = vmul.f32 1.0, %v1898
    %v1900 = vrcp.pop %v1719
    %v1901 = vmul.f32 1.0, %v1900
    %v1902 = vrcp.pop %v1720
    %v1903 = vmul.f32 1.0, %v1902
    %v1904 = vrcp.pop %v1721
    %v1905 = vmul.f32 1.0, %v1904
    %v1906 = vrcp.pop %v1722
    %v1907 = vmul.f32 1.0, %v1906
    %v1908 = vrcp.pop %v1723
    %v1909 = vmul.f32 1.0, %v1908
    %v1910 = vrcp.pop %v1724
    %v1911 = vmul.f32 1.0, %v1910
    %v1912 = vrcp.pop %v1725
    %v1913 = vmul.f32 1.0, %v1912
    %v1914 = vrcp.pop %v1726
    %v1915 = vmul.f32 1.0, %v1914
    %v1916 = vrcp.pop %v1727
    %v1917 = vmul.f32 1.0, %v1916
    %v1918 = vrcp.pop %v1728
    %v1919 = vmul.f32 1.0, %v1918
    %v1920 = vrcp.pop %v1729
    %v1921 = vmul.f32 1.0, %v1920
    %v1922 = vrcp.pop %v1730
    %v1923 = vmul.f32 1.0, %v1922
    %v1924 = vrcp.pop %v1731
    %v1925 = vmul.f32 1.0, %v1924
    %v1926 = vrcp.pop %v1732
    %v1927 = vmul.f32 1.0, %v1926
    %v1928 = vrcp.pop %v1733
    %v1929 = vmul.f32 1.0, %v1928
    %v1930 = vrcp.pop %v1734
    %v1931 = vmul.f32 1.0, %v1930
    %v1932 = vrcp.pop %v1735
    %v1933 = vmul.f32 1.0, %v1932
    %v1934 = vrcp.pop %v1736
    %v1935 = vmul.f32 1.0, %v1934
    %v1936 = vrcp.pop %v1737
    %v1937 = vmul.f32 1.0, %v1936
    %v1938 = vrcp.pop %v1738
    %v1939 = vmul.f32 1.0, %v1938
    %v1940 = vrcp.pop %v1739
    %v1941 = vmul.f32 1.0, %v1940
    %v1942 = vrcp.pop %v1740
    %v1943 = vmul.f32 1.0, %v1942
    %v1944 = vrcp.pop %v1741
    %v1945 = vmul.f32 1.0, %v1944
    %v1946 = vrcp.pop %v1742
    %v1947 = vmul.f32 1.0, %v1946
    %v1948 = vrcp.pop %v1743
    %v1949 = vmul.f32 1.0, %v1948
    %v1950 = vrcp.pop %v1744
    %v1951 = vmul.f32 1.0, %v1950
    %v1952 = vrcp.pop %v1745
    %v1953 = vmul.f32 1.0, %v1952
    %v1954 = vrcp.pop %v1746
    %v1955 = vmul.f32 1.0, %v1954
    %v1956 = vrcp.pop %v1747
    %v1957 = vmul.f32 1.0, %v1956
    %v1958 = vrcp.pop %v1748
    %v1959 = vmul.f32 1.0, %v1958
    %v1960 = vrcp.pop %v1749
    %v1961 = vmul.f32 1.0, %v1960
    %v1962 = vrcp.pop %v1750
    %v1963 = vmul.f32 1.0, %v1962
    %v1964 = vrcp.pop %v1751
    %v1965 = vmul.f32 1.0, %v1964
    %v1966 = vrcp.pop %v1752
    %v1967 = vmul.f32 1.0, %v1966
    %v1968 = vrcp.pop %v1753
    %v1969 = vmul.f32 1.0, %v1968
    %v1970 = vrcp.pop %v1754
    %v1971 = vmul.f32 1.0, %v1970
    %v1972 = vrcp.pop %v1755
    %v1973 = vmul.f32 1.0, %v1972
    %v1974 = vrcp.pop %v1756
    %v1975 = vmul.f32 1.0, %v1974
    %v1976 = vrcp.pop %v1757
    %v1977 = vmul.f32 1.0, %v1976
    %v1978 = vrcp.pop %v1758
    %v1979 = vmul.f32 1.0, %v1978
    %v1980 = vrcp.pop %v1759
    %v1981 = vmul.f32 1.0, %v1980
    %v1982 = vrcp.pop %v1760
    %v1983 = vmul.f32 1.0, %v1982
    %v1984 = vrcp.pop %v1761
    %v1985 = vmul.f32 1.0, %v1984
    %v1986 = vrcp.pop %v1762
    %v1987 = vmul.f32 1.0, %v1986
    %v1988 = vrcp.pop %v1763
    %v1989 = vmul.f32 1.0, %v1988
    %v1990 = vrcp.pop %v1764
    %v1991 = vmul.f32 1.0, %v1990
    %v1992 = vrcp.pop %v1765
    %v1993 = vmul.f32 1.0, %v1992
    %v1994 = vrcp.pop %v1766
    %v1995 = vmul.f32 1.0, %v1994
    %v1996 = vrcp.pop %v1767
    %v1997 = vmul.f32 1.0, %v1996
    %v1998 = vrcp.pop %v1768
    %v1999 = vmul.f32 1.0, %v1998
    %v2000 = vrcp.pop %v1769
    %v2001 = vmul.f32 1.0, %v2000
    %v2002 = vrcp.pop %v1770
    %v2003 = vmul.f32 1.0, %v2002
    %v2004 = vrcp.pop %v1771
    %v2005 = vmul.f32 1.0, %v2004
    %v2006 = vrcp.pop %v1772
    %v2007 = vmul.f32 1.0, %v2006
    %v2008 = vrcp.pop %v1773
    %v2009 = vmul.f32 1.0, %v2008
    %v2010 = vrcp.pop %v1774
    %v2011 = vmul.f32 1.0, %v2010
    %v2012 = vrcp.pop %v1775
    %v2013 = vmul.f32 1.0, %v2012
    %v2014 = vrcp.pop %v1776
    %v2015 = vmul.f32 1.0, %v2014
    %v2016 = vrcp.pop %v1777
    %v2017 = vmul.f32 1.0, %v2016
    %v2018 = vld [vmem:[%s3] sm:$0xff]
    %v2019 = vld [vmem:[%s3 + $0x8] sm:$0xff]
    %v2020 = vld [vmem:[%s3 + $0x10] sm:$0xff]
    %v2021 = vld [vmem:[%s3 + $0x18] sm:$0xff]
    %v2022 = vld [vmem:[%s3 + $0x20] sm:$0xff]
    %v2023 = vld [vmem:[%s3 + $0x28] sm:$0xff]
    %v2024 = vld [vmem:[%s3 + $0x30] sm:$0xff]
    %v2025 = vld [vmem:[%s3 + $0x38] sm:$0xff]
    %v2026 = vld [vmem:[%s3 + $0x40] sm:$0xff]
    %v2027 = vld [vmem:[%s3 + $0x48] sm:$0xff]
    %v2028 = vld [vmem:[%s3 + $0x50] sm:$0xff]
    %v2029 = vld [vmem:[%s3 + $0x58] sm:$0xff]
    %v2030 = vld [vmem:[%s3 + $0x60] sm:$0xff]
    %v2031 = vld [vmem:[%s3 + $0x68] sm:$0xff]
    %v2032 = vld [vmem:[%s3 + $0x70] sm:$0xff]
    %v2033 = vld [vmem:[%s3 + $0x78] sm:$0xff]
    %v2034 = vld [vmem:[%s3 + $0x80] sm:$0xff]
    %v2035 = vld [vmem:[%s3 + $0x88] sm:$0xff]
    %v2036 = vld [vmem:[%s3 + $0x90] sm:$0xff]
    %v2037 = vld [vmem:[%s3 + $0x98] sm:$0xff]
    %v2038 = vld [vmem:[%s3 + $0xa0] sm:$0xff]
    %v2039 = vld [vmem:[%s3 + $0xa8] sm:$0xff]
    %v2040 = vld [vmem:[%s3 + $0xb0] sm:$0xff]
    %v2041 = vld [vmem:[%s3 + $0xb8] sm:$0xff]
    %v2042 = vld [vmem:[%s3 + $0xc0] sm:$0xff]
    %v2043 = vld [vmem:[%s3 + $0xc8] sm:$0xff]
    %v2044 = vld [vmem:[%s3 + $0xd0] sm:$0xff]
    %v2045 = vld [vmem:[%s3 + $0xd8] sm:$0xff]
    %v2046 = vld [vmem:[%s3 + $0xe0] sm:$0xff]
    %v2047 = vld [vmem:[%s3 + $0xe8] sm:$0xff]
    %v2048 = vld [vmem:[%s3 + $0xf0] sm:$0xff]
    %v2049 = vld [vmem:[%s3 + $0xf8] sm:$0xff]
    %v2050 = vld [vmem:[%s3 + $0x100] sm:$0xff]
    %v2051 = vld [vmem:[%s3 + $0x108] sm:$0xff]
    %v2052 = vld [vmem:[%s3 + $0x110] sm:$0xff]
    %v2053 = vld [vmem:[%s3 + $0x118] sm:$0xff]
    %v2054 = vld [vmem:[%s3 + $0x120] sm:$0xff]
    %v2055 = vld [vmem:[%s3 + $0x128] sm:$0xff]
    %v2056 = vld [vmem:[%s3 + $0x130] sm:$0xff]
    %v2057 = vld [vmem:[%s3 + $0x138] sm:$0xff]
    %v2058 = vld [vmem:[%s3 + $0x140] sm:$0xff]
    %v2059 = vld [vmem:[%s3 + $0x148] sm:$0xff]
    %v2060 = vld [vmem:[%s3 + $0x150] sm:$0xff]
    %v2061 = vld [vmem:[%s3 + $0x158] sm:$0xff]
    %v2062 = vld [vmem:[%s3 + $0x160] sm:$0xff]
    %v2063 = vld [vmem:[%s3 + $0x168] sm:$0xff]
    %v2064 = vld [vmem:[%s3 + $0x170] sm:$0xff]
    %v2065 = vld [vmem:[%s3 + $0x178] sm:$0xff]
    %v2066 = vld [vmem:[%s3 + $0x180] sm:$0xff]
    %v2067 = vld [vmem:[%s3 + $0x188] sm:$0xff]
    %v2068 = vld [vmem:[%s3 + $0x190] sm:$0xff]
    %v2069 = vld [vmem:[%s3 + $0x198] sm:$0xff]
    %v2070 = vld [vmem:[%s3 + $0x1a0] sm:$0xff]
    %v2071 = vld [vmem:[%s3 + $0x1a8] sm:$0xff]
    %v2072 = vld [vmem:[%s3 + $0x1b0] sm:$0xff]
    %v2073 = vld [vmem:[%s3 + $0x1b8] sm:$0xff]
    %v2074 = vld [vmem:[%s3 + $0x1c0] sm:$0xff]
    %v2075 = vld [vmem:[%s3 + $0x1c8] sm:$0xff]
    %v2076 = vld [vmem:[%s3 + $0x1d0] sm:$0xff]
    %v2077 = vld [vmem:[%s3 + $0x1d8] sm:$0xff]
    %v2078 = vld [vmem:[%s3 + $0x1e0] sm:$0xff]
    %v2079 = vld [vmem:[%s3 + $0x1e8] sm:$0xff]
    %v2080 = vld [vmem:[%s3 + $0x1f0] sm:$0xff]
    %v2081 = vld [vmem:[%s3 + $0x1f8] sm:$0xff]
    %v2082 = vld [vmem:[%s3 + $0x200] sm:$0xff]
    %v2083 = vld [vmem:[%s3 + $0x208] sm:$0xff]
    %v2084 = vld [vmem:[%s3 + $0x210] sm:$0xff]
    %v2085 = vld [vmem:[%s3 + $0x218] sm:$0xff]
    %v2086 = vld [vmem:[%s3 + $0x220] sm:$0xff]
    %v2087 = vld [vmem:[%s3 + $0x228] sm:$0xff]
    %v2088 = vld [vmem:[%s3 + $0x230] sm:$0xff]
    %v2089 = vld [vmem:[%s3 + $0x238] sm:$0xff]
    %v2090 = vld [vmem:[%s3 + $0x240] sm:$0xff]
    %v2091 = vld [vmem:[%s3 + $0x248] sm:$0xff]
    %v2092 = vld [vmem:[%s3 + $0x250] sm:$0xff]
    %v2093 = vld [vmem:[%s3 + $0x258] sm:$0xff]
    %v2094 = vld [vmem:[%s3 + $0x260] sm:$0xff]
    %v2095 = vld [vmem:[%s3 + $0x268] sm:$0xff]
    %v2096 = vld [vmem:[%s3 + $0x270] sm:$0xff]
    %v2097 = vld [vmem:[%s3 + $0x278] sm:$0xff]
    %v2098 = vld [vmem:[%s3 + $0x280] sm:$0xff]
    %v2099 = vld [vmem:[%s3 + $0x288] sm:$0xff]
    %v2100 = vld [vmem:[%s3 + $0x290] sm:$0xff]
    %v2101 = vld [vmem:[%s3 + $0x298] sm:$0xff]
    %v2102 = vld [vmem:[%s3 + $0x2a0] sm:$0xff]
    %v2103 = vld [vmem:[%s3 + $0x2a8] sm:$0xff]
    %v2104 = vld [vmem:[%s3 + $0x2b0] sm:$0xff]
    %v2105 = vld [vmem:[%s3 + $0x2b8] sm:$0xff]
    %v2106 = vld [vmem:[%s3 + $0x2c0] sm:$0xff]
    %v2107 = vld [vmem:[%s3 + $0x2c8] sm:$0xff]
    %v2108 = vld [vmem:[%s3 + $0x2d0] sm:$0xff]
    %v2109 = vld [vmem:[%s3 + $0x2d8] sm:$0xff]
    %v2110 = vld [vmem:[%s3 + $0x2e0] sm:$0xff]
    %v2111 = vld [vmem:[%s3 + $0x2e8] sm:$0xff]
    %v2112 = vld [vmem:[%s3 + $0x2f0] sm:$0xff]
    %v2113 = vld [vmem:[%s3 + $0x2f8] sm:$0xff]
    %v2114 = vld [vmem:[%s3 + $0x300] sm:$0xff]
    %v2115 = vld [vmem:[%s3 + $0x308] sm:$0xff]
    %v2116 = vld [vmem:[%s3 + $0x310] sm:$0xff]
    %v2117 = vld [vmem:[%s3 + $0x318] sm:$0xff]
    %v2118 = vld [vmem:[%s3 + $0x320] sm:$0xff]
    %v2119 = vld [vmem:[%s3 + $0x328] sm:$0xff]
    %v2120 = vld [vmem:[%s3 + $0x330] sm:$0xff]
    %v2121 = vld [vmem:[%s3 + $0x338] sm:$0xff]
    %v2122 = vld [vmem:[%s3 + $0x340] sm:$0xff]
    %v2123 = vld [vmem:[%s3 + $0x348] sm:$0xff]
    %v2124 = vld [vmem:[%s3 + $0x350] sm:$0xff]
    %v2125 = vld [vmem:[%s3 + $0x358] sm:$0xff]
    %v2126 = vld [vmem:[%s3 + $0x360] sm:$0xff]
    %v2127 = vld [vmem:[%s3 + $0x368] sm:$0xff]
    %v2128 = vld [vmem:[%s3 + $0x370] sm:$0xff]
    %v2129 = vld [vmem:[%s3 + $0x378] sm:$0xff]
    %v2130 = vld [vmem:[%s3 + $0x380] sm:$0xff]
    %v2131 = vld [vmem:[%s3 + $0x388] sm:$0xff]
    %v2132 = vld [vmem:[%s3 + $0x390] sm:$0xff]
    %v2133 = vld [vmem:[%s3 + $0x398] sm:$0xff]
    %v2134 = vld [vmem:[%s3 + $0x3a0] sm:$0xff]
    %v2135 = vld [vmem:[%s3 + $0x3a8] sm:$0xff]
    %v2136 = vld [vmem:[%s3 + $0x3b0] sm:$0xff]
    %v2137 = vld [vmem:[%s3 + $0x3b8] sm:$0xff]
    %v2138 = vld [vmem:[%s3 + $0x3c0] sm:$0xff]
    %v2139 = vld [vmem:[%s3 + $0x3c8] sm:$0xff]
    %v2140 = vld [vmem:[%s3 + $0x3d0] sm:$0xff]
    %v2141 = vld [vmem:[%s3 + $0x3d8] sm:$0xff]
    %v2142 = vld [vmem:[%s3 + $0x3e0] sm:$0xff]
    %v2143 = vld [vmem:[%s3 + $0x3e8] sm:$0xff]
    %v2144 = vld [vmem:[%s3 + $0x3f0] sm:$0xff]
    %v2145 = vld [vmem:[%s3 + $0x3f8] sm:$0xff]
    %v2146 = vld [vmem:[%s3 + $0x400] sm:$0xff]
    %v2147 = vld [vmem:[%s3 + $0x408] sm:$0xff]
    %v2148 = vld [vmem:[%s3 + $0x410] sm:$0xff]
    %v2149 = vld [vmem:[%s3 + $0x418] sm:$0xff]
    %v2150 = vld [vmem:[%s3 + $0x420] sm:$0xff]
    %v2151 = vld [vmem:[%s3 + $0x428] sm:$0xff]
    %v2152 = vld [vmem:[%s3 + $0x430] sm:$0xff]
    %v2153 = vld [vmem:[%s3 + $0x438] sm:$0xff]
    %v2154 = vld [vmem:[%s3 + $0x440] sm:$0xff]
    %v2155 = vld [vmem:[%s3 + $0x448] sm:$0xff]
    %v2156 = vld [vmem:[%s3 + $0x450] sm:$0xff]
    %v2157 = vld [vmem:[%s3 + $0x458] sm:$0xff]
    %v2158 = vld [vmem:[%s3 + $0x460] sm:$0xff]
    %v2159 = vld [vmem:[%s3 + $0x468] sm:$0xff]
    %v2160 = vld [vmem:[%s3 + $0x470] sm:$0xff]
    %v2161 = vld [vmem:[%s3 + $0x478] sm:$0xff]
    %v2162 = vld [vmem:[%s3 + $0x480] sm:$0xff]
    %v2163 = vld [vmem:[%s3 + $0x488] sm:$0xff]
    %v2164 = vld [vmem:[%s3 + $0x490] sm:$0xff]
    %v2165 = vld [vmem:[%s3 + $0x498] sm:$0xff]
    %v2166 = vld [vmem:[%s3 + $0x4a0] sm:$0xff]
    %v2167 = vld [vmem:[%s3 + $0x4a8] sm:$0xff]
    %v2168 = vld [vmem:[%s3 + $0x4b0] sm:$0xff]
    %v2169 = vld [vmem:[%s3 + $0x4b8] sm:$0xff]
    %v2170 = vld [vmem:[%s3 + $0x4c0] sm:$0xff]
    %v2171 = vld [vmem:[%s3 + $0x4c8] sm:$0xff]
    %v2172 = vld [vmem:[%s3 + $0x4d0] sm:$0xff]
    %v2173 = vld [vmem:[%s3 + $0x4d8] sm:$0xff]
    %v2174 = vld [vmem:[%s3 + $0x4e0] sm:$0xff]
    %v2175 = vld [vmem:[%s3 + $0x4e8] sm:$0xff]
    %v2176 = vld [vmem:[%s3 + $0x4f0] sm:$0xff]
    %v2177 = vld [vmem:[%s3 + $0x4f8] sm:$0xff]
    %v2178 = vld [vmem:[%s3 + $0x500] sm:$0xff]
    %v2179 = vld [vmem:[%s3 + $0x508] sm:$0xff]
    %v2180 = vld [vmem:[%s3 + $0x510] sm:$0xff]
    %v2181 = vld [vmem:[%s3 + $0x518] sm:$0xff]
    %v2182 = vld [vmem:[%s3 + $0x520] sm:$0xff]
    %v2183 = vld [vmem:[%s3 + $0x528] sm:$0xff]
    %v2184 = vld [vmem:[%s3 + $0x530] sm:$0xff]
    %v2185 = vld [vmem:[%s3 + $0x538] sm:$0xff]
    %v2186 = vld [vmem:[%s3 + $0x540] sm:$0xff]
    %v2187 = vld [vmem:[%s3 + $0x548] sm:$0xff]
    %v2188 = vld [vmem:[%s3 + $0x550] sm:$0xff]
    %v2189 = vld [vmem:[%s3 + $0x558] sm:$0xff]
    %v2190 = vld [vmem:[%s3 + $0x560] sm:$0xff]
    %v2191 = vld [vmem:[%s3 + $0x568] sm:$0xff]
    %v2192 = vld [vmem:[%s3 + $0x570] sm:$0xff]
    %v2193 = vld [vmem:[%s3 + $0x578] sm:$0xff]
    %v2194 = vld [vmem:[%s3 + $0x580] sm:$0xff]
    %v2195 = vld [vmem:[%s3 + $0x588] sm:$0xff]
    %v2196 = vld [vmem:[%s3 + $0x590] sm:$0xff]
    %v2197 = vld [vmem:[%s3 + $0x598] sm:$0xff]
    %v2198 = vld [vmem:[%s3 + $0x5a0] sm:$0xff]
    %v2199 = vld [vmem:[%s3 + $0x5a8] sm:$0xff]
    %v2200 = vld [vmem:[%s3 + $0x5b0] sm:$0xff]
    %v2201 = vld [vmem:[%s3 + $0x5b8] sm:$0xff]
    %v2202 = vld [vmem:[%s3 + $0x5c0] sm:$0xff]
    %v2203 = vld [vmem:[%s3 + $0x5c8] sm:$0xff]
    %v2204 = vld [vmem:[%s3 + $0x5d0] sm:$0xff]
    %v2205 = vld [vmem:[%s3 + $0x5d8] sm:$0xff]
    %v2206 = vld [vmem:[%s3 + $0x5e0] sm:$0xff]
    %v2207 = vld [vmem:[%s3 + $0x5e8] sm:$0xff]
    %v2208 = vld [vmem:[%s3 + $0x5f0] sm:$0xff]
    %v2209 = vld [vmem:[%s3 + $0x5f8] sm:$0xff]
    %v2210 = vld [vmem:[%s3 + $0x600] sm:$0xff]
    %v2211 = vld [vmem:[%s3 + $0x608] sm:$0xff]
    %v2212 = vld [vmem:[%s3 + $0x610] sm:$0xff]
    %v2213 = vld [vmem:[%s3 + $0x618] sm:$0xff]
    %v2214 = vld [vmem:[%s3 + $0x620] sm:$0xff]
    %v2215 = vld [vmem:[%s3 + $0x628] sm:$0xff]
    %v2216 = vld [vmem:[%s3 + $0x630] sm:$0xff]
    %v2217 = vld [vmem:[%s3 + $0x638] sm:$0xff]
    %v2218 = vld [vmem:[%s3 + $0x640] sm:$0xff]
    %v2219 = vld [vmem:[%s3 + $0x648] sm:$0xff]
    %v2220 = vld [vmem:[%s3 + $0x650] sm:$0xff]
    %v2221 = vld [vmem:[%s3 + $0x658] sm:$0xff]
    %v2222 = vld [vmem:[%s3 + $0x660] sm:$0xff]
    %v2223 = vld [vmem:[%s3 + $0x668] sm:$0xff]
    %v2224 = vld [vmem:[%s3 + $0x670] sm:$0xff]
    %v2225 = vld [vmem:[%s3 + $0x678] sm:$0xff]
    %v2226 = vld [vmem:[%s3 + $0x680] sm:$0xff]
    %v2227 = vld [vmem:[%s3 + $0x688] sm:$0xff]
    %v2228 = vld [vmem:[%s3 + $0x690] sm:$0xff]
    %v2229 = vld [vmem:[%s3 + $0x698] sm:$0xff]
    %v2230 = vld [vmem:[%s3 + $0x6a0] sm:$0xff]
    %v2231 = vld [vmem:[%s3 + $0x6a8] sm:$0xff]
    %v2232 = vld [vmem:[%s3 + $0x6b0] sm:$0xff]
    %v2233 = vld [vmem:[%s3 + $0x6b8] sm:$0xff]
    %v2234 = vld [vmem:[%s3 + $0x6c0] sm:$0xff]
    %v2235 = vld [vmem:[%s3 + $0x6c8] sm:$0xff]
    %v2236 = vld [vmem:[%s3 + $0x6d0] sm:$0xff]
    %v2237 = vld [vmem:[%s3 + $0x6d8] sm:$0xff]
    %v2238 = vld [vmem:[%s3 + $0x6e0] sm:$0xff]
    %v2239 = vld [vmem:[%s3 + $0x6e8] sm:$0xff]
    %v2240 = vld [vmem:[%s3 + $0x6f0] sm:$0xff]
    %v2241 = vld [vmem:[%s3 + $0x6f8] sm:$0xff]
    %v2242 = vld [vmem:[%s3 + $0x700] sm:$0xff]
    %v2243 = vld [vmem:[%s3 + $0x708] sm:$0xff]
    %v2244 = vld [vmem:[%s3 + $0x710] sm:$0xff]
    %v2245 = vld [vmem:[%s3 + $0x718] sm:$0xff]
    %v2246 = vld [vmem:[%s3 + $0x720] sm:$0xff]
    %v2247 = vld [vmem:[%s3 + $0x728] sm:$0xff]
    %v2248 = vld [vmem:[%s3 + $0x730] sm:$0xff]
    %v2249 = vld [vmem:[%s3 + $0x738] sm:$0xff]
    %v2250 = vld [vmem:[%s3 + $0x740] sm:$0xff]
    %v2251 = vld [vmem:[%s3 + $0x748] sm:$0xff]
    %v2252 = vld [vmem:[%s3 + $0x750] sm:$0xff]
    %v2253 = vld [vmem:[%s3 + $0x758] sm:$0xff]
    %v2254 = vld [vmem:[%s3 + $0x760] sm:$0xff]
    %v2255 = vld [vmem:[%s3 + $0x768] sm:$0xff]
    %v2256 = vld [vmem:[%s3 + $0x770] sm:$0xff]
    %v2257 = vld [vmem:[%s3 + $0x778] sm:$0xff]
    %2259 = vset.pattern.permute.xlu0 0
    %2260 = vperm.xlu0 %2259, %v1779
    %v2261 = vpop.permute.xlu0 %2260
    %2264 = vset.pattern.permute.xlu0 0
    %2265 = vperm.xlu0 %2264, %v1781
    %v2266 = vpop.permute.xlu0 %2265
    %2269 = vset.pattern.permute.xlu0 0
    %2270 = vperm.xlu0 %2269, %v1783
    %v2271 = vpop.permute.xlu0 %2270
    %2274 = vset.pattern.permute.xlu0 0
    %2275 = vperm.xlu0 %2274, %v1785
    %v2276 = vpop.permute.xlu0 %2275
    %2279 = vset.pattern.permute.xlu0 0
    %2280 = vperm.xlu0 %2279, %v1787
    %v2281 = vpop.permute.xlu0 %2280
    %2284 = vset.pattern.permute.xlu0 0
    %2285 = vperm.xlu0 %2284, %v1789
    %v2286 = vpop.permute.xlu0 %2285
    %2289 = vset.pattern.permute.xlu0 0
    %2290 = vperm.xlu0 %2289, %v1791
    %v2291 = vpop.permute.xlu0 %2290
    %2294 = vset.pattern.permute.xlu0 0
    %2295 = vperm.xlu0 %2294, %v1793
    %v2296 = vpop.permute.xlu0 %2295
    %2299 = vset.pattern.permute.xlu0 0
    %2300 = vperm.xlu0 %2299, %v1795
    %v2301 = vpop.permute.xlu0 %2300
    %2304 = vset.pattern.permute.xlu0 0
    %2305 = vperm.xlu0 %2304, %v1797
    %v2306 = vpop.permute.xlu0 %2305
    %2309 = vset.pattern.permute.xlu0 0
    %2310 = vperm.xlu0 %2309, %v1799
    %v2311 = vpop.permute.xlu0 %2310
    %2314 = vset.pattern.permute.xlu0 0
    %2315 = vperm.xlu0 %2314, %v1801
    %v2316 = vpop.permute.xlu0 %2315
    %2319 = vset.pattern.permute.xlu0 0
    %2320 = vperm.xlu0 %2319, %v1803
    %v2321 = vpop.permute.xlu0 %2320
    %2324 = vset.pattern.permute.xlu0 0
    %2325 = vperm.xlu0 %2324, %v1805
    %v2326 = vpop.permute.xlu0 %2325
    %2329 = vset.pattern.permute.xlu0 0
    %2330 = vperm.xlu0 %2329, %v1807
    %v2331 = vpop.permute.xlu0 %2330
    %2334 = vset.pattern.permute.xlu0 0
    %2335 = vperm.xlu0 %2334, %v1809
    %v2336 = vpop.permute.xlu0 %2335
    %2339 = vset.pattern.permute.xlu0 0
    %2340 = vperm.xlu0 %2339, %v1811
    %v2341 = vpop.permute.xlu0 %2340
    %2344 = vset.pattern.permute.xlu0 0
    %2345 = vperm.xlu0 %2344, %v1813
    %v2346 = vpop.permute.xlu0 %2345
    %2349 = vset.pattern.permute.xlu0 0
    %2350 = vperm.xlu0 %2349, %v1815
    %v2351 = vpop.permute.xlu0 %2350
    %2354 = vset.pattern.permute.xlu0 0
    %2355 = vperm.xlu0 %2354, %v1817
    %v2356 = vpop.permute.xlu0 %2355
    %2359 = vset.pattern.permute.xlu0 0
    %2360 = vperm.xlu0 %2359, %v1819
    %v2361 = vpop.permute.xlu0 %2360
    %2364 = vset.pattern.permute.xlu0 0
    %2365 = vperm.xlu0 %2364, %v1821
    %v2366 = vpop.permute.xlu0 %2365
    %2369 = vset.pattern.permute.xlu0 0
    %2370 = vperm.xlu0 %2369, %v1823
    %v2371 = vpop.permute.xlu0 %2370
    %2374 = vset.pattern.permute.xlu0 0
    %2375 = vperm.xlu0 %2374, %v1825
    %v2376 = vpop.permute.xlu0 %2375
    %2379 = vset.pattern.permute.xlu0 0
    %2380 = vperm.xlu0 %2379, %v1827
    %v2381 = vpop.permute.xlu0 %2380
    %2384 = vset.pattern.permute.xlu0 0
    %2385 = vperm.xlu0 %2384, %v1829
    %v2386 = vpop.permute.xlu0 %2385
    %2389 = vset.pattern.permute.xlu0 0
    %2390 = vperm.xlu0 %2389, %v1831
    %v2391 = vpop.permute.xlu0 %2390
    %2394 = vset.pattern.permute.xlu0 0
    %2395 = vperm.xlu0 %2394, %v1833
    %v2396 = vpop.permute.xlu0 %2395
    %2399 = vset.pattern.permute.xlu0 0
    %2400 = vperm.xlu0 %2399, %v1835
    %v2401 = vpop.permute.xlu0 %2400
    %2404 = vset.pattern.permute.xlu0 0
    %2405 = vperm.xlu0 %2404, %v1837
    %v2406 = vpop.permute.xlu0 %2405
    %2409 = vset.pattern.permute.xlu0 0
    %2410 = vperm.xlu0 %2409, %v1839
    %v2411 = vpop.permute.xlu0 %2410
    %2414 = vset.pattern.permute.xlu0 0
    %2415 = vperm.xlu0 %2414, %v1841
    %v2416 = vpop.permute.xlu0 %2415
    %2419 = vset.pattern.permute.xlu0 0
    %2420 = vperm.xlu0 %2419, %v1843
    %v2421 = vpop.permute.xlu0 %2420
    %2424 = vset.pattern.permute.xlu0 0
    %2425 = vperm.xlu0 %2424, %v1845
    %v2426 = vpop.permute.xlu0 %2425
    %2429 = vset.pattern.permute.xlu0 0
    %2430 = vperm.xlu0 %2429, %v1847
    %v2431 = vpop.permute.xlu0 %2430
    %2434 = vset.pattern.permute.xlu0 0
    %2435 = vperm.xlu0 %2434, %v1849
    %v2436 = vpop.permute.xlu0 %2435
    %2439 = vset.pattern.permute.xlu0 0
    %2440 = vperm.xlu0 %2439, %v1851
    %v2441 = vpop.permute.xlu0 %2440
    %2444 = vset.pattern.permute.xlu0 0
    %2445 = vperm.xlu0 %2444, %v1853
    %v2446 = vpop.permute.xlu0 %2445
    %2449 = vset.pattern.permute.xlu0 0
    %2450 = vperm.xlu0 %2449, %v1855
    %v2451 = vpop.permute.xlu0 %2450
    %2454 = vset.pattern.permute.xlu0 0
    %2455 = vperm.xlu0 %2454, %v1857
    %v2456 = vpop.permute.xlu0 %2455
    %2459 = vset.pattern.permute.xlu0 0
    %2460 = vperm.xlu0 %2459, %v1859
    %v2461 = vpop.permute.xlu0 %2460
    %2464 = vset.pattern.permute.xlu0 0
    %2465 = vperm.xlu0 %2464, %v1861
    %v2466 = vpop.permute.xlu0 %2465
    %2469 = vset.pattern.permute.xlu0 0
    %2470 = vperm.xlu0 %2469, %v1863
    %v2471 = vpop.permute.xlu0 %2470
    %2474 = vset.pattern.permute.xlu0 0
    %2475 = vperm.xlu0 %2474, %v1865
    %v2476 = vpop.permute.xlu0 %2475
    %2479 = vset.pattern.permute.xlu0 0
    %2480 = vperm.xlu0 %2479, %v1867
    %v2481 = vpop.permute.xlu0 %2480
    %2484 = vset.pattern.permute.xlu0 0
    %2485 = vperm.xlu0 %2484, %v1869
    %v2486 = vpop.permute.xlu0 %2485
    %2489 = vset.pattern.permute.xlu0 0
    %2490 = vperm.xlu0 %2489, %v1871
    %v2491 = vpop.permute.xlu0 %2490
    %2494 = vset.pattern.permute.xlu0 0
    %2495 = vperm.xlu0 %2494, %v1873
    %v2496 = vpop.permute.xlu0 %2495
    %2499 = vset.pattern.permute.xlu0 0
    %2500 = vperm.xlu0 %2499, %v1875
    %v2501 = vpop.permute.xlu0 %2500
    %2504 = vset.pattern.permute.xlu0 0
    %2505 = vperm.xlu0 %2504, %v1877
    %v2506 = vpop.permute.xlu0 %2505
    %2509 = vset.pattern.permute.xlu0 0
    %2510 = vperm.xlu0 %2509, %v1879
    %v2511 = vpop.permute.xlu0 %2510
    %2514 = vset.pattern.permute.xlu0 0
    %2515 = vperm.xlu0 %2514, %v1881
    %v2516 = vpop.permute.xlu0 %2515
    %2519 = vset.pattern.permute.xlu0 0
    %2520 = vperm.xlu0 %2519, %v1883
    %v2521 = vpop.permute.xlu0 %2520
    %2524 = vset.pattern.permute.xlu0 0
    %2525 = vperm.xlu0 %2524, %v1885
    %v2526 = vpop.permute.xlu0 %2525
    %2529 = vset.pattern.permute.xlu0 0
    %2530 = vperm.xlu0 %2529, %v1887
    %v2531 = vpop.permute.xlu0 %2530
    %2534 = vset.pattern.permute.xlu0 0
    %2535 = vperm.xlu0 %2534, %v1889
    %v2536 = vpop.permute.xlu0 %2535
    %2539 = vset.pattern.permute.xlu0 0
    %2540 = vperm.xlu0 %2539, %v1891
    %v2541 = vpop.permute.xlu0 %2540
    %2544 = vset.pattern.permute.xlu0 0
    %2545 = vperm.xlu0 %2544, %v1893
    %v2546 = vpop.permute.xlu0 %2545
    %2549 = vset.pattern.permute.xlu0 0
    %2550 = vperm.xlu0 %2549, %v1895
    %v2551 = vpop.permute.xlu0 %2550
    %2554 = vset.pattern.permute.xlu0 0
    %2555 = vperm.xlu0 %2554, %v1897
    %v2556 = vpop.permute.xlu0 %2555
    %2559 = vset.pattern.permute.xlu0 0
    %2560 = vperm.xlu0 %2559, %v1899
    %v2561 = vpop.permute.xlu0 %2560
    %2564 = vset.pattern.permute.xlu0 0
    %2565 = vperm.xlu0 %2564, %v1901
    %v2566 = vpop.permute.xlu0 %2565
    %2569 = vset.pattern.permute.xlu0 0
    %2570 = vperm.xlu0 %2569, %v1903
    %v2571 = vpop.permute.xlu0 %2570
    %2574 = vset.pattern.permute.xlu0 0
    %2575 = vperm.xlu0 %2574, %v1905
    %v2576 = vpop.permute.xlu0 %2575
    %2579 = vset.pattern.permute.xlu0 0
    %2580 = vperm.xlu0 %2579, %v1907
    %v2581 = vpop.permute.xlu0 %2580
    %2584 = vset.pattern.permute.xlu0 0
    %2585 = vperm.xlu0 %2584, %v1909
    %v2586 = vpop.permute.xlu0 %2585
    %2589 = vset.pattern.permute.xlu0 0
    %2590 = vperm.xlu0 %2589, %v1911
    %v2591 = vpop.permute.xlu0 %2590
    %2594 = vset.pattern.permute.xlu0 0
    %2595 = vperm.xlu0 %2594, %v1913
    %v2596 = vpop.permute.xlu0 %2595
    %2599 = vset.pattern.permute.xlu0 0
    %2600 = vperm.xlu0 %2599, %v1915
    %v2601 = vpop.permute.xlu0 %2600
    %2604 = vset.pattern.permute.xlu0 0
    %2605 = vperm.xlu0 %2604, %v1917
    %v2606 = vpop.permute.xlu0 %2605
    %2609 = vset.pattern.permute.xlu0 0
    %2610 = vperm.xlu0 %2609, %v1919
    %v2611 = vpop.permute.xlu0 %2610
    %2614 = vset.pattern.permute.xlu0 0
    %2615 = vperm.xlu0 %2614, %v1921
    %v2616 = vpop.permute.xlu0 %2615
    %2619 = vset.pattern.permute.xlu0 0
    %2620 = vperm.xlu0 %2619, %v1923
    %v2621 = vpop.permute.xlu0 %2620
    %2624 = vset.pattern.permute.xlu0 0
    %2625 = vperm.xlu0 %2624, %v1925
    %v2626 = vpop.permute.xlu0 %2625
    %2629 = vset.pattern.permute.xlu0 0
    %2630 = vperm.xlu0 %2629, %v1927
    %v2631 = vpop.permute.xlu0 %2630
    %2634 = vset.pattern.permute.xlu0 0
    %2635 = vperm.xlu0 %2634, %v1929
    %v2636 = vpop.permute.xlu0 %2635
    %2639 = vset.pattern.permute.xlu0 0
    %2640 = vperm.xlu0 %2639, %v1931
    %v2641 = vpop.permute.xlu0 %2640
    %2644 = vset.pattern.permute.xlu0 0
    %2645 = vperm.xlu0 %2644, %v1933
    %v2646 = vpop.permute.xlu0 %2645
    %2649 = vset.pattern.permute.xlu0 0
    %2650 = vperm.xlu0 %2649, %v1935
    %v2651 = vpop.permute.xlu0 %2650
    %2654 = vset.pattern.permute.xlu0 0
    %2655 = vperm.xlu0 %2654, %v1937
    %v2656 = vpop.permute.xlu0 %2655
    %2659 = vset.pattern.permute.xlu0 0
    %2660 = vperm.xlu0 %2659, %v1939
    %v2661 = vpop.permute.xlu0 %2660
    %2664 = vset.pattern.permute.xlu0 0
    %2665 = vperm.xlu0 %2664, %v1941
    %v2666 = vpop.permute.xlu0 %2665
    %2669 = vset.pattern.permute.xlu0 0
    %2670 = vperm.xlu0 %2669, %v1943
    %v2671 = vpop.permute.xlu0 %2670
    %2674 = vset.pattern.permute.xlu0 0
    %2675 = vperm.xlu0 %2674, %v1945
    %v2676 = vpop.permute.xlu0 %2675
    %2679 = vset.pattern.permute.xlu0 0
    %2680 = vperm.xlu0 %2679, %v1947
    %v2681 = vpop.permute.xlu0 %2680
    %2684 = vset.pattern.permute.xlu0 0
    %2685 = vperm.xlu0 %2684, %v1949
    %v2686 = vpop.permute.xlu0 %2685
    %2689 = vset.pattern.permute.xlu0 0
    %2690 = vperm.xlu0 %2689, %v1951
    %v2691 = vpop.permute.xlu0 %2690
    %2694 = vset.pattern.permute.xlu0 0
    %2695 = vperm.xlu0 %2694, %v1953
    %v2696 = vpop.permute.xlu0 %2695
    %2699 = vset.pattern.permute.xlu0 0
    %2700 = vperm.xlu0 %2699, %v1955
    %v2701 = vpop.permute.xlu0 %2700
    %2704 = vset.pattern.permute.xlu0 0
    %2705 = vperm.xlu0 %2704, %v1957
    %v2706 = vpop.permute.xlu0 %2705
    %2709 = vset.pattern.permute.xlu0 0
    %2710 = vperm.xlu0 %2709, %v1959
    %v2711 = vpop.permute.xlu0 %2710
    %2714 = vset.pattern.permute.xlu0 0
    %2715 = vperm.xlu0 %2714, %v1961
    %v2716 = vpop.permute.xlu0 %2715
    %2719 = vset.pattern.permute.xlu0 0
    %2720 = vperm.xlu0 %2719, %v1963
    %v2721 = vpop.permute.xlu0 %2720
    %2724 = vset.pattern.permute.xlu0 0
    %2725 = vperm.xlu0 %2724, %v1965
    %v2726 = vpop.permute.xlu0 %2725
    %2729 = vset.pattern.permute.xlu0 0
    %2730 = vperm.xlu0 %2729, %v1967
    %v2731 = vpop.permute.xlu0 %2730
    %2734 = vset.pattern.permute.xlu0 0
    %2735 = vperm.xlu0 %2734, %v1969
    %v2736 = vpop.permute.xlu0 %2735
    %2739 = vset.pattern.permute.xlu0 0
    %2740 = vperm.xlu0 %2739, %v1971
    %v2741 = vpop.permute.xlu0 %2740
    %2744 = vset.pattern.permute.xlu0 0
    %2745 = vperm.xlu0 %2744, %v1973
    %v2746 = vpop.permute.xlu0 %2745
    %2749 = vset.pattern.permute.xlu0 0
    %2750 = vperm.xlu0 %2749, %v1975
    %v2751 = vpop.permute.xlu0 %2750
    %2754 = vset.pattern.permute.xlu0 0
    %2755 = vperm.xlu0 %2754, %v1977
    %v2756 = vpop.permute.xlu0 %2755
    %2759 = vset.pattern.permute.xlu0 0
    %2760 = vperm.xlu0 %2759, %v1979
    %v2761 = vpop.permute.xlu0 %2760
    %2764 = vset.pattern.permute.xlu0 0
    %2765 = vperm.xlu0 %2764, %v1981
    %v2766 = vpop.permute.xlu0 %2765
    %2769 = vset.pattern.permute.xlu0 0
    %2770 = vperm.xlu0 %2769, %v1983
    %v2771 = vpop.permute.xlu0 %2770
    %2774 = vset.pattern.permute.xlu0 0
    %2775 = vperm.xlu0 %2774, %v1985
    %v2776 = vpop.permute.xlu0 %2775
    %2779 = vset.pattern.permute.xlu0 0
    %2780 = vperm.xlu0 %2779, %v1987
    %v2781 = vpop.permute.xlu0 %2780
    %2784 = vset.pattern.permute.xlu0 0
    %2785 = vperm.xlu0 %2784, %v1989
    %v2786 = vpop.permute.xlu0 %2785
    %2789 = vset.pattern.permute.xlu0 0
    %2790 = vperm.xlu0 %2789, %v1991
    %v2791 = vpop.permute.xlu0 %2790
    %2794 = vset.pattern.permute.xlu0 0
    %2795 = vperm.xlu0 %2794, %v1993
    %v2796 = vpop.permute.xlu0 %2795
    %2799 = vset.pattern.permute.xlu0 0
    %2800 = vperm.xlu0 %2799, %v1995
    %v2801 = vpop.permute.xlu0 %2800
    %2804 = vset.pattern.permute.xlu0 0
    %2805 = vperm.xlu0 %2804, %v1997
    %v2806 = vpop.permute.xlu0 %2805
    %2809 = vset.pattern.permute.xlu0 0
    %2810 = vperm.xlu0 %2809, %v1999
    %v2811 = vpop.permute.xlu0 %2810
    %2814 = vset.pattern.permute.xlu0 0
    %2815 = vperm.xlu0 %2814, %v2001
    %v2816 = vpop.permute.xlu0 %2815
    %2819 = vset.pattern.permute.xlu0 0
    %2820 = vperm.xlu0 %2819, %v2003
    %v2821 = vpop.permute.xlu0 %2820
    %2824 = vset.pattern.permute.xlu0 0
    %2825 = vperm.xlu0 %2824, %v2005
    %v2826 = vpop.permute.xlu0 %2825
    %2829 = vset.pattern.permute.xlu0 0
    %2830 = vperm.xlu0 %2829, %v2007
    %v2831 = vpop.permute.xlu0 %2830
    %2834 = vset.pattern.permute.xlu0 0
    %2835 = vperm.xlu0 %2834, %v2009
    %v2836 = vpop.permute.xlu0 %2835
    %2839 = vset.pattern.permute.xlu0 0
    %2840 = vperm.xlu0 %2839, %v2011
    %v2841 = vpop.permute.xlu0 %2840
    %2844 = vset.pattern.permute.xlu0 0
    %2845 = vperm.xlu0 %2844, %v2013
    %v2846 = vpop.permute.xlu0 %2845
    %2849 = vset.pattern.permute.xlu0 0
    %2850 = vperm.xlu0 %2849, %v2015
    %v2851 = vpop.permute.xlu0 %2850
    %2854 = vset.pattern.permute.xlu0 0
    %2855 = vperm.xlu0 %2854, %v2017
    %v2856 = vpop.permute.xlu0 %2855
    %v2858 = vmul.f32 %v2018, %v2261
    %v2859 = vmul.f32 %v2019, %v2261
    %v2860 = vmul.f32 %v2020, %v2266
    %v2861 = vmul.f32 %v2021, %v2266
    %v2862 = vmul.f32 %v2022, %v2271
    %v2863 = vmul.f32 %v2023, %v2271
    %v2864 = vmul.f32 %v2024, %v2276
    %v2865 = vmul.f32 %v2025, %v2276
    %v2866 = vmul.f32 %v2026, %v2281
    %v2867 = vmul.f32 %v2027, %v2281
    %v2868 = vmul.f32 %v2028, %v2286
    %v2869 = vmul.f32 %v2029, %v2286
    %v2870 = vmul.f32 %v2030, %v2291
    %v2871 = vmul.f32 %v2031, %v2291
    %v2872 = vmul.f32 %v2032, %v2296
    %v2873 = vmul.f32 %v2033, %v2296
    %v2874 = vmul.f32 %v2034, %v2301
    %v2875 = vmul.f32 %v2035, %v2301
    %v2876 = vmul.f32 %v2036, %v2306
    %v2877 = vmul.f32 %v2037, %v2306
    %v2878 = vmul.f32 %v2038, %v2311
    %v2879 = vmul.f32 %v2039, %v2311
    %v2880 = vmul.f32 %v2040, %v2316
    %v2881 = vmul.f32 %v2041, %v2316
    %v2882 = vmul.f32 %v2042, %v2321
    %v2883 = vmul.f32 %v2043, %v2321
    %v2884 = vmul.f32 %v2044, %v2326
    %v2885 = vmul.f32 %v2045, %v2326
    %v2886 = vmul.f32 %v2046, %v2331
    %v2887 = vmul.f32 %v2047, %v2331
    %v2888 = vmul.f32 %v2048, %v2336
    %v2889 = vmul.f32 %v2049, %v2336
    %v2890 = vmul.f32 %v2050, %v2341
    %v2891 = vmul.f32 %v2051, %v2341
    %v2892 = vmul.f32 %v2052, %v2346
    %v2893 = vmul.f32 %v2053, %v2346
    %v2894 = vmul.f32 %v2054, %v2351
    %v2895 = vmul.f32 %v2055, %v2351
    %v2896 = vmul.f32 %v2056, %v2356
    %v2897 = vmul.f32 %v2057, %v2356
    %v2898 = vmul.f32 %v2058, %v2361
    %v2899 = vmul.f32 %v2059, %v2361
    %v2900 = vmul.f32 %v2060, %v2366
    %v2901 = vmul.f32 %v2061, %v2366
    %v2902 = vmul.f32 %v2062, %v2371
    %v2903 = vmul.f32 %v2063, %v2371
    %v2904 = vmul.f32 %v2064, %v2376
    %v2905 = vmul.f32 %v2065, %v2376
    %v2906 = vmul.f32 %v2066, %v2381
    %v2907 = vmul.f32 %v2067, %v2381
    %v2908 = vmul.f32 %v2068, %v2386
    %v2909 = vmul.f32 %v2069, %v2386
    %v2910 = vmul.f32 %v2070, %v2391
    %v2911 = vmul.f32 %v2071, %v2391
    %v2912 = vmul.f32 %v2072, %v2396
    %v2913 = vmul.f32 %v2073, %v2396
    %v2914 = vmul.f32 %v2074, %v2401
    %v2915 = vmul.f32 %v2075, %v2401
    %v2916 = vmul.f32 %v2076, %v2406
    %v2917 = vmul.f32 %v2077, %v2406
    %v2918 = vmul.f32 %v2078, %v2411
    %v2919 = vmul.f32 %v2079, %v2411
    %v2920 = vmul.f32 %v2080, %v2416
    %v2921 = vmul.f32 %v2081, %v2416
    %v2922 = vmul.f32 %v2082, %v2421
    %v2923 = vmul.f32 %v2083, %v2421
    %v2924 = vmul.f32 %v2084, %v2426
    %v2925 = vmul.f32 %v2085, %v2426
    %v2926 = vmul.f32 %v2086, %v2431
    %v2927 = vmul.f32 %v2087, %v2431
    %v2928 = vmul.f32 %v2088, %v2436
    %v2929 = vmul.f32 %v2089, %v2436
    %v2930 = vmul.f32 %v2090, %v2441
    %v2931 = vmul.f32 %v2091, %v2441
    %v2932 = vmul.f32 %v2092, %v2446
    %v2933 = vmul.f32 %v2093, %v2446
    %v2934 = vmul.f32 %v2094, %v2451
    %v2935 = vmul.f32 %v2095, %v2451
    %v2936 = vmul.f32 %v2096, %v2456
    %v2937 = vmul.f32 %v2097, %v2456
    %v2938 = vmul.f32 %v2098, %v2461
    %v2939 = vmul.f32 %v2099, %v2461
    %v2940 = vmul.f32 %v2100, %v2466
    %v2941 = vmul.f32 %v2101, %v2466
    %v2942 = vmul.f32 %v2102, %v2471
    %v2943 = vmul.f32 %v2103, %v2471
    %v2944 = vmul.f32 %v2104, %v2476
    %v2945 = vmul.f32 %v2105, %v2476
    %v2946 = vmul.f32 %v2106, %v2481
    %v2947 = vmul.f32 %v2107, %v2481
    %v2948 = vmul.f32 %v2108, %v2486
    %v2949 = vmul.f32 %v2109, %v2486
    %v2950 = vmul.f32 %v2110, %v2491
    %v2951 = vmul.f32 %v2111, %v2491
    %v2952 = vmul.f32 %v2112, %v2496
    %v2953 = vmul.f32 %v2113, %v2496
    %v2954 = vmul.f32 %v2114, %v2501
    %v2955 = vmul.f32 %v2115, %v2501
    %v2956 = vmul.f32 %v2116, %v2506
    %v2957 = vmul.f32 %v2117, %v2506
    %v2958 = vmul.f32 %v2118, %v2511
    %v2959 = vmul.f32 %v2119, %v2511
    %v2960 = vmul.f32 %v2120, %v2516
    %v2961 = vmul.f32 %v2121, %v2516
    %v2962 = vmul.f32 %v2122, %v2521
    %v2963 = vmul.f32 %v2123, %v2521
    %v2964 = vmul.f32 %v2124, %v2526
    %v2965 = vmul.f32 %v2125, %v2526
    %v2966 = vmul.f32 %v2126, %v2531
    %v2967 = vmul.f32 %v2127, %v2531
    %v2968 = vmul.f32 %v2128, %v2536
    %v2969 = vmul.f32 %v2129, %v2536
    %v2970 = vmul.f32 %v2130, %v2541
    %v2971 = vmul.f32 %v2131, %v2541
    %v2972 = vmul.f32 %v2132, %v2546
    %v2973 = vmul.f32 %v2133, %v2546
    %v2974 = vmul.f32 %v2134, %v2551
    %v2975 = vmul.f32 %v2135, %v2551
    %v2976 = vmul.f32 %v2136, %v2556
    %v2977 = vmul.f32 %v2137, %v2556
    %v2978 = vmul.f32 %v2138, %v2561
    %v2979 = vmul.f32 %v2139, %v2561
    %v2980 = vmul.f32 %v2140, %v2566
    %v2981 = vmul.f32 %v2141, %v2566
    %v2982 = vmul.f32 %v2142, %v2571
    %v2983 = vmul.f32 %v2143, %v2571
    %v2984 = vmul.f32 %v2144, %v2576
    %v2985 = vmul.f32 %v2145, %v2576
    %v2986 = vmul.f32 %v2146, %v2581
    %v2987 = vmul.f32 %v2147, %v2581
    %v2988 = vmul.f32 %v2148, %v2586
    %v2989 = vmul.f32 %v2149, %v2586
    %v2990 = vmul.f32 %v2150, %v2591
    %v2991 = vmul.f32 %v2151, %v2591
    %v2992 = vmul.f32 %v2152, %v2596
    %v2993 = vmul.f32 %v2153, %v2596
    %v2994 = vmul.f32 %v2154, %v2601
    %v2995 = vmul.f32 %v2155, %v2601
    %v2996 = vmul.f32 %v2156, %v2606
    %v2997 = vmul.f32 %v2157, %v2606
    %v2998 = vmul.f32 %v2158, %v2611
    %v2999 = vmul.f32 %v2159, %v2611
    %v3000 = vmul.f32 %v2160, %v2616
    %v3001 = vmul.f32 %v2161, %v2616
    %v3002 = vmul.f32 %v2162, %v2621
    %v3003 = vmul.f32 %v2163, %v2621
    %v3004 = vmul.f32 %v2164, %v2626
    %v3005 = vmul.f32 %v2165, %v2626
    %v3006 = vmul.f32 %v2166, %v2631
    %v3007 = vmul.f32 %v2167, %v2631
    %v3008 = vmul.f32 %v2168, %v2636
    %v3009 = vmul.f32 %v2169, %v2636
    %v3010 = vmul.f32 %v2170, %v2641
    %v3011 = vmul.f32 %v2171, %v2641
    %v3012 = vmul.f32 %v2172, %v2646
    %v3013 = vmul.f32 %v2173, %v2646
    %v3014 = vmul.f32 %v2174, %v2651
    %v3015 = vmul.f32 %v2175, %v2651
    %v3016 = vmul.f32 %v2176, %v2656
    %v3017 = vmul.f32 %v2177, %v2656
    %v3018 = vmul.f32 %v2178, %v2661
    %v3019 = vmul.f32 %v2179, %v2661
    %v3020 = vmul.f32 %v2180, %v2666
    %v3021 = vmul.f32 %v2181, %v2666
    %v3022 = vmul.f32 %v2182, %v2671
    %v3023 = vmul.f32 %v2183, %v2671
    %v3024 = vmul.f32 %v2184, %v2676
    %v3025 = vmul.f32 %v2185, %v2676
    %v3026 = vmul.f32 %v2186, %v2681
    %v3027 = vmul.f32 %v2187, %v2681
    %v3028 = vmul.f32 %v2188, %v2686
    %v3029 = vmul.f32 %v2189, %v2686
    %v3030 = vmul.f32 %v2190, %v2691
    %v3031 = vmul.f32 %v2191, %v2691
    %v3032 = vmul.f32 %v2192, %v2696
    %v3033 = vmul.f32 %v2193, %v2696
    %v3034 = vmul.f32 %v2194, %v2701
    %v3035 = vmul.f32 %v2195, %v2701
    %v3036 = vmul.f32 %v2196, %v2706
    %v3037 = vmul.f32 %v2197, %v2706
    %v3038 = vmul.f32 %v2198, %v2711
    %v3039 = vmul.f32 %v2199, %v2711
    %v3040 = vmul.f32 %v2200, %v2716
    %v3041 = vmul.f32 %v2201, %v2716
    %v3042 = vmul.f32 %v2202, %v2721
    %v3043 = vmul.f32 %v2203, %v2721
    %v3044 = vmul.f32 %v2204, %v2726
    %v3045 = vmul.f32 %v2205, %v2726
    %v3046 = vmul.f32 %v2206, %v2731
    %v3047 = vmul.f32 %v2207, %v2731
    %v3048 = vmul.f32 %v2208, %v2736
    %v3049 = vmul.f32 %v2209, %v2736
    %v3050 = vmul.f32 %v2210, %v2741
    %v3051 = vmul.f32 %v2211, %v2741
    %v3052 = vmul.f32 %v2212, %v2746
    %v3053 = vmul.f32 %v2213, %v2746
    %v3054 = vmul.f32 %v2214, %v2751
    %v3055 = vmul.f32 %v2215, %v2751
    %v3056 = vmul.f32 %v2216, %v2756
    %v3057 = vmul.f32 %v2217, %v2756
    %v3058 = vmul.f32 %v2218, %v2761
    %v3059 = vmul.f32 %v2219, %v2761
    %v3060 = vmul.f32 %v2220, %v2766
    %v3061 = vmul.f32 %v2221, %v2766
    %v3062 = vmul.f32 %v2222, %v2771
    %v3063 = vmul.f32 %v2223, %v2771
    %v3064 = vmul.f32 %v2224, %v2776
    %v3065 = vmul.f32 %v2225, %v2776
    %v3066 = vmul.f32 %v2226, %v2781
    %v3067 = vmul.f32 %v2227, %v2781
    %v3068 = vmul.f32 %v2228, %v2786
    %v3069 = vmul.f32 %v2229, %v2786
    %v3070 = vmul.f32 %v2230, %v2791
    %v3071 = vmul.f32 %v2231, %v2791
    %v3072 = vmul.f32 %v2232, %v2796
    %v3073 = vmul.f32 %v2233, %v2796
    %v3074 = vmul.f32 %v2234, %v2801
    %v3075 = vmul.f32 %v2235, %v2801
    %v3076 = vmul.f32 %v2236, %v2806
    %v3077 = vmul.f32 %v2237, %v2806
    %v3078 = vmul.f32 %v2238, %v2811
    %v3079 = vmul.f32 %v2239, %v2811
    %v3080 = vmul.f32 %v2240, %v2816
    %v3081 = vmul.f32 %v2241, %v2816
    %v3082 = vmul.f32 %v2242, %v2821
    %v3083 = vmul.f32 %v2243, %v2821
    %v3084 = vmul.f32 %v2244, %v2826
    %v3085 = vmul.f32 %v2245, %v2826
    %v3086 = vmul.f32 %v2246, %v2831
    %v3087 = vmul.f32 %v2247, %v2831
    %v3088 = vmul.f32 %v2248, %v2836
    %v3089 = vmul.f32 %v2249, %v2836
    %v3090 = vmul.f32 %v2250, %v2841
    %v3091 = vmul.f32 %v2251, %v2841
    %v3092 = vmul.f32 %v2252, %v2846
    %v3093 = vmul.f32 %v2253, %v2846
    %v3094 = vmul.f32 %v2254, %v2851
    %v3095 = vmul.f32 %v2255, %v2851
    %v3096 = vmul.f32 %v2256, %v2856
    %v3097 = vmul.f32 %v2257, %v2856
    %v3098 = vld [vmem:[%s4] sm:$0xff]
    %v3099 = vld [vmem:[%s4 + $0x8] sm:$0xff]
    %v3100 = vld [vmem:[%s4 + $0x10] sm:$0xff]
    %v3101 = vld [vmem:[%s4 + $0x18] sm:$0xff]
    %v3102 = vld [vmem:[%s4 + $0x20] sm:$0xff]
    %v3103 = vld [vmem:[%s4 + $0x28] sm:$0xff]
    %v3104 = vld [vmem:[%s4 + $0x30] sm:$0xff]
    %v3105 = vld [vmem:[%s4 + $0x38] sm:$0xff]
    %v3106 = vld [vmem:[%s4 + $0x40] sm:$0xff]
    %v3107 = vld [vmem:[%s4 + $0x48] sm:$0xff]
    %v3108 = vld [vmem:[%s4 + $0x50] sm:$0xff]
    %v3109 = vld [vmem:[%s4 + $0x58] sm:$0xff]
    %v3110 = vld [vmem:[%s4 + $0x60] sm:$0xff]
    %v3111 = vld [vmem:[%s4 + $0x68] sm:$0xff]
    %v3112 = vld [vmem:[%s4 + $0x70] sm:$0xff]
    %v3113 = vld [vmem:[%s4 + $0x78] sm:$0xff]
    %v3114 = vld [vmem:[%s4 + $0x80] sm:$0xff]
    %v3115 = vld [vmem:[%s4 + $0x88] sm:$0xff]
    %v3116 = vld [vmem:[%s4 + $0x90] sm:$0xff]
    %v3117 = vld [vmem:[%s4 + $0x98] sm:$0xff]
    %v3118 = vld [vmem:[%s4 + $0xa0] sm:$0xff]
    %v3119 = vld [vmem:[%s4 + $0xa8] sm:$0xff]
    %v3120 = vld [vmem:[%s4 + $0xb0] sm:$0xff]
    %v3121 = vld [vmem:[%s4 + $0xb8] sm:$0xff]
    %v3122 = vld [vmem:[%s4 + $0xc0] sm:$0xff]
    %v3123 = vld [vmem:[%s4 + $0xc8] sm:$0xff]
    %v3124 = vld [vmem:[%s4 + $0xd0] sm:$0xff]
    %v3125 = vld [vmem:[%s4 + $0xd8] sm:$0xff]
    %v3126 = vld [vmem:[%s4 + $0xe0] sm:$0xff]
    %v3127 = vld [vmem:[%s4 + $0xe8] sm:$0xff]
    %v3128 = vld [vmem:[%s4 + $0xf0] sm:$0xff]
    %v3129 = vld [vmem:[%s4 + $0xf8] sm:$0xff]
    %v3130 = vld [vmem:[%s4 + $0x100] sm:$0xff]
    %v3131 = vld [vmem:[%s4 + $0x108] sm:$0xff]
    %v3132 = vld [vmem:[%s4 + $0x110] sm:$0xff]
    %v3133 = vld [vmem:[%s4 + $0x118] sm:$0xff]
    %v3134 = vld [vmem:[%s4 + $0x120] sm:$0xff]
    %v3135 = vld [vmem:[%s4 + $0x128] sm:$0xff]
    %v3136 = vld [vmem:[%s4 + $0x130] sm:$0xff]
    %v3137 = vld [vmem:[%s4 + $0x138] sm:$0xff]
    %v3138 = vld [vmem:[%s4 + $0x140] sm:$0xff]
    %v3139 = vld [vmem:[%s4 + $0x148] sm:$0xff]
    %v3140 = vld [vmem:[%s4 + $0x150] sm:$0xff]
    %v3141 = vld [vmem:[%s4 + $0x158] sm:$0xff]
    %v3142 = vld [vmem:[%s4 + $0x160] sm:$0xff]
    %v3143 = vld [vmem:[%s4 + $0x168] sm:$0xff]
    %v3144 = vld [vmem:[%s4 + $0x170] sm:$0xff]
    %v3145 = vld [vmem:[%s4 + $0x178] sm:$0xff]
    %v3146 = vld [vmem:[%s4 + $0x180] sm:$0xff]
    %v3147 = vld [vmem:[%s4 + $0x188] sm:$0xff]
    %v3148 = vld [vmem:[%s4 + $0x190] sm:$0xff]
    %v3149 = vld [vmem:[%s4 + $0x198] sm:$0xff]
    %v3150 = vld [vmem:[%s4 + $0x1a0] sm:$0xff]
    %v3151 = vld [vmem:[%s4 + $0x1a8] sm:$0xff]
    %v3152 = vld [vmem:[%s4 + $0x1b0] sm:$0xff]
    %v3153 = vld [vmem:[%s4 + $0x1b8] sm:$0xff]
    %v3154 = vld [vmem:[%s4 + $0x1c0] sm:$0xff]
    %v3155 = vld [vmem:[%s4 + $0x1c8] sm:$0xff]
    %v3156 = vld [vmem:[%s4 + $0x1d0] sm:$0xff]
    %v3157 = vld [vmem:[%s4 + $0x1d8] sm:$0xff]
    %v3158 = vld [vmem:[%s4 + $0x1e0] sm:$0xff]
    %v3159 = vld [vmem:[%s4 + $0x1e8] sm:$0xff]
    %v3160 = vld [vmem:[%s4 + $0x1f0] sm:$0xff]
    %v3161 = vld [vmem:[%s4 + $0x1f8] sm:$0xff]
    %v3162 = vld [vmem:[%s4 + $0x200] sm:$0xff]
    %v3163 = vld [vmem:[%s4 + $0x208] sm:$0xff]
    %v3164 = vld [vmem:[%s4 + $0x210] sm:$0xff]
    %v3165 = vld [vmem:[%s4 + $0x218] sm:$0xff]
    %v3166 = vld [vmem:[%s4 + $0x220] sm:$0xff]
    %v3167 = vld [vmem:[%s4 + $0x228] sm:$0xff]
    %v3168 = vld [vmem:[%s4 + $0x230] sm:$0xff]
    %v3169 = vld [vmem:[%s4 + $0x238] sm:$0xff]
    %v3170 = vld [vmem:[%s4 + $0x240] sm:$0xff]
    %v3171 = vld [vmem:[%s4 + $0x248] sm:$0xff]
    %v3172 = vld [vmem:[%s4 + $0x250] sm:$0xff]
    %v3173 = vld [vmem:[%s4 + $0x258] sm:$0xff]
    %v3174 = vld [vmem:[%s4 + $0x260] sm:$0xff]
    %v3175 = vld [vmem:[%s4 + $0x268] sm:$0xff]
    %v3176 = vld [vmem:[%s4 + $0x270] sm:$0xff]
    %v3177 = vld [vmem:[%s4 + $0x278] sm:$0xff]
    %v3178 = vld [vmem:[%s4 + $0x280] sm:$0xff]
    %v3179 = vld [vmem:[%s4 + $0x288] sm:$0xff]
    %v3180 = vld [vmem:[%s4 + $0x290] sm:$0xff]
    %v3181 = vld [vmem:[%s4 + $0x298] sm:$0xff]
    %v3182 = vld [vmem:[%s4 + $0x2a0] sm:$0xff]
    %v3183 = vld [vmem:[%s4 + $0x2a8] sm:$0xff]
    %v3184 = vld [vmem:[%s4 + $0x2b0] sm:$0xff]
    %v3185 = vld [vmem:[%s4 + $0x2b8] sm:$0xff]
    %v3186 = vld [vmem:[%s4 + $0x2c0] sm:$0xff]
    %v3187 = vld [vmem:[%s4 + $0x2c8] sm:$0xff]
    %v3188 = vld [vmem:[%s4 + $0x2d0] sm:$0xff]
    %v3189 = vld [vmem:[%s4 + $0x2d8] sm:$0xff]
    %v3190 = vld [vmem:[%s4 + $0x2e0] sm:$0xff]
    %v3191 = vld [vmem:[%s4 + $0x2e8] sm:$0xff]
    %v3192 = vld [vmem:[%s4 + $0x2f0] sm:$0xff]
    %v3193 = vld [vmem:[%s4 + $0x2f8] sm:$0xff]
    %v3194 = vld [vmem:[%s4 + $0x300] sm:$0xff]
    %v3195 = vld [vmem:[%s4 + $0x308] sm:$0xff]
    %v3196 = vld [vmem:[%s4 + $0x310] sm:$0xff]
    %v3197 = vld [vmem:[%s4 + $0x318] sm:$0xff]
    %v3198 = vld [vmem:[%s4 + $0x320] sm:$0xff]
    %v3199 = vld [vmem:[%s4 + $0x328] sm:$0xff]
    %v3200 = vld [vmem:[%s4 + $0x330] sm:$0xff]
    %v3201 = vld [vmem:[%s4 + $0x338] sm:$0xff]
    %v3202 = vld [vmem:[%s4 + $0x340] sm:$0xff]
    %v3203 = vld [vmem:[%s4 + $0x348] sm:$0xff]
    %v3204 = vld [vmem:[%s4 + $0x350] sm:$0xff]
    %v3205 = vld [vmem:[%s4 + $0x358] sm:$0xff]
    %v3206 = vld [vmem:[%s4 + $0x360] sm:$0xff]
    %v3207 = vld [vmem:[%s4 + $0x368] sm:$0xff]
    %v3208 = vld [vmem:[%s4 + $0x370] sm:$0xff]
    %v3209 = vld [vmem:[%s4 + $0x378] sm:$0xff]
    %v3210 = vld [vmem:[%s4 + $0x380] sm:$0xff]
    %v3211 = vld [vmem:[%s4 + $0x388] sm:$0xff]
    %v3212 = vld [vmem:[%s4 + $0x390] sm:$0xff]
    %v3213 = vld [vmem:[%s4 + $0x398] sm:$0xff]
    %v3214 = vld [vmem:[%s4 + $0x3a0] sm:$0xff]
    %v3215 = vld [vmem:[%s4 + $0x3a8] sm:$0xff]
    %v3216 = vld [vmem:[%s4 + $0x3b0] sm:$0xff]
    %v3217 = vld [vmem:[%s4 + $0x3b8] sm:$0xff]
    %v3218 = vld [vmem:[%s4 + $0x3c0] sm:$0xff]
    %v3219 = vld [vmem:[%s4 + $0x3c8] sm:$0xff]
    %v3220 = vld [vmem:[%s4 + $0x3d0] sm:$0xff]
    %v3221 = vld [vmem:[%s4 + $0x3d8] sm:$0xff]
    %v3222 = vld [vmem:[%s4 + $0x3e0] sm:$0xff]
    %v3223 = vld [vmem:[%s4 + $0x3e8] sm:$0xff]
    %v3224 = vld [vmem:[%s4 + $0x3f0] sm:$0xff]
    %v3225 = vld [vmem:[%s4 + $0x3f8] sm:$0xff]
    %v3226 = vld [vmem:[%s4 + $0x400] sm:$0xff]
    %v3227 = vld [vmem:[%s4 + $0x408] sm:$0xff]
    %v3228 = vld [vmem:[%s4 + $0x410] sm:$0xff]
    %v3229 = vld [vmem:[%s4 + $0x418] sm:$0xff]
    %v3230 = vld [vmem:[%s4 + $0x420] sm:$0xff]
    %v3231 = vld [vmem:[%s4 + $0x428] sm:$0xff]
    %v3232 = vld [vmem:[%s4 + $0x430] sm:$0xff]
    %v3233 = vld [vmem:[%s4 + $0x438] sm:$0xff]
    %v3234 = vld [vmem:[%s4 + $0x440] sm:$0xff]
    %v3235 = vld [vmem:[%s4 + $0x448] sm:$0xff]
    %v3236 = vld [vmem:[%s4 + $0x450] sm:$0xff]
    %v3237 = vld [vmem:[%s4 + $0x458] sm:$0xff]
    %v3238 = vld [vmem:[%s4 + $0x460] sm:$0xff]
    %v3239 = vld [vmem:[%s4 + $0x468] sm:$0xff]
    %v3240 = vld [vmem:[%s4 + $0x470] sm:$0xff]
    %v3241 = vld [vmem:[%s4 + $0x478] sm:$0xff]
    %v3242 = vld [vmem:[%s4 + $0x480] sm:$0xff]
    %v3243 = vld [vmem:[%s4 + $0x488] sm:$0xff]
    %v3244 = vld [vmem:[%s4 + $0x490] sm:$0xff]
    %v3245 = vld [vmem:[%s4 + $0x498] sm:$0xff]
    %v3246 = vld [vmem:[%s4 + $0x4a0] sm:$0xff]
    %v3247 = vld [vmem:[%s4 + $0x4a8] sm:$0xff]
    %v3248 = vld [vmem:[%s4 + $0x4b0] sm:$0xff]
    %v3249 = vld [vmem:[%s4 + $0x4b8] sm:$0xff]
    %v3250 = vld [vmem:[%s4 + $0x4c0] sm:$0xff]
    %v3251 = vld [vmem:[%s4 + $0x4c8] sm:$0xff]
    %v3252 = vld [vmem:[%s4 + $0x4d0] sm:$0xff]
    %v3253 = vld [vmem:[%s4 + $0x4d8] sm:$0xff]
    %v3254 = vld [vmem:[%s4 + $0x4e0] sm:$0xff]
    %v3255 = vld [vmem:[%s4 + $0x4e8] sm:$0xff]
    %v3256 = vld [vmem:[%s4 + $0x4f0] sm:$0xff]
    %v3257 = vld [vmem:[%s4 + $0x4f8] sm:$0xff]
    %vm3258 = vcmask 523264
    %v3260 = vsel %vm3258, %v3105, 0
    %v3263 = vsel %vm3258, %v3113, 0
    %v3266 = vsel %vm3258, %v3121, 0
    %v3269 = vsel %vm3258, %v3129, 0
    %v3272 = vsel %vm3258, %v3137, 0
    %v3275 = vsel %vm3258, %v3145, 0
    %v3278 = vsel %vm3258, %v3153, 0
    %v3281 = vsel %vm3258, %v3161, 0
    %v3284 = vsel %vm3258, %v3169, 0
    %v3287 = vsel %vm3258, %v3177, 0
    %v3290 = vsel %vm3258, %v3185, 0
    %v3293 = vsel %vm3258, %v3193, 0
    %v3296 = vsel %vm3258, %v3201, 0
    %v3299 = vsel %vm3258, %v3209, 0
    %v3302 = vsel %vm3258, %v3217, 0
    %v3305 = vsel %vm3258, %v3225, 0
    %v3308 = vsel %vm3258, %v3233, 0
    %v3311 = vsel %vm3258, %v3241, 0
    %v3314 = vsel %vm3258, %v3249, 0
    %v3317 = vsel %vm3258, %v3257, 0
    %3319 = vmatprep.subr.mxu0 %v2859
    %3320 = vmatpush1.msra.mxu0 %v2858
    %3321 = vmatprep.subr.mxu0 %v2861
    %3322 = vmatpush1.msra.mxu0 %v2860
    %3323 = vmatprep.subr.mxu0 %v2863
    %3324 = vmatpush1.msra.mxu0 %v2862
    %3325 = vmatprep.subr.mxu0 %v2865
    %3326 = vmatpush1.msra.mxu0 %v2864
    %3327 = vmatprep.subr.mxu0 %v2867
    %3328 = vmatpush1.msra.mxu0 %v2866
    %3329 = vmatprep.subr.mxu0 %v2869
    %3330 = vmatpush1.msra.mxu0 %v2868
    %3331 = vmatprep.subr.mxu0 %v2871
    %3332 = vmatpush1.msra.mxu0 %v2870
    %3333 = vmatprep.subr.mxu0 %v2873
    %3334 = vmatpush1.msra.mxu0 %v2872
    %3335 = vmatprep.subr.mxu0 %v2875
    %3336 = vmatpush1.msra.mxu0 %v2874
    %3337 = vmatprep.subr.mxu0 %v2877
    %3338 = vmatpush1.msra.mxu0 %v2876
    %3339 = vmatprep.subr.mxu0 %v2879
    %3340 = vmatpush1.msra.mxu0 %v2878
    %3341 = vmatprep.subr.mxu0 %v2881
    %3342 = vmatpush1.msra.mxu0 %v2880
    %3343 = vmatprep.subr.mxu0 %v2883
    %3344 = vmatpush1.msra.mxu0 %v2882
    %3345 = vmatprep.subr.mxu0 %v2885
    %3346 = vmatpush1.msra.mxu0 %v2884
    %3347 = vmatprep.subr.mxu0 %v2887
    %3348 = vmatpush1.msra.mxu0 %v2886
    %3349 = vmatprep.subr.mxu0 %v2889
    %3350 = vmatpush1.msra.mxu0 %v2888
    %3351 = vmatprep.subr.mxu0 %v2891
    %3352 = vmatpush1.msra.mxu0 %v2890
    %3353 = vmatprep.subr.mxu0 %v2893
    %3354 = vmatpush1.msra.mxu0 %v2892
    %3355 = vmatprep.subr.mxu0 %v2895
    %3356 = vmatpush1.msra.mxu0 %v2894
    %3357 = vmatprep.subr.mxu0 %v2897
    %3358 = vmatpush1.msra.mxu0 %v2896
    %3359 = vmatprep.subr.mxu0 %v2899
    %3360 = vmatpush1.msra.mxu0 %v2898
    %3361 = vmatprep.subr.mxu0 %v2901
    %3362 = vmatpush1.msra.mxu0 %v2900
    %3363 = vmatprep.subr.mxu0 %v2903
    %3364 = vmatpush1.msra.mxu0 %v2902
    %3365 = vmatprep.subr.mxu0 %v2905
    %3366 = vmatpush1.msra.mxu0 %v2904
    %3367 = vmatprep.subr.mxu0 %v2907
    %3368 = vmatpush1.msra.mxu0 %v2906
    %3369 = vmatprep.subr.mxu0 %v2909
    %3370 = vmatpush1.msra.mxu0 %v2908
    %3371 = vmatprep.subr.mxu0 %v2911
    %3372 = vmatpush1.msra.mxu0 %v2910
    %3373 = vmatprep.subr.mxu0 %v2913
    %3374 = vmatpush1.msra.mxu0 %v2912
    %3375 = vmatprep.subr.mxu0 %v2915
    %3376 = vmatpush1.msra.mxu0 %v2914
    %3377 = vmatprep.subr.mxu0 %v2917
    %3378 = vmatpush1.msra.mxu0 %v2916
    %3379 = vmatprep.subr.mxu0 %v2919
    %3380 = vmatpush1.msra.mxu0 %v2918
    %3381 = vmatprep.subr.mxu0 %v2921
    %3382 = vmatpush1.msra.mxu0 %v2920
    %3383 = vmatprep.mubr.f32.mxu0 %v3099
    %3384 = vmatmul.mubr.f32.gmra.mrb[0].mxu0 %v3098
    %v3385 = vpop.f32.mrb[0].mxu0
    %v3386 = vadd.f32 0.0, %v3385
    %v3387 = vpop.f32.mrb[0].mxu0
    %v3388 = vadd.f32 0.0, %v3387
    %3389 = vmatprep.mubr.f32.mxu0 %v3107
    %3390 = vmatmul.mubr.f32.gmra.mrb[0].mxu0 %v3106
    %v3391 = vpop.f32.mrb[0].mxu0
    %v3392 = vadd.f32 0.0, %v3391
    %v3393 = vpop.f32.mrb[0].mxu0
    %v3394 = vadd.f32 0.0, %v3393
    %3395 = vmatprep.mubr.f32.mxu0 %v3115
    %3396 = vmatmul.mubr.f32.gmra.mrb[0].mxu0 %v3114
    %v3397 = vpop.f32.mrb[0].mxu0
    %v3398 = vadd.f32 0.0, %v3397
    %v3399 = vpop.f32.mrb[0].mxu0
    %v3400 = vadd.f32 0.0, %v3399
    %3401 = vmatprep.mubr.f32.mxu0 %v3123
    %3402 = vmatmul.mubr.f32.gmra.mrb[0].mxu0 %v3122
    %v3403 = vpop.f32.mrb[0].mxu0
    %v3404 = vadd.f32 0.0, %v3403
    %v3405 = vpop.f32.mrb[0].mxu0
    %v3406 = vadd.f32 0.0, %v3405
    %3407 = vmatprep.mubr.f32.mxu0 %v3131
    %3408 = vmatmul.mubr.f32.gmra.mrb[0].mxu0 %v3130
    %v3409 = vpop.f32.mrb[0].mxu0
    %v3410 = vadd.f32 0.0, %v3409
    %v3411 = vpop.f32.mrb[0].mxu0
    %v3412 = vadd.f32 0.0, %v3411
    %3413 = vmatprep.mubr.f32.mxu0 %v3139
    %3414 = vmatmul.mubr.f32.gmra.mrb[0].mxu0 %v3138
    %v3415 = vpop.f32.mrb[0].mxu0
    %v3416 = vadd.f32 0.0, %v3415
    %v3417 = vpop.f32.mrb[0].mxu0
    %v3418 = vadd.f32 0.0, %v3417
    %3419 = vmatprep.mubr.f32.mxu0 %v3147
    %3420 = vmatmul.mubr.f32.gmra.mrb[0].mxu0 %v3146
    %v3421 = vpop.f32.mrb[0].mxu0
    %v3422 = vadd.f32 0.0, %v3421
    %v3423 = vpop.f32.mrb[0].mxu0
    %v3424 = vadd.f32 0.0, %v3423
    %3425 = vmatprep.mubr.f32.mxu0 %v3155
    %3426 = vmatmul.mubr.f32.gmra.mrb[0].mxu0 %v3154
    %v3427 = vpop.f32.mrb[0].mxu0
    %v3428 = vadd.f32 0.0, %v3427
    %v3429 = vpop.f32.mrb[0].mxu0
    %v3430 = vadd.f32 0.0, %v3429
    %3431 = vmatprep.mubr.f32.mxu0 %v3163
    %3432 = vmatmul.mubr.f32.gmra.mrb[0].mxu0 %v3162
    %v3433 = vpop.f32.mrb[0].mxu0
    %v3434 = vadd.f32 0.0, %v3433
    %v3435 = vpop.f32.mrb[0].mxu0
    %v3436 = vadd.f32 0.0, %v3435
    %3437 = vmatprep.mubr.f32.mxu0 %v3171
    %3438 = vmatmul.mubr.f32.gmra.mrb[0].mxu0 %v3170
    %v3439 = vpop.f32.mrb[0].mxu0
    %v3440 = vadd.f32 0.0, %v3439
    %v3441 = vpop.f32.mrb[0].mxu0
    %v3442 = vadd.f32 0.0, %v3441
    %3443 = vmatprep.mubr.f32.mxu0 %v3179
    %3444 = vmatmul.mubr.f32.gmra.mrb[0].mxu0 %v3178
    %v3445 = vpop.f32.mrb[0].mxu0
    %v3446 = vadd.f32 0.0, %v3445
    %v3447 = vpop.f32.mrb[0].mxu0
    %v3448 = vadd.f32 0.0, %v3447
    %3449 = vmatprep.mubr.f32.mxu0 %v3187
    %3450 = vmatmul.mubr.f32.gmra.mrb[0].mxu0 %v3186
    %v3451 = vpop.f32.mrb[0].mxu0
    %v3452 = vadd.f32 0.0, %v3451
    %v3453 = vpop.f32.mrb[0].mxu0
    %v3454 = vadd.f32 0.0, %v3453
    %3455 = vmatprep.mubr.f32.mxu0 %v3195
    %3456 = vmatmul.mubr.f32.gmra.mrb[0].mxu0 %v3194
    %v3457 = vpop.f32.mrb[0].mxu0
    %v3458 = vadd.f32 0.0, %v3457
    %v3459 = vpop.f32.mrb[0].mxu0
    %v3460 = vadd.f32 0.0, %v3459
    %3461 = vmatprep.mubr.f32.mxu0 %v3203
    %3462 = vmatmul.mubr.f32.gmra.mrb[0].mxu0 %v3202
    %v3463 = vpop.f32.mrb[0].mxu0
    %v3464 = vadd.f32 0.0, %v3463
    %v3465 = vpop.f32.mrb[0].mxu0
    %v3466 = vadd.f32 0.0, %v3465
    %3467 = vmatprep.mubr.f32.mxu0 %v3211
    %3468 = vmatmul.mubr.f32.gmra.mrb[0].mxu0 %v3210
    %v3469 = vpop.f32.mrb[0].mxu0
    %v3470 = vadd.f32 0.0, %v3469
    %v3471 = vpop.f32.mrb[0].mxu0
    %v3472 = vadd.f32 0.0, %v3471
    %3473 = vmatprep.mubr.f32.mxu0 %v3219
    %3474 = vmatmul.mubr.f32.gmra.mrb[0].mxu0 %v3218
    %v3475 = vpop.f32.mrb[0].mxu0
    %v3476 = vadd.f32 0.0, %v3475
    %v3477 = vpop.f32.mrb[0].mxu0
    %v3478 = vadd.f32 0.0, %v3477
    %3479 = vmatprep.mubr.f32.mxu0 %v3227
    %3480 = vmatmul.mubr.f32.gmra.mrb[0].mxu0 %v3226
    %v3481 = vpop.f32.mrb[0].mxu0
    %v3482 = vadd.f32 0.0, %v3481
    %v3483 = vpop.f32.mrb[0].mxu0
    %v3484 = vadd.f32 0.0, %v3483
    %3485 = vmatprep.mubr.f32.mxu0 %v3235
    %3486 = vmatmul.mubr.f32.gmra.mrb[0].mxu0 %v3234
    %v3487 = vpop.f32.mrb[0].mxu0
    %v3488 = vadd.f32 0.0, %v3487
    %v3489 = vpop.f32.mrb[0].mxu0
    %v3490 = vadd.f32 0.0, %v3489
    %3491 = vmatprep.mubr.f32.mxu0 %v3243
    %3492 = vmatmul.mubr.f32.gmra.mrb[0].mxu0 %v3242
    %v3493 = vpop.f32.mrb[0].mxu0
    %v3494 = vadd.f32 0.0, %v3493
    %v3495 = vpop.f32.mrb[0].mxu0
    %v3496 = vadd.f32 0.0, %v3495
    %3497 = vmatprep.mubr.f32.mxu0 %v3251
    %3498 = vmatmul.mubr.f32.gmra.mrb[0].mxu0 %v3250
    %v3499 = vpop.f32.mrb[0].mxu0
    %v3500 = vadd.f32 0.0, %v3499
    %v3501 = vpop.f32.mrb[0].mxu0
    %v3502 = vadd.f32 0.0, %v3501
    %3503 = vdwg.mxu0
    %3504 = vmatprep.subr.mxu0 %v2923
    %3505 = vmatpush1.msra.mxu0 %v2922
    %3506 = vmatprep.subr.mxu0 %v2925
    %3507 = vmatpush1.msra.mxu0 %v2924
    %3508 = vmatprep.subr.mxu0 %v2927
    %3509 = vmatpush1.msra.mxu0 %v2926
    %3510 = vmatprep.subr.mxu0 %v2929
    %3511 = vmatpush1.msra.mxu0 %v2928
    %3512 = vmatprep.subr.mxu0 %v2931
    %3513 = vmatpush1.msra.mxu0 %v2930
    %3514 = vmatprep.subr.mxu0 %v2933
    %3515 = vmatpush1.msra.mxu0 %v2932
    %3516 = vmatprep.subr.mxu0 %v2935
    %3517 = vmatpush1.msra.mxu0 %v2934
    %3518 = vmatprep.subr.mxu0 %v2937
    %3519 = vmatpush1.msra.mxu0 %v2936
    %3520 = vmatprep.subr.mxu0 %v2939
    %3521 = vmatpush1.msra.mxu0 %v2938
    %3522 = vmatprep.subr.mxu0 %v2941
    %3523 = vmatpush1.msra.mxu0 %v2940
    %3524 = vmatprep.subr.mxu0 %v2943
    %3525 = vmatpush1.msra.mxu0 %v2942
    %3526 = vmatprep.subr.mxu0 %v2945
    %3527 = vmatpush1.msra.mxu0 %v2944
    %3528 = vmatprep.subr.mxu0 %v2947
    %3529 = vmatpush1.msra.mxu0 %v2946
    %3530 = vmatprep.subr.mxu0 %v2949
    %3531 = vmatpush1.msra.mxu0 %v2948
    %3532 = vmatprep.subr.mxu0 %v2951
    %3533 = vmatpush1.msra.mxu0 %v2950
    %3534 = vmatprep.subr.mxu0 %v2953
    %3535 = vmatpush1.msra.mxu0 %v2952
    %3536 = vmatprep.subr.mxu0 %v2955
    %3537 = vmatpush1.msra.mxu0 %v2954
    %3538 = vmatprep.subr.mxu0 %v2957
    %3539 = vmatpush1.msra.mxu0 %v2956
    %3540 = vmatprep.subr.mxu0 %v2959
    %3541 = vmatpush1.msra.mxu0 %v2958
    %3542 = vmatprep.subr.mxu0 %v2961
    %3543 = vmatpush1.msra.mxu0 %v2960
    %3544 = vmatprep.subr.mxu0 %v2963
    %3545 = vmatpush1.msra.mxu0 %v2962
    %3546 = vmatprep.subr.mxu0 %v2965
    %3547 = vmatpush1.msra.mxu0 %v2964
    %3548 = vmatprep.subr.mxu0 %v2967
    %3549 = vmatpush1.msra.mxu0 %v2966
    %3550 = vmatprep.subr.mxu0 %v2969
    %3551 = vmatpush1.msra.mxu0 %v2968
    %3552 = vmatprep.subr.mxu0 %v2971
    %3553 = vmatpush1.msra.mxu0 %v2970
    %3554 = vmatprep.subr.mxu0 %v2973
    %3555 = vmatpush1.msra.mxu0 %v2972
    %3556 = vmatprep.subr.mxu0 %v2975
    %3557 = vmatpush1.msra.mxu0 %v2974
    %3558 = vmatprep.subr.mxu0 %v2977
    %3559 = vmatpush1.msra.mxu0 %v2976
    %3560 = vmatprep.subr.mxu0 %v2979
    %3561 = vmatpush1.msra.mxu0 %v2978
    %3562 = vmatprep.subr.mxu0 %v2981
    %3563 = vmatpush1.msra.mxu0 %v2980
    %3564 = vmatprep.subr.mxu0 %v2983
    %3565 = vmatpush1.msra.mxu0 %v2982
    %3566 = vmatprep.subr.mxu0 %v2985
    %3567 = vmatpush1.msra.mxu0 %v2984
    %3568 = vmatprep.mubr.f32.mxu0 %v3101
    %3569 = vmatmul.mubr.f32.gmra.mrb[0].mxu0 %v3100
    %v3570 = vpop.f32.mrb[0].mxu0
    %v3571 = vadd.f32 %v3386, %v3570
    %v3572 = vpop.f32.mrb[0].mxu0
    %v3573 = vadd.f32 %v3388, %v3572
    %3574 = vmatprep.mubr.f32.mxu0 %v3109
    %3575 = vmatmul.mubr.f32.gmra.mrb[0].mxu0 %v3108
    %v3576 = vpop.f32.mrb[0].mxu0
    %v3577 = vadd.f32 %v3392, %v3576
    %v3578 = vpop.f32.mrb[0].mxu0
    %v3579 = vadd.f32 %v3394, %v3578
    %3580 = vmatprep.mubr.f32.mxu0 %v3117
    %3581 = vmatmul.mubr.f32.gmra.mrb[0].mxu0 %v3116
    %v3582 = vpop.f32.mrb[0].mxu0
    %v3583 = vadd.f32 %v3398, %v3582
    %v3584 = vpop.f32.mrb[0].mxu0
    %v3585 = vadd.f32 %v3400, %v3584
    %3586 = vmatprep.mubr.f32.mxu0 %v3125
    %3587 = vmatmul.mubr.f32.gmra.mrb[0].mxu0 %v3124
    %v3588 = vpop.f32.mrb[0].mxu0
    %v3589 = vadd.f32 %v3404, %v3588
    %v3590 = vpop.f32.mrb[0].mxu0
    %v3591 = vadd.f32 %v3406, %v3590
    %3592 = vmatprep.mubr.f32.mxu0 %v3133
    %3593 = vmatmul.mubr.f32.gmra.mrb[0].mxu0 %v3132
    %v3594 = vpop.f32.mrb[0].mxu0
    %v3595 = vadd.f32 %v3410, %v3594
    %v3596 = vpop.f32.mrb[0].mxu0
    %v3597 = vadd.f32 %v3412, %v3596
    %3598 = vmatprep.mubr.f32.mxu0 %v3141
    %3599 = vmatmul.mubr.f32.gmra.mrb[0].mxu0 %v3140
    %v3600 = vpop.f32.mrb[0].mxu0
    %v3601 = vadd.f32 %v3416, %v3600
    %v3602 = vpop.f32.mrb[0].mxu0
    %v3603 = vadd.f32 %v3418, %v3602
    %3604 = vmatprep.mubr.f32.mxu0 %v3149
    %3605 = vmatmul.mubr.f32.gmra.mrb[0].mxu0 %v3148
    %v3606 = vpop.f32.mrb[0].mxu0
    %v3607 = vadd.f32 %v3422, %v3606
    %v3608 = vpop.f32.mrb[0].mxu0
    %v3609 = vadd.f32 %v3424, %v3608
    %3610 = vmatprep.mubr.f32.mxu0 %v3157
    %3611 = vmatmul.mubr.f32.gmra.mrb[0].mxu0 %v3156
    %v3612 = vpop.f32.mrb[0].mxu0
    %v3613 = vadd.f32 %v3428, %v3612
    %v3614 = vpop.f32.mrb[0].mxu0
    %v3615 = vadd.f32 %v3430, %v3614
    %3616 = vmatprep.mubr.f32.mxu0 %v3165
    %3617 = vmatmul.mubr.f32.gmra.mrb[0].mxu0 %v3164
    %v3618 = vpop.f32.mrb[0].mxu0
    %v3619 = vadd.f32 %v3434, %v3618
    %v3620 = vpop.f32.mrb[0].mxu0
    %v3621 = vadd.f32 %v3436, %v3620
    %3622 = vmatprep.mubr.f32.mxu0 %v3173
    %3623 = vmatmul.mubr.f32.gmra.mrb[0].mxu0 %v3172
    %v3624 = vpop.f32.mrb[0].mxu0
    %v3625 = vadd.f32 %v3440, %v3624
    %v3626 = vpop.f32.mrb[0].mxu0
    %v3627 = vadd.f32 %v3442, %v3626
    %3628 = vmatprep.mubr.f32.mxu0 %v3181
    %3629 = vmatmul.mubr.f32.gmra.mrb[0].mxu0 %v3180
    %v3630 = vpop.f32.mrb[0].mxu0
    %v3631 = vadd.f32 %v3446, %v3630
    %v3632 = vpop.f32.mrb[0].mxu0
    %v3633 = vadd.f32 %v3448, %v3632
    %3634 = vmatprep.mubr.f32.mxu0 %v3189
    %3635 = vmatmul.mubr.f32.gmra.mrb[0].mxu0 %v3188
    %v3636 = vpop.f32.mrb[0].mxu0
    %v3637 = vadd.f32 %v3452, %v3636
    %v3638 = vpop.f32.mrb[0].mxu0
    %v3639 = vadd.f32 %v3454, %v3638
    %3640 = vmatprep.mubr.f32.mxu0 %v3197
    %3641 = vmatmul.mubr.f32.gmra.mrb[0].mxu0 %v3196
    %v3642 = vpop.f32.mrb[0].mxu0
    %v3643 = vadd.f32 %v3458, %v3642
    %v3644 = vpop.f32.mrb[0].mxu0
    %v3645 = vadd.f32 %v3460, %v3644
    %3646 = vmatprep.mubr.f32.mxu0 %v3205
    %3647 = vmatmul.mubr.f32.gmra.mrb[0].mxu0 %v3204
    %v3648 = vpop.f32.mrb[0].mxu0
    %v3649 = vadd.f32 %v3464, %v3648
    %v3650 = vpop.f32.mrb[0].mxu0
    %v3651 = vadd.f32 %v3466, %v3650
    %3652 = vmatprep.mubr.f32.mxu0 %v3213
    %3653 = vmatmul.mubr.f32.gmra.mrb[0].mxu0 %v3212
    %v3654 = vpop.f32.mrb[0].mxu0
    %v3655 = vadd.f32 %v3470, %v3654
    %v3656 = vpop.f32.mrb[0].mxu0
    %v3657 = vadd.f32 %v3472, %v3656
    %3658 = vmatprep.mubr.f32.mxu0 %v3221
    %3659 = vmatmul.mubr.f32.gmra.mrb[0].mxu0 %v3220
    %v3660 = vpop.f32.mrb[0].mxu0
    %v3661 = vadd.f32 %v3476, %v3660
    %v3662 = vpop.f32.mrb[0].mxu0
    %v3663 = vadd.f32 %v3478, %v3662
    %3664 = vmatprep.mubr.f32.mxu0 %v3229
    %3665 = vmatmul.mubr.f32.gmra.mrb[0].mxu0 %v3228
    %v3666 = vpop.f32.mrb[0].mxu0
    %v3667 = vadd.f32 %v3482, %v3666
    %v3668 = vpop.f32.mrb[0].mxu0
    %v3669 = vadd.f32 %v3484, %v3668
    %3670 = vmatprep.mubr.f32.mxu0 %v3237
    %3671 = vmatmul.mubr.f32.gmra.mrb[0].mxu0 %v3236
    %v3672 = vpop.f32.mrb[0].mxu0
    %v3673 = vadd.f32 %v3488, %v3672
    %v3674 = vpop.f32.mrb[0].mxu0
    %v3675 = vadd.f32 %v3490, %v3674
    %3676 = vmatprep.mubr.f32.mxu0 %v3245
    %3677 = vmatmul.mubr.f32.gmra.mrb[0].mxu0 %v3244
    %v3678 = vpop.f32.mrb[0].mxu0
    %v3679 = vadd.f32 %v3494, %v3678
    %v3680 = vpop.f32.mrb[0].mxu0
    %v3681 = vadd.f32 %v3496, %v3680
    %3682 = vmatprep.mubr.f32.mxu0 %v3253
    %3683 = vmatmul.mubr.f32.gmra.mrb[0].mxu0 %v3252
    %v3684 = vpop.f32.mrb[0].mxu0
    %v3685 = vadd.f32 %v3500, %v3684
    %v3686 = vpop.f32.mrb[0].mxu0
    %v3687 = vadd.f32 %v3502, %v3686
    %3688 = vdwg.mxu0
    %3689 = vmatprep.subr.mxu0 %v2987
    %3690 = vmatpush1.msra.mxu0 %v2986
    %3691 = vmatprep.subr.mxu0 %v2989
    %3692 = vmatpush1.msra.mxu0 %v2988
    %3693 = vmatprep.subr.mxu0 %v2991
    %3694 = vmatpush1.msra.mxu0 %v2990
    %3695 = vmatprep.subr.mxu0 %v2993
    %3696 = vmatpush1.msra.mxu0 %v2992
    %3697 = vmatprep.subr.mxu0 %v2995
    %3698 = vmatpush1.msra.mxu0 %v2994
    %3699 = vmatprep.subr.mxu0 %v2997
    %3700 = vmatpush1.msra.mxu0 %v2996
    %3701 = vmatprep.subr.mxu0 %v2999
    %3702 = vmatpush1.msra.mxu0 %v2998
    %3703 = vmatprep.subr.mxu0 %v3001
    %3704 = vmatpush1.msra.mxu0 %v3000
    %3705 = vmatprep.subr.mxu0 %v3003
    %3706 = vmatpush1.msra.mxu0 %v3002
    %3707 = vmatprep.subr.mxu0 %v3005
    %3708 = vmatpush1.msra.mxu0 %v3004
    %3709 = vmatprep.subr.mxu0 %v3007
    %3710 = vmatpush1.msra.mxu0 %v3006
    %3711 = vmatprep.subr.mxu0 %v3009
    %3712 = vmatpush1.msra.mxu0 %v3008
    %3713 = vmatprep.subr.mxu0 %v3011
    %3714 = vmatpush1.msra.mxu0 %v3010
    %3715 = vmatprep.subr.mxu0 %v3013
    %3716 = vmatpush1.msra.mxu0 %v3012
    %3717 = vmatprep.subr.mxu0 %v3015
    %3718 = vmatpush1.msra.mxu0 %v3014
    %3719 = vmatprep.subr.mxu0 %v3017
    %3720 = vmatpush1.msra.mxu0 %v3016
    %3721 = vmatprep.subr.mxu0 %v3019
    %3722 = vmatpush1.msra.mxu0 %v3018
    %3723 = vmatprep.subr.mxu0 %v3021
    %3724 = vmatpush1.msra.mxu0 %v3020
    %3725 = vmatprep.subr.mxu0 %v3023
    %3726 = vmatpush1.msra.mxu0 %v3022
    %3727 = vmatprep.subr.mxu0 %v3025
    %3728 = vmatpush1.msra.mxu0 %v3024
    %3729 = vmatprep.subr.mxu0 %v3027
    %3730 = vmatpush1.msra.mxu0 %v3026
    %3731 = vmatprep.subr.mxu0 %v3029
    %3732 = vmatpush1.msra.mxu0 %v3028
    %3733 = vmatprep.subr.mxu0 %v3031
    %3734 = vmatpush1.msra.mxu0 %v3030
    %3735 = vmatprep.subr.mxu0 %v3033
    %3736 = vmatpush1.msra.mxu0 %v3032
    %3737 = vmatprep.subr.mxu0 %v3035
    %3738 = vmatpush1.msra.mxu0 %v3034
    %3739 = vmatprep.subr.mxu0 %v3037
    %3740 = vmatpush1.msra.mxu0 %v3036
    %3741 = vmatprep.subr.mxu0 %v3039
    %3742 = vmatpush1.msra.mxu0 %v3038
    %3743 = vmatprep.subr.mxu0 %v3041
    %3744 = vmatpush1.msra.mxu0 %v3040
    %3745 = vmatprep.subr.mxu0 %v3043
    %3746 = vmatpush1.msra.mxu0 %v3042
    %3747 = vmatprep.subr.mxu0 %v3045
    %3748 = vmatpush1.msra.mxu0 %v3044
    %3749 = vmatprep.subr.mxu0 %v3047
    %3750 = vmatpush1.msra.mxu0 %v3046
    %3751 = vmatprep.subr.mxu0 %v3049
    %3752 = vmatpush1.msra.mxu0 %v3048
    %3753 = vmatprep.mubr.f32.mxu0 %v3103
    %3754 = vmatmul.mubr.f32.gmra.mrb[0].mxu0 %v3102
    %v3755 = vpop.f32.mrb[0].mxu0
    %v3756 = vadd.f32 %v3571, %v3755
    %v3757 = vpop.f32.mrb[0].mxu0
    %v3758 = vadd.f32 %v3573, %v3757
    %3759 = vmatprep.mubr.f32.mxu0 %v3111
    %3760 = vmatmul.mubr.f32.gmra.mrb[0].mxu0 %v3110
    %v3761 = vpop.f32.mrb[0].mxu0
    %v3762 = vadd.f32 %v3577, %v3761
    %v3763 = vpop.f32.mrb[0].mxu0
    %v3764 = vadd.f32 %v3579, %v3763
    %3765 = vmatprep.mubr.f32.mxu0 %v3119
    %3766 = vmatmul.mubr.f32.gmra.mrb[0].mxu0 %v3118
    %v3767 = vpop.f32.mrb[0].mxu0
    %v3768 = vadd.f32 %v3583, %v3767
    %v3769 = vpop.f32.mrb[0].mxu0
    %v3770 = vadd.f32 %v3585, %v3769
    %3771 = vmatprep.mubr.f32.mxu0 %v3127
    %3772 = vmatmul.mubr.f32.gmra.mrb[0].mxu0 %v3126
    %v3773 = vpop.f32.mrb[0].mxu0
    %v3774 = vadd.f32 %v3589, %v3773
    %v3775 = vpop.f32.mrb[0].mxu0
    %v3776 = vadd.f32 %v3591, %v3775
    %3777 = vmatprep.mubr.f32.mxu0 %v3135
    %3778 = vmatmul.mubr.f32.gmra.mrb[0].mxu0 %v3134
    %v3779 = vpop.f32.mrb[0].mxu0
    %v3780 = vadd.f32 %v3595, %v3779
    %v3781 = vpop.f32.mrb[0].mxu0
    %v3782 = vadd.f32 %v3597, %v3781
    %3783 = vmatprep.mubr.f32.mxu0 %v3143
    %3784 = vmatmul.mubr.f32.gmra.mrb[0].mxu0 %v3142
    %v3785 = vpop.f32.mrb[0].mxu0
    %v3786 = vadd.f32 %v3601, %v3785
    %v3787 = vpop.f32.mrb[0].mxu0
    %v3788 = vadd.f32 %v3603, %v3787
    %3789 = vmatprep.mubr.f32.mxu0 %v3151
    %3790 = vmatmul.mubr.f32.gmra.mrb[0].mxu0 %v3150
    %v3791 = vpop.f32.mrb[0].mxu0
    %v3792 = vadd.f32 %v3607, %v3791
    %v3793 = vpop.f32.mrb[0].mxu0
    %v3794 = vadd.f32 %v3609, %v3793
    %3795 = vmatprep.mubr.f32.mxu0 %v3159
    %3796 = vmatmul.mubr.f32.gmra.mrb[0].mxu0 %v3158
    %v3797 = vpop.f32.mrb[0].mxu0
    %v3798 = vadd.f32 %v3613, %v3797
    %v3799 = vpop.f32.mrb[0].mxu0
    %v3800 = vadd.f32 %v3615, %v3799
    %3801 = vmatprep.mubr.f32.mxu0 %v3167
    %3802 = vmatmul.mubr.f32.gmra.mrb[0].mxu0 %v3166
    %v3803 = vpop.f32.mrb[0].mxu0
    %v3804 = vadd.f32 %v3619, %v3803
    %v3805 = vpop.f32.mrb[0].mxu0
    %v3806 = vadd.f32 %v3621, %v3805
    %3807 = vmatprep.mubr.f32.mxu0 %v3175
    %3808 = vmatmul.mubr.f32.gmra.mrb[0].mxu0 %v3174
    %v3809 = vpop.f32.mrb[0].mxu0
    %v3810 = vadd.f32 %v3625, %v3809
    %v3811 = vpop.f32.mrb[0].mxu0
    %v3812 = vadd.f32 %v3627, %v3811
    %3813 = vmatprep.mubr.f32.mxu0 %v3183
    %3814 = vmatmul.mubr.f32.gmra.mrb[0].mxu0 %v3182
    %v3815 = vpop.f32.mrb[0].mxu0
    %v3816 = vadd.f32 %v3631, %v3815
    %v3817 = vpop.f32.mrb[0].mxu0
    %v3818 = vadd.f32 %v3633, %v3817
    %3819 = vmatprep.mubr.f32.mxu0 %v3191
    %3820 = vmatmul.mubr.f32.gmra.mrb[0].mxu0 %v3190
    %v3821 = vpop.f32.mrb[0].mxu0
    %v3822 = vadd.f32 %v3637, %v3821
    %v3823 = vpop.f32.mrb[0].mxu0
    %v3824 = vadd.f32 %v3639, %v3823
    %3825 = vmatprep.mubr.f32.mxu0 %v3199
    %3826 = vmatmul.mubr.f32.gmra.mrb[0].mxu0 %v3198
    %v3827 = vpop.f32.mrb[0].mxu0
    %v3828 = vadd.f32 %v3643, %v3827
    %v3829 = vpop.f32.mrb[0].mxu0
    %v3830 = vadd.f32 %v3645, %v3829
    %3831 = vmatprep.mubr.f32.mxu0 %v3207
    %3832 = vmatmul.mubr.f32.gmra.mrb[0].mxu0 %v3206
    %v3833 = vpop.f32.mrb[0].mxu0
    %v3834 = vadd.f32 %v3649, %v3833
    %v3835 = vpop.f32.mrb[0].mxu0
    %v3836 = vadd.f32 %v3651, %v3835
    %3837 = vmatprep.mubr.f32.mxu0 %v3215
    %3838 = vmatmul.mubr.f32.gmra.mrb[0].mxu0 %v3214
    %v3839 = vpop.f32.mrb[0].mxu0
    %v3840 = vadd.f32 %v3655, %v3839
    %v3841 = vpop.f32.mrb[0].mxu0
    %v3842 = vadd.f32 %v3657, %v3841
    %3843 = vmatprep.mubr.f32.mxu0 %v3223
    %3844 = vmatmul.mubr.f32.gmra.mrb[0].mxu0 %v3222
    %v3845 = vpop.f32.mrb[0].mxu0
    %v3846 = vadd.f32 %v3661, %v3845
    %v3847 = vpop.f32.mrb[0].mxu0
    %v3848 = vadd.f32 %v3663, %v3847
    %3849 = vmatprep.mubr.f32.mxu0 %v3231
    %3850 = vmatmul.mubr.f32.gmra.mrb[0].mxu0 %v3230
    %v3851 = vpop.f32.mrb[0].mxu0
    %v3852 = vadd.f32 %v3667, %v3851
    %v3853 = vpop.f32.mrb[0].mxu0
    %v3854 = vadd.f32 %v3669, %v3853
    %3855 = vmatprep.mubr.f32.mxu0 %v3239
    %3856 = vmatmul.mubr.f32.gmra.mrb[0].mxu0 %v3238
    %v3857 = vpop.f32.mrb[0].mxu0
    %v3858 = vadd.f32 %v3673, %v3857
    %v3859 = vpop.f32.mrb[0].mxu0
    %v3860 = vadd.f32 %v3675, %v3859
    %3861 = vmatprep.mubr.f32.mxu0 %v3247
    %3862 = vmatmul.mubr.f32.gmra.mrb[0].mxu0 %v3246
    %v3863 = vpop.f32.mrb[0].mxu0
    %v3864 = vadd.f32 %v3679, %v3863
    %v3865 = vpop.f32.mrb[0].mxu0
    %v3866 = vadd.f32 %v3681, %v3865
    %3867 = vmatprep.mubr.f32.mxu0 %v3255
    %3868 = vmatmul.mubr.f32.gmra.mrb[0].mxu0 %v3254
    %v3869 = vpop.f32.mrb[0].mxu0
    %v3870 = vadd.f32 %v3685, %v3869
    %v3871 = vpop.f32.mrb[0].mxu0
    %v3872 = vadd.f32 %v3687, %v3871
    %3873 = vdwg.mxu0
    %3874 = vmatprep.subr.mxu0 %v3051
    %3875 = vmatpush1.msra.mxu0 %v3050
    %3876 = vmatprep.subr.mxu0 %v3053
    %3877 = vmatpush1.msra.mxu0 %v3052
    %3878 = vmatprep.subr.mxu0 %v3055
    %3879 = vmatpush1.msra.mxu0 %v3054
    %3880 = vmatprep.subr.mxu0 %v3057
    %3881 = vmatpush1.msra.mxu0 %v3056
    %3882 = vmatprep.subr.mxu0 %v3059
    %3883 = vmatpush1.msra.mxu0 %v3058
    %3884 = vmatprep.subr.mxu0 %v3061
    %3885 = vmatpush1.msra.mxu0 %v3060
    %3886 = vmatprep.subr.mxu0 %v3063
    %3887 = vmatpush1.msra.mxu0 %v3062
    %3888 = vmatprep.subr.mxu0 %v3065
    %3889 = vmatpush1.msra.mxu0 %v3064
    %3890 = vmatprep.subr.mxu0 %v3067
    %3891 = vmatpush1.msra.mxu0 %v3066
    %3892 = vmatprep.subr.mxu0 %v3069
    %3893 = vmatpush1.msra.mxu0 %v3068
    %3894 = vmatprep.subr.mxu0 %v3071
    %3895 = vmatpush1.msra.mxu0 %v3070
    %3896 = vmatprep.subr.mxu0 %v3073
    %3897 = vmatpush1.msra.mxu0 %v3072
    %3898 = vmatprep.subr.mxu0 %v3075
    %3899 = vmatpush1.msra.mxu0 %v3074
    %3900 = vmatprep.subr.mxu0 %v3077
    %3901 = vmatpush1.msra.mxu0 %v3076
    %3902 = vmatprep.subr.mxu0 %v3079
    %3903 = vmatpush1.msra.mxu0 %v3078
    %3904 = vmatprep.subr.mxu0 %v3081
    %3905 = vmatpush1.msra.mxu0 %v3080
    %3906 = vmatprep.subr.mxu0 %v3083
    %3907 = vmatpush1.msra.mxu0 %v3082
    %3908 = vmatprep.subr.mxu0 %v3085
    %3909 = vmatpush1.msra.mxu0 %v3084
    %3910 = vmatprep.subr.mxu0 %v3087
    %3911 = vmatpush1.msra.mxu0 %v3086
    %3912 = vmatprep.subr.mxu0 %v3089
    %3913 = vmatpush1.msra.mxu0 %v3088
    %3914 = vmatprep.subr.mxu0 %v3091
    %3915 = vmatpush1.msra.mxu0 %v3090
    %3916 = vmatprep.subr.mxu0 %v3093
    %3917 = vmatpush1.msra.mxu0 %v3092
    %3918 = vmatprep.subr.mxu0 %v3095
    %3919 = vmatpush1.msra.mxu0 %v3094
    %3920 = vmatprep.subr.mxu0 %v3097
    %3921 = vmatpush1.msra.mxu0 %v3096
    %3922 = vmatprep.subr.mxu0 0.0
    %3923 = vmatpush1.msra.mxu0 0.0
    %3924 = vmatprep.subr.mxu0 0.0
    %3925 = vmatpush1.msra.mxu0 0.0
    %3926 = vmatprep.subr.mxu0 0.0
    %3927 = vmatpush1.msra.mxu0 0.0
    %3928 = vmatprep.subr.mxu0 0.0
    %3929 = vmatpush1.msra.mxu0 0.0
    %3930 = vmatprep.subr.mxu0 0.0
    %3931 = vmatpush1.msra.mxu0 0.0
    %3932 = vmatprep.subr.mxu0 0.0
    %3933 = vmatpush1.msra.mxu0 0.0
    %3934 = vmatprep.subr.mxu0 0.0
    %3935 = vmatpush1.msra.mxu0 0.0
    %3936 = vmatprep.subr.mxu0 0.0
    %3937 = vmatpush1.msra.mxu0 0.0
    %3938 = vmatprep.mubr.f32.mxu0 %v3260
    %3939 = vmatmul.mubr.f32.gmra.mrb[0].mxu0 %v3104
    %v3940 = vpop.f32.mrb[0].mxu0
    %v3941 = vadd.f32 %v3756, %v3940
    %v3942 = vpop.f32.mrb[0].mxu0
    %v3943 = vadd.f32 %v3758, %v3942
    %3944 = vmatprep.mubr.f32.mxu0 %v3263
    %3945 = vmatmul.mubr.f32.gmra.mrb[0].mxu0 %v3112
    %v3946 = vpop.f32.mrb[0].mxu0
    %v3947 = vadd.f32 %v3762, %v3946
    %v3948 = vpop.f32.mrb[0].mxu0
    %v3949 = vadd.f32 %v3764, %v3948
    %3950 = vmatprep.mubr.f32.mxu0 %v3266
    %3951 = vmatmul.mubr.f32.gmra.mrb[0].mxu0 %v3120
    %v3952 = vpop.f32.mrb[0].mxu0
    %v3953 = vadd.f32 %v3768, %v3952
    %v3954 = vpop.f32.mrb[0].mxu0
    %v3955 = vadd.f32 %v3770, %v3954
    %3956 = vmatprep.mubr.f32.mxu0 %v3269
    %3957 = vmatmul.mubr.f32.gmra.mrb[0].mxu0 %v3128
    %v3958 = vpop.f32.mrb[0].mxu0
    %v3959 = vadd.f32 %v3774, %v3958
    %v3960 = vpop.f32.mrb[0].mxu0
    %v3961 = vadd.f32 %v3776, %v3960
    %3962 = vmatprep.mubr.f32.mxu0 %v3272
    %3963 = vmatmul.mubr.f32.gmra.mrb[0].mxu0 %v3136
    %v3964 = vpop.f32.mrb[0].mxu0
    %v3965 = vadd.f32 %v3780, %v3964
    %v3966 = vpop.f32.mrb[0].mxu0
    %v3967 = vadd.f32 %v3782, %v3966
    %3968 = vmatprep.mubr.f32.mxu0 %v3275
    %3969 = vmatmul.mubr.f32.gmra.mrb[0].mxu0 %v3144
    %v3970 = vpop.f32.mrb[0].mxu0
    %v3971 = vadd.f32 %v3786, %v3970
    %v3972 = vpop.f32.mrb[0].mxu0
    %v3973 = vadd.f32 %v3788, %v3972
    %3974 = vmatprep.mubr.f32.mxu0 %v3278
    %3975 = vmatmul.mubr.f32.gmra.mrb[0].mxu0 %v3152
    %v3976 = vpop.f32.mrb[0].mxu0
    %v3977 = vadd.f32 %v3792, %v3976
    %v3978 = vpop.f32.mrb[0].mxu0
    %v3979 = vadd.f32 %v3794, %v3978
    %3980 = vmatprep.mubr.f32.mxu0 %v3281
    %3981 = vmatmul.mubr.f32.gmra.mrb[0].mxu0 %v3160
    %v3982 = vpop.f32.mrb[0].mxu0
    %v3983 = vadd.f32 %v3798, %v3982
    %v3984 = vpop.f32.mrb[0].mxu0
    %v3985 = vadd.f32 %v3800, %v3984
    %3986 = vmatprep.mubr.f32.mxu0 %v3284
    %3987 = vmatmul.mubr.f32.gmra.mrb[0].mxu0 %v3168
    %v3988 = vpop.f32.mrb[0].mxu0
    %v3989 = vadd.f32 %v3804, %v3988
    %v3990 = vpop.f32.mrb[0].mxu0
    %v3991 = vadd.f32 %v3806, %v3990
    %3992 = vmatprep.mubr.f32.mxu0 %v3287
    %3993 = vmatmul.mubr.f32.gmra.mrb[0].mxu0 %v3176
    %v3994 = vpop.f32.mrb[0].mxu0
    %v3995 = vadd.f32 %v3810, %v3994
    %v3996 = vpop.f32.mrb[0].mxu0
    %v3997 = vadd.f32 %v3812, %v3996
    %3998 = vmatprep.mubr.f32.mxu0 %v3290
    %3999 = vmatmul.mubr.f32.gmra.mrb[0].mxu0 %v3184
    %v4000 = vpop.f32.mrb[0].mxu0
    %v4001 = vadd.f32 %v3816, %v4000
    %v4002 = vpop.f32.mrb[0].mxu0
    %v4003 = vadd.f32 %v3818, %v4002
    %4004 = vmatprep.mubr.f32.mxu0 %v3293
    %4005 = vmatmul.mubr.f32.gmra.mrb[0].mxu0 %v3192
    %v4006 = vpop.f32.mrb[0].mxu0
    %v4007 = vadd.f32 %v3822, %v4006
    %v4008 = vpop.f32.mrb[0].mxu0
    %v4009 = vadd.f32 %v3824, %v4008
    %4010 = vmatprep.mubr.f32.mxu0 %v3296
    %4011 = vmatmul.mubr.f32.gmra.mrb[0].mxu0 %v3200
    %v4012 = vpop.f32.mrb[0].mxu0
    %v4013 = vadd.f32 %v3828, %v4012
    %v4014 = vpop.f32.mrb[0].mxu0
    %v4015 = vadd.f32 %v3830, %v4014
    %4016 = vmatprep.mubr.f32.mxu0 %v3299
    %4017 = vmatmul.mubr.f32.gmra.mrb[0].mxu0 %v3208
    %v4018 = vpop.f32.mrb[0].mxu0
    %v4019 = vadd.f32 %v3834, %v4018
    %v4020 = vpop.f32.mrb[0].mxu0
    %v4021 = vadd.f32 %v3836, %v4020
    %4022 = vmatprep.mubr.f32.mxu0 %v3302
    %4023 = vmatmul.mubr.f32.gmra.mrb[0].mxu0 %v3216
    %v4024 = vpop.f32.mrb[0].mxu0
    %v4025 = vadd.f32 %v3840, %v4024
    %v4026 = vpop.f32.mrb[0].mxu0
    %v4027 = vadd.f32 %v3842, %v4026
    %4028 = vmatprep.mubr.f32.mxu0 %v3305
    %4029 = vmatmul.mubr.f32.gmra.mrb[0].mxu0 %v3224
    %v4030 = vpop.f32.mrb[0].mxu0
    %v4031 = vadd.f32 %v3846, %v4030
    %v4032 = vpop.f32.mrb[0].mxu0
    %v4033 = vadd.f32 %v3848, %v4032
    %4034 = vmatprep.mubr.f32.mxu0 %v3308
    %4035 = vmatmul.mubr.f32.gmra.mrb[0].mxu0 %v3232
    %v4036 = vpop.f32.mrb[0].mxu0
    %v4037 = vadd.f32 %v3852, %v4036
    %v4038 = vpop.f32.mrb[0].mxu0
    %v4039 = vadd.f32 %v3854, %v4038
    %4040 = vmatprep.mubr.f32.mxu0 %v3311
    %4041 = vmatmul.mubr.f32.gmra.mrb[0].mxu0 %v3240
    %v4042 = vpop.f32.mrb[0].mxu0
    %v4043 = vadd.f32 %v3858, %v4042
    %v4044 = vpop.f32.mrb[0].mxu0
    %v4045 = vadd.f32 %v3860, %v4044
    %4046 = vmatprep.mubr.f32.mxu0 %v3314
    %4047 = vmatmul.mubr.f32.gmra.mrb[0].mxu0 %v3248
    %v4048 = vpop.f32.mrb[0].mxu0
    %v4049 = vadd.f32 %v3864, %v4048
    %v4050 = vpop.f32.mrb[0].mxu0
    %v4051 = vadd.f32 %v3866, %v4050
    %4052 = vmatprep.mubr.f32.mxu0 %v3317
    %4053 = vmatmul.mubr.f32.gmra.mrb[0].mxu0 %v3256
    %v4054 = vpop.f32.mrb[0].mxu0
    %v4055 = vadd.f32 %v3870, %v4054
    %v4056 = vpop.f32.mrb[0].mxu0
    %v4057 = vadd.f32 %v3872, %v4056
    %4058 = vdwg.mxu0
    %vm4059 = vcmask 556032
    %v4060 = vsel %vm4059, %v3943, 0.0
    %v4061 = vadd.f32 %v3941, %v4060
    %4062 = vadd.xlane.f32.xlu0 %v4061
    %v4063 = vpop.xlane.xlu0 %4062
    %v4064 = vsel %vm4059, %v3949, 0.0
    %v4065 = vadd.f32 %v3947, %v4064
    %4066 = vadd.xlane.f32.xlu0 %v4065
    %v4067 = vpop.xlane.xlu0 %4066
    %v4068 = vsel %vm4059, %v3955, 0.0
    %v4069 = vadd.f32 %v3953, %v4068
    %4070 = vadd.xlane.f32.xlu0 %v4069
    %v4071 = vpop.xlane.xlu0 %4070
    %v4072 = vsel %vm4059, %v3961, 0.0
    %v4073 = vadd.f32 %v3959, %v4072
    %4074 = vadd.xlane.f32.xlu0 %v4073
    %v4075 = vpop.xlane.xlu0 %4074
    %v4076 = vsel %vm4059, %v3967, 0.0
    %v4077 = vadd.f32 %v3965, %v4076
    %4078 = vadd.xlane.f32.xlu0 %v4077
    %v4079 = vpop.xlane.xlu0 %4078
    %v4080 = vsel %vm4059, %v3973, 0.0
    %v4081 = vadd.f32 %v3971, %v4080
    %4082 = vadd.xlane.f32.xlu0 %v4081
    %v4083 = vpop.xlane.xlu0 %4082
    %v4084 = vsel %vm4059, %v3979, 0.0
    %v4085 = vadd.f32 %v3977, %v4084
    %4086 = vadd.xlane.f32.xlu0 %v4085
    %v4087 = vpop.xlane.xlu0 %4086
    %v4088 = vsel %vm4059, %v3985, 0.0
    %v4089 = vadd.f32 %v3983, %v4088
    %4090 = vadd.xlane.f32.xlu0 %v4089
    %v4091 = vpop.xlane.xlu0 %4090
    %v4092 = vsel %vm4059, %v3991, 0.0
    %v4093 = vadd.f32 %v3989, %v4092
    %4094 = vadd.xlane.f32.xlu0 %v4093
    %v4095 = vpop.xlane.xlu0 %4094
    %v4096 = vsel %vm4059, %v3997, 0.0
    %v4097 = vadd.f32 %v3995, %v4096
    %4098 = vadd.xlane.f32.xlu0 %v4097
    %v4099 = vpop.xlane.xlu0 %4098
    %v4100 = vsel %vm4059, %v4003, 0.0
    %v4101 = vadd.f32 %v4001, %v4100
    %4102 = vadd.xlane.f32.xlu0 %v4101
    %v4103 = vpop.xlane.xlu0 %4102
    %v4104 = vsel %vm4059, %v4009, 0.0
    %v4105 = vadd.f32 %v4007, %v4104
    %4106 = vadd.xlane.f32.xlu0 %v4105
    %v4107 = vpop.xlane.xlu0 %4106
    %v4108 = vsel %vm4059, %v4015, 0.0
    %v4109 = vadd.f32 %v4013, %v4108
    %4110 = vadd.xlane.f32.xlu0 %v4109
    %v4111 = vpop.xlane.xlu0 %4110
    %v4112 = vsel %vm4059, %v4021, 0.0
    %v4113 = vadd.f32 %v4019, %v4112
    %4114 = vadd.xlane.f32.xlu0 %v4113
    %v4115 = vpop.xlane.xlu0 %4114
    %v4116 = vsel %vm4059, %v4027, 0.0
    %v4117 = vadd.f32 %v4025, %v4116
    %4118 = vadd.xlane.f32.xlu0 %v4117
    %v4119 = vpop.xlane.xlu0 %4118
    %v4120 = vsel %vm4059, %v4033, 0.0
    %v4121 = vadd.f32 %v4031, %v4120
    %4122 = vadd.xlane.f32.xlu0 %v4121
    %v4123 = vpop.xlane.xlu0 %4122
    %v4124 = vsel %vm4059, %v4039, 0.0
    %v4125 = vadd.f32 %v4037, %v4124
    %4126 = vadd.xlane.f32.xlu0 %v4125
    %v4127 = vpop.xlane.xlu0 %4126
    %v4128 = vsel %vm4059, %v4045, 0.0
    %v4129 = vadd.f32 %v4043, %v4128
    %4130 = vadd.xlane.f32.xlu0 %v4129
    %v4131 = vpop.xlane.xlu0 %4130
    %v4132 = vsel %vm4059, %v4051, 0.0
    %v4133 = vadd.f32 %v4049, %v4132
    %4134 = vadd.xlane.f32.xlu0 %v4133
    %v4135 = vpop.xlane.xlu0 %4134
    %v4136 = vsel %vm4059, %v4057, 0.0
    %v4137 = vadd.f32 %v4055, %v4136
    %4138 = vadd.xlane.f32.xlu0 %v4137
    %v4139 = vpop.xlane.xlu0 %4138
    %v4140 = vmul.f32 %v4063, 0.0051020407
    %v4141 = vmul.f32 %v4067, 0.0051020407
    %v4142 = vmul.f32 %v4071, 0.0051020407
    %v4143 = vmul.f32 %v4075, 0.0051020407
    %v4144 = vmul.f32 %v4079, 0.0051020407
    %v4145 = vmul.f32 %v4083, 0.0051020407
    %v4146 = vmul.f32 %v4087, 0.0051020407
    %v4147 = vmul.f32 %v4091, 0.0051020407
    %v4148 = vmul.f32 %v4095, 0.0051020407
    %v4149 = vmul.f32 %v4099, 0.0051020407
    %v4150 = vmul.f32 %v4103, 0.0051020407
    %v4151 = vmul.f32 %v4107, 0.0051020407
    %v4152 = vmul.f32 %v4111, 0.0051020407
    %v4153 = vmul.f32 %v4115, 0.0051020407
    %v4154 = vmul.f32 %v4119, 0.0051020407
    %v4155 = vmul.f32 %v4123, 0.0051020407
    %v4156 = vmul.f32 %v4127, 0.0051020407
    %v4157 = vmul.f32 %v4131, 0.0051020407
    %v4158 = vmul.f32 %v4135, 0.0051020407
    %v4159 = vmul.f32 %v4139, 0.0051020407
    %v4160 = vmul.f32 %v3941, %v3941
    %v4161 = vmul.f32 %v3943, %v3943
    %v4162 = vmul.f32 %v3947, %v3947
    %v4163 = vmul.f32 %v3949, %v3949
    %v4164 = vmul.f32 %v3953, %v3953
    %v4165 = vmul.f32 %v3955, %v3955
    %v4166 = vmul.f32 %v3959, %v3959
    %v4167 = vmul.f32 %v3961, %v3961
    %v4168 = vmul.f32 %v3965, %v3965
    %v4169 = vmul.f32 %v3967, %v3967
    %v4170 = vmul.f32 %v3971, %v3971
    %v4171 = vmul.f32 %v3973, %v3973
    %v4172 = vmul.f32 %v3977, %v3977
    %v4173 = vmul.f32 %v3979, %v3979
    %v4174 = vmul.f32 %v3983, %v3983
    %v4175 = vmul.f32 %v3985, %v3985
    %v4176 = vmul.f32 %v3989, %v3989
    %v4177 = vmul.f32 %v3991, %v3991
    %v4178 = vmul.f32 %v3995, %v3995
    %v4179 = vmul.f32 %v3997, %v3997
    %v4180 = vmul.f32 %v4001, %v4001
    %v4181 = vmul.f32 %v4003, %v4003
    %v4182 = vmul.f32 %v4007, %v4007
    %v4183 = vmul.f32 %v4009, %v4009
    %v4184 = vmul.f32 %v4013, %v4013
    %v4185 = vmul.f32 %v4015, %v4015
    %v4186 = vmul.f32 %v4019, %v4019
    %v4187 = vmul.f32 %v4021, %v4021
    %v4188 = vmul.f32 %v4025, %v4025
    %v4189 = vmul.f32 %v4027, %v4027
    %v4190 = vmul.f32 %v4031, %v4031
    %v4191 = vmul.f32 %v4033, %v4033
    %v4192 = vmul.f32 %v4037, %v4037
    %v4193 = vmul.f32 %v4039, %v4039
    %v4194 = vmul.f32 %v4043, %v4043
    %v4195 = vmul.f32 %v4045, %v4045
    %v4196 = vmul.f32 %v4049, %v4049
    %v4197 = vmul.f32 %v4051, %v4051
    %v4198 = vmul.f32 %v4055, %v4055
    %v4199 = vmul.f32 %v4057, %v4057
    %v4200 = vsel %vm4059, %v4161, 0.0
    %v4201 = vadd.f32 %v4160, %v4200
    %4202 = vadd.xlane.f32.xlu0 %v4201
    %v4203 = vpop.xlane.xlu0 %4202
    %v4204 = vsel %vm4059, %v4163, 0.0
    %v4205 = vadd.f32 %v4162, %v4204
    %4206 = vadd.xlane.f32.xlu0 %v4205
    %v4207 = vpop.xlane.xlu0 %4206
    %v4208 = vsel %vm4059, %v4165, 0.0
    %v4209 = vadd.f32 %v4164, %v4208
    %4210 = vadd.xlane.f32.xlu0 %v4209
    %v4211 = vpop.xlane.xlu0 %4210
    %v4212 = vsel %vm4059, %v4167, 0.0
    %v4213 = vadd.f32 %v4166, %v4212
    %4214 = vadd.xlane.f32.xlu0 %v4213
    %v4215 = vpop.xlane.xlu0 %4214
    %v4216 = vsel %vm4059, %v4169, 0.0
    %v4217 = vadd.f32 %v4168, %v4216
    %4218 = vadd.xlane.f32.xlu0 %v4217
    %v4219 = vpop.xlane.xlu0 %4218
    %v4220 = vsel %vm4059, %v4171, 0.0
    %v4221 = vadd.f32 %v4170, %v4220
    %4222 = vadd.xlane.f32.xlu0 %v4221
    %v4223 = vpop.xlane.xlu0 %4222
    %v4224 = vsel %vm4059, %v4173, 0.0
    %v4225 = vadd.f32 %v4172, %v4224
    %4226 = vadd.xlane.f32.xlu0 %v4225
    %v4227 = vpop.xlane.xlu0 %4226
    %v4228 = vsel %vm4059, %v4175, 0.0
    %v4229 = vadd.f32 %v4174, %v4228
    %4230 = vadd.xlane.f32.xlu0 %v4229
    %v4231 = vpop.xlane.xlu0 %4230
    %v4232 = vsel %vm4059, %v4177, 0.0
    %v4233 = vadd.f32 %v4176, %v4232
    %4234 = vadd.xlane.f32.xlu0 %v4233
    %v4235 = vpop.xlane.xlu0 %4234
    %v4236 = vsel %vm4059, %v4179, 0.0
    %v4237 = vadd.f32 %v4178, %v4236
    %4238 = vadd.xlane.f32.xlu0 %v4237
    %v4239 = vpop.xlane.xlu0 %4238
    %v4240 = vsel %vm4059, %v4181, 0.0
    %v4241 = vadd.f32 %v4180, %v4240
    %4242 = vadd.xlane.f32.xlu0 %v4241
    %v4243 = vpop.xlane.xlu0 %4242
    %v4244 = vsel %vm4059, %v4183, 0.0
    %v4245 = vadd.f32 %v4182, %v4244
    %4246 = vadd.xlane.f32.xlu0 %v4245
    %v4247 = vpop.xlane.xlu0 %4246
    %v4248 = vsel %vm4059, %v4185, 0.0
    %v4249 = vadd.f32 %v4184, %v4248
    %4250 = vadd.xlane.f32.xlu0 %v4249
    %v4251 = vpop.xlane.xlu0 %4250
    %v4252 = vsel %vm4059, %v4187, 0.0
    %v4253 = vadd.f32 %v4186, %v4252
    %4254 = vadd.xlane.f32.xlu0 %v4253
    %v4255 = vpop.xlane.xlu0 %4254
    %v4256 = vsel %vm4059, %v4189, 0.0
    %v4257 = vadd.f32 %v4188, %v4256
    %4258 = vadd.xlane.f32.xlu0 %v4257
    %v4259 = vpop.xlane.xlu0 %4258
    %v4260 = vsel %vm4059, %v4191, 0.0
    %v4261 = vadd.f32 %v4190, %v4260
    %4262 = vadd.xlane.f32.xlu0 %v4261
    %v4263 = vpop.xlane.xlu0 %4262
    %v4264 = vsel %vm4059, %v4193, 0.0
    %v4265 = vadd.f32 %v4192, %v4264
    %4266 = vadd.xlane.f32.xlu0 %v4265
    %v4267 = vpop.xlane.xlu0 %4266
    %v4268 = vsel %vm4059, %v4195, 0.0
    %v4269 = vadd.f32 %v4194, %v4268
    %4270 = vadd.xlane.f32.xlu0 %v4269
    %v4271 = vpop.xlane.xlu0 %4270
    %v4272 = vsel %vm4059, %v4197, 0.0
    %v4273 = vadd.f32 %v4196, %v4272
    %4274 = vadd.xlane.f32.xlu0 %v4273
    %v4275 = vpop.xlane.xlu0 %4274
    %v4276 = vsel %vm4059, %v4199, 0.0
    %v4277 = vadd.f32 %v4198, %v4276
    %4278 = vadd.xlane.f32.xlu0 %v4277
    %v4279 = vpop.xlane.xlu0 %4278
    %v4280 = vmul.f32 %v4203, 0.0051020407
    %v4281 = vmul.f32 %v4207, 0.0051020407
    %v4282 = vmul.f32 %v4211, 0.0051020407
    %v4283 = vmul.f32 %v4215, 0.0051020407
    %v4284 = vmul.f32 %v4219, 0.0051020407
    %v4285 = vmul.f32 %v4223, 0.0051020407
    %v4286 = vmul.f32 %v4227, 0.0051020407
    %v4287 = vmul.f32 %v4231, 0.0051020407
    %v4288 = vmul.f32 %v4235, 0.0051020407
    %v4289 = vmul.f32 %v4239, 0.0051020407
    %v4290 = vmul.f32 %v4243, 0.0051020407
    %v4291 = vmul.f32 %v4247, 0.0051020407
    %v4292 = vmul.f32 %v4251, 0.0051020407
    %v4293 = vmul.f32 %v4255, 0.0051020407
    %v4294 = vmul.f32 %v4259, 0.0051020407
    %v4295 = vmul.f32 %v4263, 0.0051020407
    %v4296 = vmul.f32 %v4267, 0.0051020407
    %v4297 = vmul.f32 %v4271, 0.0051020407
    %v4298 = vmul.f32 %v4275, 0.0051020407
    %v4299 = vmul.f32 %v4279, 0.0051020407
    %v4300 = vmul.f32 %v4140, %v4140
    %v4301 = vmul.f32 %v4141, %v4141
    %v4302 = vmul.f32 %v4142, %v4142
    %v4303 = vmul.f32 %v4143, %v4143
    %v4304 = vmul.f32 %v4144, %v4144
    %v4305 = vmul.f32 %v4145, %v4145
    %v4306 = vmul.f32 %v4146, %v4146
    %v4307 = vmul.f32 %v4147, %v4147
    %v4308 = vmul.f32 %v4148, %v4148
    %v4309 = vmul.f32 %v4149, %v4149
    %v4310 = vmul.f32 %v4150, %v4150
    %v4311 = vmul.f32 %v4151, %v4151
    %v4312 = vmul.f32 %v4152, %v4152
    %v4313 = vmul.f32 %v4153, %v4153
    %v4314 = vmul.f32 %v4154, %v4154
    %v4315 = vmul.f32 %v4155, %v4155
    %v4316 = vmul.f32 %v4156, %v4156
    %v4317 = vmul.f32 %v4157, %v4157
    %v4318 = vmul.f32 %v4158, %v4158
    %v4319 = vmul.f32 %v4159, %v4159
    %v4320 = vsub.f32 %v4280, %v4300
    %v4321 = vsub.f32 %v4281, %v4301
    %v4322 = vsub.f32 %v4282, %v4302
    %v4323 = vsub.f32 %v4283, %v4303
    %v4324 = vsub.f32 %v4284, %v4304
    %v4325 = vsub.f32 %v4285, %v4305
    %v4326 = vsub.f32 %v4286, %v4306
    %v4327 = vsub.f32 %v4287, %v4307
    %v4328 = vsub.f32 %v4288, %v4308
    %v4329 = vsub.f32 %v4289, %v4309
    %v4330 = vsub.f32 %v4290, %v4310
    %v4331 = vsub.f32 %v4291, %v4311
    %v4332 = vsub.f32 %v4292, %v4312
    %v4333 = vsub.f32 %v4293, %v4313
    %v4334 = vsub.f32 %v4294, %v4314
    %v4335 = vsub.f32 %v4295, %v4315
    %v4336 = vsub.f32 %v4296, %v4316
    %v4337 = vsub.f32 %v4297, %v4317
    %v4338 = vsub.f32 %v4298, %v4318
    %v4339 = vsub.f32 %v4299, %v4319
    %v4340 = vadd.f32 %v4320, 0.001
    %v4341 = vadd.f32 %v4321, 0.001
    %v4342 = vadd.f32 %v4322, 0.001
    %v4343 = vadd.f32 %v4323, 0.001
    %v4344 = vadd.f32 %v4324, 0.001
    %v4345 = vadd.f32 %v4325, 0.001
    %v4346 = vadd.f32 %v4326, 0.001
    %v4347 = vadd.f32 %v4327, 0.001
    %v4348 = vadd.f32 %v4328, 0.001
    %v4349 = vadd.f32 %v4329, 0.001
    %v4350 = vadd.f32 %v4330, 0.001
    %v4351 = vadd.f32 %v4331, 0.001
    %v4352 = vadd.f32 %v4332, 0.001
    %v4353 = vadd.f32 %v4333, 0.001
    %v4354 = vadd.f32 %v4334, 0.001
    %v4355 = vadd.f32 %v4335, 0.001
    %v4356 = vadd.f32 %v4336, 0.001
    %v4357 = vadd.f32 %v4337, 0.001
    %v4358 = vadd.f32 %v4338, 0.001
    %v4359 = vadd.f32 %v4339, 0.001
    %v4360 = vrsqrt.pop %v4340
    %v4361 = vrsqrt.pop %v4341
    %v4362 = vrsqrt.pop %v4342
    %v4363 = vrsqrt.pop %v4343
    %v4364 = vrsqrt.pop %v4344
    %v4365 = vrsqrt.pop %v4345
    %v4366 = vrsqrt.pop %v4346
    %v4367 = vrsqrt.pop %v4347
    %v4368 = vrsqrt.pop %v4348
    %v4369 = vrsqrt.pop %v4349
    %v4370 = vrsqrt.pop %v4350
    %v4371 = vrsqrt.pop %v4351
    %v4372 = vrsqrt.pop %v4352
    %v4373 = vrsqrt.pop %v4353
    %v4374 = vrsqrt.pop %v4354
    %v4375 = vrsqrt.pop %v4355
    %v4376 = vrsqrt.pop %v4356
    %v4377 = vrsqrt.pop %v4357
    %v4378 = vrsqrt.pop %v4358
    %v4379 = vrsqrt.pop %v4359
    %v4380 = vsub.f32 %v3941, %v4140
    %v4381 = vsub.f32 %v3943, %v4140
    %v4382 = vsub.f32 %v3947, %v4141
    %v4383 = vsub.f32 %v3949, %v4141
    %v4384 = vsub.f32 %v3953, %v4142
    %v4385 = vsub.f32 %v3955, %v4142
    %v4386 = vsub.f32 %v3959, %v4143
    %v4387 = vsub.f32 %v3961, %v4143
    %v4388 = vsub.f32 %v3965, %v4144
    %v4389 = vsub.f32 %v3967, %v4144
    %v4390 = vsub.f32 %v3971, %v4145
    %v4391 = vsub.f32 %v3973, %v4145
    %v4392 = vsub.f32 %v3977, %v4146
    %v4393 = vsub.f32 %v3979, %v4146
    %v4394 = vsub.f32 %v3983, %v4147
    %v4395 = vsub.f32 %v3985, %v4147
    %v4396 = vsub.f32 %v3989, %v4148
    %v4397 = vsub.f32 %v3991, %v4148
    %v4398 = vsub.f32 %v3995, %v4149
    %v4399 = vsub.f32 %v3997, %v4149
    %v4400 = vsub.f32 %v4001, %v4150
    %v4401 = vsub.f32 %v4003, %v4150
    %v4402 = vsub.f32 %v4007, %v4151
    %v4403 = vsub.f32 %v4009, %v4151
    %v4404 = vsub.f32 %v4013, %v4152
    %v4405 = vsub.f32 %v4015, %v4152
    %v4406 = vsub.f32 %v4019, %v4153
    %v4407 = vsub.f32 %v4021, %v4153
    %v4408 = vsub.f32 %v4025, %v4154
    %v4409 = vsub.f32 %v4027, %v4154
    %v4410 = vsub.f32 %v4031, %v4155
    %v4411 = vsub.f32 %v4033, %v4155
    %v4412 = vsub.f32 %v4037, %v4156
    %v4413 = vsub.f32 %v4039, %v4156
    %v4414 = vsub.f32 %v4043, %v4157
    %v4415 = vsub.f32 %v4045, %v4157
    %v4416 = vsub.f32 %v4049, %v4158
    %v4417 = vsub.f32 %v4051, %v4158
    %v4418 = vsub.f32 %v4055, %v4159
    %v4419 = vsub.f32 %v4057, %v4159
    %v4420 = vld [vmem:[%s5] sm:$0xff]
    %v4421 = vld [vmem:[%s5 + $0x8] sm:$0xff]
    %v4422 = vld [vmem:[%s5 + $0x10] sm:$0xff]
    %v4423 = vld [vmem:[%s5 + $0x18] sm:$0xff]
    %v4424 = vld [vmem:[%s5 + $0x20] sm:$0xff]
    %v4425 = vld [vmem:[%s5 + $0x28] sm:$0xff]
    %v4426 = vld [vmem:[%s5 + $0x30] sm:$0xff]
    %v4427 = vld [vmem:[%s5 + $0x38] sm:$0xff]
    %v4428 = vld [vmem:[%s5 + $0x40] sm:$0xff]
    %v4429 = vld [vmem:[%s5 + $0x48] sm:$0xff]
    %v4430 = vld [vmem:[%s5 + $0x50] sm:$0xff]
    %v4431 = vld [vmem:[%s5 + $0x58] sm:$0xff]
    %v4432 = vld [vmem:[%s5 + $0x60] sm:$0xff]
    %v4433 = vld [vmem:[%s5 + $0x68] sm:$0xff]
    %v4434 = vld [vmem:[%s5 + $0x70] sm:$0xff]
    %v4435 = vld [vmem:[%s5 + $0x78] sm:$0xff]
    %v4436 = vld [vmem:[%s5 + $0x80] sm:$0xff]
    %v4437 = vld [vmem:[%s5 + $0x88] sm:$0xff]
    %v4438 = vld [vmem:[%s5 + $0x90] sm:$0xff]
    %v4439 = vld [vmem:[%s5 + $0x98] sm:$0xff]
    %v4440 = vmul.f32 %v4360, %v4420
    %v4441 = vmul.f32 %v4361, %v4421
    %v4442 = vmul.f32 %v4362, %v4422
    %v4443 = vmul.f32 %v4363, %v4423
    %v4444 = vmul.f32 %v4364, %v4424
    %v4445 = vmul.f32 %v4365, %v4425
    %v4446 = vmul.f32 %v4366, %v4426
    %v4447 = vmul.f32 %v4367, %v4427
    %v4448 = vmul.f32 %v4368, %v4428
    %v4449 = vmul.f32 %v4369, %v4429
    %v4450 = vmul.f32 %v4370, %v4430
    %v4451 = vmul.f32 %v4371, %v4431
    %v4452 = vmul.f32 %v4372, %v4432
    %v4453 = vmul.f32 %v4373, %v4433
    %v4454 = vmul.f32 %v4374, %v4434
    %v4455 = vmul.f32 %v4375, %v4435
    %v4456 = vmul.f32 %v4376, %v4436
    %v4457 = vmul.f32 %v4377, %v4437
    %v4458 = vmul.f32 %v4378, %v4438
    %v4459 = vmul.f32 %v4379, %v4439
    %4461 = vset.pattern.permute.xlu0 0
    %4462 = vperm.xlu0 %4461, %v4440
    %v4463 = vpop.permute.xlu0 %4462
    %4466 = vset.pattern.permute.xlu0 0
    %4467 = vperm.xlu0 %4466, %v4441
    %v4468 = vpop.permute.xlu0 %4467
    %4471 = vset.pattern.permute.xlu0 0
    %4472 = vperm.xlu0 %4471, %v4442
    %v4473 = vpop.permute.xlu0 %4472
    %4476 = vset.pattern.permute.xlu0 0
    %4477 = vperm.xlu0 %4476, %v4443
    %v4478 = vpop.permute.xlu0 %4477
    %4481 = vset.pattern.permute.xlu0 0
    %4482 = vperm.xlu0 %4481, %v4444
    %v4483 = vpop.permute.xlu0 %4482
    %4486 = vset.pattern.permute.xlu0 0
    %4487 = vperm.xlu0 %4486, %v4445
    %v4488 = vpop.permute.xlu0 %4487
    %4491 = vset.pattern.permute.xlu0 0
    %4492 = vperm.xlu0 %4491, %v4446
    %v4493 = vpop.permute.xlu0 %4492
    %4496 = vset.pattern.permute.xlu0 0
    %4497 = vperm.xlu0 %4496, %v4447
    %v4498 = vpop.permute.xlu0 %4497
    %4501 = vset.pattern.permute.xlu0 0
    %4502 = vperm.xlu0 %4501, %v4448
    %v4503 = vpop.permute.xlu0 %4502
    %4506 = vset.pattern.permute.xlu0 0
    %4507 = vperm.xlu0 %4506, %v4449
    %v4508 = vpop.permute.xlu0 %4507
    %4511 = vset.pattern.permute.xlu0 0
    %4512 = vperm.xlu0 %4511, %v4450
    %v4513 = vpop.permute.xlu0 %4512
    %4516 = vset.pattern.permute.xlu0 0
    %4517 = vperm.xlu0 %4516, %v4451
    %v4518 = vpop.permute.xlu0 %4517
    %4521 = vset.pattern.permute.xlu0 0
    %4522 = vperm.xlu0 %4521, %v4452
    %v4523 = vpop.permute.xlu0 %4522
    %4526 = vset.pattern.permute.xlu0 0
    %4527 = vperm.xlu0 %4526, %v4453
    %v4528 = vpop.permute.xlu0 %4527
    %4531 = vset.pattern.permute.xlu0 0
    %4532 = vperm.xlu0 %4531, %v4454
    %v4533 = vpop.permute.xlu0 %4532
    %4536 = vset.pattern.permute.xlu0 0
    %4537 = vperm.xlu0 %4536, %v4455
    %v4538 = vpop.permute.xlu0 %4537
    %4541 = vset.pattern.permute.xlu0 0
    %4542 = vperm.xlu0 %4541, %v4456
    %v4543 = vpop.permute.xlu0 %4542
    %4546 = vset.pattern.permute.xlu0 0
    %4547 = vperm.xlu0 %4546, %v4457
    %v4548 = vpop.permute.xlu0 %4547
    %4551 = vset.pattern.permute.xlu0 0
    %4552 = vperm.xlu0 %4551, %v4458
    %v4553 = vpop.permute.xlu0 %4552
    %4556 = vset.pattern.permute.xlu0 0
    %4557 = vperm.xlu0 %4556, %v4459
    %v4558 = vpop.permute.xlu0 %4557
    %v4560 = vmul.f32 %v4380, %v4463
    %v4561 = vmul.f32 %v4381, %v4463
    %v4562 = vmul.f32 %v4382, %v4468
    %v4563 = vmul.f32 %v4383, %v4468
    %v4564 = vmul.f32 %v4384, %v4473
    %v4565 = vmul.f32 %v4385, %v4473
    %v4566 = vmul.f32 %v4386, %v4478
    %v4567 = vmul.f32 %v4387, %v4478
    %v4568 = vmul.f32 %v4388, %v4483
    %v4569 = vmul.f32 %v4389, %v4483
    %v4570 = vmul.f32 %v4390, %v4488
    %v4571 = vmul.f32 %v4391, %v4488
    %v4572 = vmul.f32 %v4392, %v4493
    %v4573 = vmul.f32 %v4393, %v4493
    %v4574 = vmul.f32 %v4394, %v4498
    %v4575 = vmul.f32 %v4395, %v4498
    %v4576 = vmul.f32 %v4396, %v4503
    %v4577 = vmul.f32 %v4397, %v4503
    %v4578 = vmul.f32 %v4398, %v4508
    %v4579 = vmul.f32 %v4399, %v4508
    %v4580 = vmul.f32 %v4400, %v4513
    %v4581 = vmul.f32 %v4401, %v4513
    %v4582 = vmul.f32 %v4402, %v4518
    %v4583 = vmul.f32 %v4403, %v4518
    %v4584 = vmul.f32 %v4404, %v4523
    %v4585 = vmul.f32 %v4405, %v4523
    %v4586 = vmul.f32 %v4406, %v4528
    %v4587 = vmul.f32 %v4407, %v4528
    %v4588 = vmul.f32 %v4408, %v4533
    %v4589 = vmul.f32 %v4409, %v4533
    %v4590 = vmul.f32 %v4410, %v4538
    %v4591 = vmul.f32 %v4411, %v4538
    %v4592 = vmul.f32 %v4412, %v4543
    %v4593 = vmul.f32 %v4413, %v4543
    %v4594 = vmul.f32 %v4414, %v4548
    %v4595 = vmul.f32 %v4415, %v4548
    %v4596 = vmul.f32 %v4416, %v4553
    %v4597 = vmul.f32 %v4417, %v4553
    %v4598 = vmul.f32 %v4418, %v4558
    %v4599 = vmul.f32 %v4419, %v4558
    %v4600 = vld [vmem:[%s6] sm:$0xff]
    %v4601 = vld [vmem:[%s6 + $0x8] sm:$0xff]
    %v4602 = vld [vmem:[%s6 + $0x10] sm:$0xff]
    %v4603 = vld [vmem:[%s6 + $0x18] sm:$0xff]
    %v4604 = vld [vmem:[%s6 + $0x20] sm:$0xff]
    %v4605 = vld [vmem:[%s6 + $0x28] sm:$0xff]
    %v4606 = vld [vmem:[%s6 + $0x30] sm:$0xff]
    %v4607 = vld [vmem:[%s6 + $0x38] sm:$0xff]
    %v4608 = vld [vmem:[%s6 + $0x40] sm:$0xff]
    %v4609 = vld [vmem:[%s6 + $0x48] sm:$0xff]
    %v4610 = vld [vmem:[%s6 + $0x50] sm:$0xff]
    %v4611 = vld [vmem:[%s6 + $0x58] sm:$0xff]
    %v4612 = vld [vmem:[%s6 + $0x60] sm:$0xff]
    %v4613 = vld [vmem:[%s6 + $0x68] sm:$0xff]
    %v4614 = vld [vmem:[%s6 + $0x70] sm:$0xff]
    %v4615 = vld [vmem:[%s6 + $0x78] sm:$0xff]
    %v4616 = vld [vmem:[%s6 + $0x80] sm:$0xff]
    %v4617 = vld [vmem:[%s6 + $0x88] sm:$0xff]
    %v4618 = vld [vmem:[%s6 + $0x90] sm:$0xff]
    %v4619 = vld [vmem:[%s6 + $0x98] sm:$0xff]
    %4621 = vset.pattern.permute.xlu0 0
    %4622 = vperm.xlu0 %4621, %v4600
    %v4623 = vpop.permute.xlu0 %4622
    %4626 = vset.pattern.permute.xlu0 0
    %4627 = vperm.xlu0 %4626, %v4601
    %v4628 = vpop.permute.xlu0 %4627
    %4631 = vset.pattern.permute.xlu0 0
    %4632 = vperm.xlu0 %4631, %v4602
    %v4633 = vpop.permute.xlu0 %4632
    %4636 = vset.pattern.permute.xlu0 0
    %4637 = vperm.xlu0 %4636, %v4603
    %v4638 = vpop.permute.xlu0 %4637
    %4641 = vset.pattern.permute.xlu0 0
    %4642 = vperm.xlu0 %4641, %v4604
    %v4643 = vpop.permute.xlu0 %4642
    %4646 = vset.pattern.permute.xlu0 0
    %4647 = vperm.xlu0 %4646, %v4605
    %v4648 = vpop.permute.xlu0 %4647
    %4651 = vset.pattern.permute.xlu0 0
    %4652 = vperm.xlu0 %4651, %v4606
    %v4653 = vpop.permute.xlu0 %4652
    %4656 = vset.pattern.permute.xlu0 0
    %4657 = vperm.xlu0 %4656, %v4607
    %v4658 = vpop.permute.xlu0 %4657
    %4661 = vset.pattern.permute.xlu0 0
    %4662 = vperm.xlu0 %4661, %v4608
    %v4663 = vpop.permute.xlu0 %4662
    %4666 = vset.pattern.permute.xlu0 0
    %4667 = vperm.xlu0 %4666, %v4609
    %v4668 = vpop.permute.xlu0 %4667
    %4671 = vset.pattern.permute.xlu0 0
    %4672 = vperm.xlu0 %4671, %v4610
    %v4673 = vpop.permute.xlu0 %4672
    %4676 = vset.pattern.permute.xlu0 0
    %4677 = vperm.xlu0 %4676, %v4611
    %v4678 = vpop.permute.xlu0 %4677
    %4681 = vset.pattern.permute.xlu0 0
    %4682 = vperm.xlu0 %4681, %v4612
    %v4683 = vpop.permute.xlu0 %4682
    %4686 = vset.pattern.permute.xlu0 0
    %4687 = vperm.xlu0 %4686, %v4613
    %v4688 = vpop.permute.xlu0 %4687
    %4691 = vset.pattern.permute.xlu0 0
    %4692 = vperm.xlu0 %4691, %v4614
    %v4693 = vpop.permute.xlu0 %4692
    %4696 = vset.pattern.permute.xlu0 0
    %4697 = vperm.xlu0 %4696, %v4615
    %v4698 = vpop.permute.xlu0 %4697
    %4701 = vset.pattern.permute.xlu0 0
    %4702 = vperm.xlu0 %4701, %v4616
    %v4703 = vpop.permute.xlu0 %4702
    %4706 = vset.pattern.permute.xlu0 0
    %4707 = vperm.xlu0 %4706, %v4617
    %v4708 = vpop.permute.xlu0 %4707
    %4711 = vset.pattern.permute.xlu0 0
    %4712 = vperm.xlu0 %4711, %v4618
    %v4713 = vpop.permute.xlu0 %4712
    %4716 = vset.pattern.permute.xlu0 0
    %4717 = vperm.xlu0 %4716, %v4619
    %v4718 = vpop.permute.xlu0 %4717
    %v4720 = vadd.f32 %v4560, %v4623
    %v4721 = vadd.f32 %v4561, %v4623
    %v4722 = vadd.f32 %v4562, %v4628
    %v4723 = vadd.f32 %v4563, %v4628
    %v4724 = vadd.f32 %v4564, %v4633
    %v4725 = vadd.f32 %v4565, %v4633
    %v4726 = vadd.f32 %v4566, %v4638
    %v4727 = vadd.f32 %v4567, %v4638
    %v4728 = vadd.f32 %v4568, %v4643
    %v4729 = vadd.f32 %v4569, %v4643
    %v4730 = vadd.f32 %v4570, %v4648
    %v4731 = vadd.f32 %v4571, %v4648
    %v4732 = vadd.f32 %v4572, %v4653
    %v4733 = vadd.f32 %v4573, %v4653
    %v4734 = vadd.f32 %v4574, %v4658
    %v4735 = vadd.f32 %v4575, %v4658
    %v4736 = vadd.f32 %v4576, %v4663
    %v4737 = vadd.f32 %v4577, %v4663
    %v4738 = vadd.f32 %v4578, %v4668
    %v4739 = vadd.f32 %v4579, %v4668
    %v4740 = vadd.f32 %v4580, %v4673
    %v4741 = vadd.f32 %v4581, %v4673
    %v4742 = vadd.f32 %v4582, %v4678
    %v4743 = vadd.f32 %v4583, %v4678
    %v4744 = vadd.f32 %v4584, %v4683
    %v4745 = vadd.f32 %v4585, %v4683
    %v4746 = vadd.f32 %v4586, %v4688
    %v4747 = vadd.f32 %v4587, %v4688
    %v4748 = vadd.f32 %v4588, %v4693
    %v4749 = vadd.f32 %v4589, %v4693
    %v4750 = vadd.f32 %v4590, %v4698
    %v4751 = vadd.f32 %v4591, %v4698
    %v4752 = vadd.f32 %v4592, %v4703
    %v4753 = vadd.f32 %v4593, %v4703
    %v4754 = vadd.f32 %v4594, %v4708
    %v4755 = vadd.f32 %v4595, %v4708
    %v4756 = vadd.f32 %v4596, %v4713
    %v4757 = vadd.f32 %v4597, %v4713
    %v4758 = vadd.f32 %v4598, %v4718
    %v4759 = vadd.f32 %v4599, %v4718
    %4760 = vst [vmem:[#allocation2] sm:$0xff] %v4720
    %4761 = vst.msk [vmem:[#allocation2 + $0x8] sm:$0xff] %vm4059, %v4721
    %4762 = vst [vmem:[#allocation2 + $0x10] sm:$0xff] %v4722
    %4763 = vst.msk [vmem:[#allocation2 + $0x18] sm:$0xff] %vm4059, %v4723
    %4764 = vst [vmem:[#allocation2 + $0x20] sm:$0xff] %v4724
    %4765 = vst.msk [vmem:[#allocation2 + $0x28] sm:$0xff] %vm4059, %v4725
    %4766 = vst [vmem:[#allocation2 + $0x30] sm:$0xff] %v4726
    %4767 = vst.msk [vmem:[#allocation2 + $0x38] sm:$0xff] %vm4059, %v4727
    %4768 = vst [vmem:[#allocation2 + $0x40] sm:$0xff] %v4728
    %4769 = vst.msk [vmem:[#allocation2 + $0x48] sm:$0xff] %vm4059, %v4729
    %4770 = vst [vmem:[#allocation2 + $0x50] sm:$0xff] %v4730
    %4771 = vst.msk [vmem:[#allocation2 + $0x58] sm:$0xff] %vm4059, %v4731
    %4772 = vst [vmem:[#allocation2 + $0x60] sm:$0xff] %v4732
    %4773 = vst.msk [vmem:[#allocation2 + $0x68] sm:$0xff] %vm4059, %v4733
    %4774 = vst [vmem:[#allocation2 + $0x70] sm:$0xff] %v4734
    %4775 = vst.msk [vmem:[#allocation2 + $0x78] sm:$0xff] %vm4059, %v4735
    %4776 = vst [vmem:[#allocation2 + $0x80] sm:$0xff] %v4736
    %4777 = vst.msk [vmem:[#allocation2 + $0x88] sm:$0xff] %vm4059, %v4737
    %4778 = vst [vmem:[#allocation2 + $0x90] sm:$0xff] %v4738
    %4779 = vst.msk [vmem:[#allocation2 + $0x98] sm:$0xff] %vm4059, %v4739
    %4780 = vst [vmem:[#allocation2 + $0xa0] sm:$0xff] %v4740
    %4781 = vst.msk [vmem:[#allocation2 + $0xa8] sm:$0xff] %vm4059, %v4741
    %4782 = vst [vmem:[#allocation2 + $0xb0] sm:$0xff] %v4742
    %4783 = vst.msk [vmem:[#allocation2 + $0xb8] sm:$0xff] %vm4059, %v4743
    %4784 = vst [vmem:[#allocation2 + $0xc0] sm:$0xff] %v4744
    %4785 = vst.msk [vmem:[#allocation2 + $0xc8] sm:$0xff] %vm4059, %v4745
    %4786 = vst [vmem:[#allocation2 + $0xd0] sm:$0xff] %v4746
    %4787 = vst.msk [vmem:[#allocation2 + $0xd8] sm:$0xff] %vm4059, %v4747
    %4788 = vst [vmem:[#allocation2 + $0xe0] sm:$0xff] %v4748
    %4789 = vst.msk [vmem:[#allocation2 + $0xe8] sm:$0xff] %vm4059, %v4749
    %4790 = vst [vmem:[#allocation2 + $0xf0] sm:$0xff] %v4750
    %4791 = vst.msk [vmem:[#allocation2 + $0xf8] sm:$0xff] %vm4059, %v4751
    %4792 = vst [vmem:[#allocation2 + $0x100] sm:$0xff] %v4752
    %4793 = vst.msk [vmem:[#allocation2 + $0x108] sm:$0xff] %vm4059, %v4753
    %4794 = vst [vmem:[#allocation2 + $0x110] sm:$0xff] %v4754
    %4795 = vst.msk [vmem:[#allocation2 + $0x118] sm:$0xff] %vm4059, %v4755
    %4796 = vst [vmem:[#allocation2 + $0x120] sm:$0xff] %v4756
    %4797 = vst.msk [vmem:[#allocation2 + $0x128] sm:$0xff] %vm4059, %v4757
    %4798 = vst [vmem:[#allocation2 + $0x130] sm:$0xff] %v4758
    %4799 = vst.msk [vmem:[#allocation2 + $0x138] sm:$0xff] %vm4059, %v4759
    // Predicated region
    $region30: #{tpu_custom_call.1} parent=1 // pred_check
      _
    $region31: #{tpu_custom_call.1} parent=1 // pred_check_branch
      %4801 = sbr.rel (0) target = $region33
    $region32: #{tpu_custom_call.1} parent=1 // pred_region
      %s4803 = ssub.s32 5120, 5120
      %4804 = vsyncadd [#allocation3], %s4803
      %s4805 = sshll.u32 [#allocation2], 4
      %s4806 = int_to_ptr.vmem [resolvable:$true] %s4805
      %4811 = dma.vmem_to_hbm [thread:$0]  %s4806, 5120, %s7, [#allocation3], 256, 256, 16
    $region33: #{tpu_custom_call.1} parent=1 // pred_fallthru
      _
    // Predicated region
    $region34: #{tpu_custom_call.1} parent=1 // pred_check
      _
    $region35: #{tpu_custom_call.1} parent=1 // pred_check_branch
      %4813 = sbr.rel (0) target = $region37
    $region36: #{tpu_custom_call.1} parent=1 // pred_region
      %4814 = dma.done [#allocation3], 5120
    $region37: #{tpu_custom_call.1} parent=1 // pred_fallthru
      _
    %4815 = vsyncpa [#allocation3], 1

</llo_original>
